<compile_context>
chip_gen: v5e
topology: v5e:2x2
jax: 0.10.0
libtpu: 0.0.40
codegen_flags: <defaults>
</compile_context>

<pallas_src>
import functools

import jax
import jax.numpy as jnp
from jax.experimental import pallas as pl
from jax.experimental.pallas import tpu as pltpu


# ---------------------------------------------------------------------------
# Small device-aware helpers
# ---------------------------------------------------------------------------
def _round_up(x, m):
    return (x + m - 1) // m * m


def _device_kind():
    try:
        return jax.devices()[0].device_kind.lower()
    except Exception:
        return ""


def _mxu_depth():
    # v2-v5 MXUs are 128 deep; v6e / v7x are 256 deep.
    kind = _device_kind()
    for tag in ("v2", "v3", "v4", "v5"):
        if tag in kind:
            return 128
    return 256


def _vmem_limit_bytes():
    kind = _device_kind()
    if "v7" in kind:
        return 48 * 1024 * 1024       # 64 MiB physical per TC -> leave headroom
    if "v5" in kind or "v6" in kind:
        return 100 * 1024 * 1024      # 128 MiB parts: allow bigger blocks
    return 64 * 1024 * 1024


# ---------------------------------------------------------------------------
# In-kernel 3x3 convolution (valid conv over a pre-padded (H+2, W+2, C) tile)
# ---------------------------------------------------------------------------
def _conv3x3(x, wk_ref, hout, wout, kw_fold):
    """3x3 conv of x:(hout+2, wout+2, cin) with wk_ref:(3, 3*cin, cout) -> f32.

    Weight layout: wk[kh, kw*cin + c, o] == W_hwio[kh, kw, c, o].
    """
    cin = x.shape[-1]
    # Hoist the 3 kw-shifted (sublane-axis) views out of the tap loops; kh
    # shifts below are along a major axis and are essentially free.
    xs = [x[:, kw:kw + wout, :] for kw in range(3)]
    acc = None
    if kw_fold:
        # Lane-aligned channels below MXU depth: fold kw into the contraction
        # (K = 3*cin) so each MXU push is deep.
        xcat = jnp.concatenate(xs, axis=-1)                      # (hout+2, wout, 3*cin)
        for kh in range(3):
            t = jnp.einsum("hwk,ko->hwo", xcat[kh:kh + hout], wk_ref[kh],
                           preferred_element_type=jnp.float32)
            acc = t if acc is None else acc + t
    else:
        # One K=cin matmul per tap (also the path for non-lane-aligned cin, and
        # for deep stages where K=cin already fills the systolic array).
        for kh in range(3):
            for kw in range(3):
                tap = wk_ref[kh, kw * cin:(kw + 1) * cin, :]     # (cin, cout)
                t = jnp.einsum("hwc,co->hwo", xs[kw][kh:kh + hout], tap,
                               preferred_element_type=jnp.float32)
                acc = t if acc is None else acc + t
    return acc                                                   # (hout, wout, cout) f32


# ---------------------------------------------------------------------------
# Fused residual-block kernel (one grid step == one image)
# ---------------------------------------------------------------------------
def _residual_block_kernel(x_ref, w1_ref, b1_ref, w2_ref, b2_ref, out_ref,
                           xpad_sc, hpad_sc, *, H, W, C, Cp, kw_fold, mxu_dtype):
    # Zero the padded scratches every step.  With a "parallel" batch axis each
    # core may start at an arbitrary program_id, so an init-once-at-step-0
    # trick is unsafe; the zero stores are negligible next to two 3x3 convs and
    # supply both convs' SAME zero-halo and the zero lane-padding channels.
    xpad_sc[...] = jnp.zeros_like(xpad_sc)
    hpad_sc[...] = jnp.zeros_like(hpad_sc)

    # Single load of x: the f32 residual and the bf16 conv1 input come from the
    # same value (one vld pass over the block).
    xb = x_ref[0]                                                # (H, W, C)
    resid = xb.astype(jnp.float32)
    xpad_sc[1:H + 1, 1:W + 1, :C] = xb.astype(mxu_dtype)

    # ---- stage 1: h = relu(conv3x3(x) + b1)   (BN1 scale folded into w1) ----
    acc1 = _conv3x3(xpad_sc[...], w1_ref, H, W, kw_fold)         # (H, W, Cp) f32
    h = jnp.maximum(acc1 + b1_ref[...], 0.0)
    hpad_sc[1:H + 1, 1:W + 1, :] = h.astype(mxu_dtype)           # interior only

    # ---- stage 2: out = relu(conv3x3(h) + b2 + x) ---------------------------
    acc2 = _conv3x3(hpad_sc[...], w2_ref, H, W, kw_fold)         # (H, W, Cp) f32
    y = acc2 + b2_ref[...]
    if Cp != C:
        y = y[:, :, :C]                                          # drop lane padding
    out_ref[0] = jnp.maximum(y + resid, 0.0).astype(out_ref.dtype)


# ---------------------------------------------------------------------------
# Wrapper: weight repacking (BN fold + channel pad), pallas_call plumbing
# ---------------------------------------------------------------------------
def residual_block_forward(x_nhwc, w1_hwio, scale1, bias1, w2_hwio, scale2, bias2,
                           *, mxu_dtype=jnp.bfloat16):
    """Fused ResNet basic block, NHWC, stride 1, identity shortcut."""
    N, H, W, C = x_nhwc.shape
    assert w1_hwio.shape == (3, 3, C, C) and w2_hwio.shape == (3, 3, C, C)

    # Lane-dense channel padding for ResNet-sized stages (C = 64 -> 128); tiny
    # demo channel counts are left as-is (padding would only inflate VPU work).
    Cp = _round_up(C, 128) if C >= 64 else C

    # Fold BN scale into the conv output channels (in f32), pad to Cp, and
    # repack so the (kw, cin) taps are contiguous along the contraction axis.
    w1_eff = w1_hwio.astype(jnp.float32) * scale1.astype(jnp.float32)[None, None, None, :]
    w2_eff = w2_hwio.astype(jnp.float32) * scale2.astype(jnp.float32)[None, None, None, :]

    def pack_w(w):
        if Cp != C:
            w = jnp.pad(w, ((0, 0), (0, 0), (0, Cp - C), (0, Cp - C)))
        return w.reshape(3, 3 * Cp, Cp).astype(mxu_dtype)

    def pack_b(b):
        b = b.astype(jnp.float32)
        if Cp != C:
            b = jnp.pad(b, ((0, Cp - C),))
        return b.reshape(1, 1, Cp)

    w1k, w2k = pack_w(w1_eff), pack_w(w2_eff)
    b1, b2 = pack_b(bias1), pack_b(bias2)

    # Fold kw into the contraction only while it actually deepens K below the
    # MXU depth (128 on <=v5, 256 on v6e/v7x); otherwise the 3x activation
    # concat is pure copy cost / VMEM pressure.
    kw_fold = (Cp % 128 == 0) and (Cp < _mxu_depth())

    # TODO(synk): stride-2 / 1x1-downsample shortcut variant and training-mode
    #             BN (batch statistics) are not implemented.
    # TODO(synk): for spatial extents much larger than 56x56 add an H-row grid
    #             axis (halo DMA) to bound the per-block VMEM footprint; for
    #             the small late stages (14x14/7x7) batch several images per
    #             grid block to amortize the ~0.35us per-step overhead.
    # TODO(synk): on v5e, passing x (and the output) in bf16 halves DMA bytes
    #             for the memory-bound small-C stages.
    kernel = functools.partial(_residual_block_kernel, H=H, W=W, C=C, Cp=Cp,
                               kw_fold=kw_fold, mxu_dtype=mxu_dtype)
    full = lambda n: (0, 0, 0)

    return pl.pallas_call(
        kernel,
        out_shape=jax.ShapeDtypeStruct((N, H, W, C), x_nhwc.dtype),
        grid=(N,),
        in_specs=[
            pl.BlockSpec((1, H, W, C), lambda n: (n, 0, 0, 0)),   # unpadded x
            pl.BlockSpec((3, 3 * Cp, Cp), full),                  # w1 (scale folded)
            pl.BlockSpec((1, 1, Cp), full),                       # bias1
            pl.BlockSpec((3, 3 * Cp, Cp), full),                  # w2 (scale folded)
            pl.BlockSpec((1, 1, Cp), full),                       # bias2
        ],
        out_specs=pl.BlockSpec((1, H, W, C), lambda n: (n, 0, 0, 0)),
        scratch_shapes=[
            pltpu.VMEM((H + 2, W + 2, Cp), mxu_dtype),            # x + SAME halo
            pltpu.VMEM((H + 2, W + 2, Cp), mxu_dtype),            # h + SAME halo
        ],
        compiler_params=pltpu.CompilerParams(
            dimension_semantics=("parallel",),       # shard batch over TCs
            vmem_limit_bytes=_vmem_limit_bytes(),    # generation-aware cap
        ),
    )(x_nhwc, w1k, b1, w2k, b2)


def fold_bn(gamma, beta, mean, var, eps=1e-5):
    scale = gamma / jnp.sqrt(var + eps)
    bias = beta - mean * scale
    return scale, bias


class ResidualBlockPallas:
    """ResNet-18 basic block, identity shortcut, stride 1 (Cin == Cout)."""

    def __init__(self, channels, key, dtype=jnp.float32):
        ks = jax.random.split(key, 10)
        c = channels
        # conv weights stored HWIO (kernel-friendly); PyTorch stores OIHW.
        self.w1 = (0.1 * jax.random.normal(ks[0], (3, 3, c, c))).astype(dtype)
        self.w2 = (0.1 * jax.random.normal(ks[1], (3, 3, c, c))).astype(dtype)
        # BatchNorm params (folded eval-mode affine).
        g1 = 1.0 + 0.1 * jax.random.normal(ks[2], (c,))
        b1 = 0.1 * jax.random.normal(ks[3], (c,))
        m1 = 0.1 * jax.random.normal(ks[4], (c,))
        v1 = 0.5 + jax.random.uniform(ks[5], (c,))
        g2 = 1.0 + 0.1 * jax.random.normal(ks[6], (c,))
        b2 = 0.1 * jax.random.normal(ks[7], (c,))
        m2 = 0.1 * jax.random.normal(ks[8], (c,))
        v2 = 0.5 + jax.random.uniform(ks[9], (c,))
        self.scale1, self.bias1 = fold_bn(g1, b1, m1, v1)
        self.scale2, self.bias2 = fold_bn(g2, b2, m2, v2)

    def __call__(self, x_nchw):
        x = jnp.transpose(x_nchw, (0, 2, 3, 1))                  # NCHW -> NHWC
        o = residual_block_forward(x, self.w1, self.scale1, self.bias1,
                                   self.w2, self.scale2, self.bias2)
        return jnp.transpose(o, (0, 3, 1, 2))                    # NHWC -> NCHW


# ---------------------------------------------------------------------------
# Pure-JAX reference (correctness check only) — scale folded like the kernel.
# ---------------------------------------------------------------------------
def ref_forward(x_nchw, blk: ResidualBlockPallas, conv_dtype=jnp.float32):
    x = jnp.transpose(x_nchw, (0, 2, 3, 1)).astype(jnp.float32)
    w1 = blk.w1.astype(jnp.float32) * blk.scale1[None, None, None, :]
    w2 = blk.w2.astype(jnp.float32) * blk.scale2[None, None, None, :]

    def conv(a, w):
        return jax.lax.conv_general_dilated(
            a.astype(conv_dtype), w.astype(conv_dtype),
            window_strides=(1, 1), padding="SAME",
            dimension_numbers=("NHWC", "HWIO", "NHWC"),
            preferred_element_type=jnp.float32)

    h = jnp.maximum(conv(x, w1) + blk.bias1, 0.0)
    o = jnp.maximum(conv(h, w2) + blk.bias2 + x, 0.0)
    return jnp.transpose(o, (0, 3, 1, 2))


if __name__ == "__main__":
    key = jax.random.PRNGKey(0)
    k_x, k_p, k_x2, k_p2 = jax.random.split(key, 4)

    # --- primary test: small shapes matching the module convention (NCHW) ----
    N, C, H, W = 2, 4, 16, 16
    x = jax.random.normal(k_x, (N, C, H, W), dtype=jnp.float32)
    block = ResidualBlockPallas(C, k_p)

    y = jax.block_until_ready(block(x))
    assert y.shape == (N, C, H, W)

    # Tight check vs a reference matching the kernel's bf16 MXU operands.
    y_ref_bf16 = jax.block_until_ready(ref_forward(x, block, conv_dtype=jnp.bfloat16))
    assert jnp.allclose(y, y_ref_bf16, atol=2e-2, rtol=2e-2), "mismatch vs bf16 reference"
    # Loose sanity check vs full-f32 math (bf16 matmul rounding only).
    y_ref_f32 = jax.block_until_ready(ref_forward(x, block, conv_dtype=jnp.float32))
    assert jnp.allclose(y, y_ref_f32, atol=1e-1, rtol=1e-1), "mismatch vs f32 reference"

    # --- secondary test: lane-dense / padded-channel path (C=64 -> Cp=128) ---
    N2, C2, H2, W2 = 1, 64, 8, 8
    x2 = jax.random.normal(k_x2, (N2, C2, H2, W2), dtype=jnp.float32)
    block2 = ResidualBlockPallas(C2, k_p2)
    y2 = jax.block_until_ready(block2(x2))
    y2_ref = jax.block_until_ready(ref_forward(x2, block2, conv_dtype=jnp.bfloat16))
    assert jnp.allclose(y2, y2_ref, atol=3e-2, rtol=3e-2), "mismatch (lane-dense path)"

    print("KERNEL_OK")
</pallas_src>

<mosaic_0001>
module attributes {stable_mosaic.version = 11 : i64} {
  func.func @_residual_block_kernel(%arg0: i32, %arg1: memref<1x16x16x4xf32, #tpu.memory_space<vmem>>, %arg2: memref<3x12x4xbf16, #tpu.memory_space<vmem>>, %arg3: memref<1x1x4xf32, #tpu.memory_space<vmem>>, %arg4: memref<3x12x4xbf16, #tpu.memory_space<vmem>>, %arg5: memref<1x1x4xf32, #tpu.memory_space<vmem>>, %arg6: memref<1x16x16x4xf32, #tpu.memory_space<vmem>>, %arg7: memref<18x18x4xbf16, #tpu.memory_space<vmem>>, %arg8: memref<18x18x4xbf16, #tpu.memory_space<vmem>>) attributes {dimension_semantics = [#tpu.dimension_semantics<parallel>], iteration_bounds = array<i64: 2>, scalar_prefetch = 0 : i64, scratch_operands = 2 : i64, tpu.core_type = #tpu.core_type<tc>, window_params = [{transform_indices = @transform_0, window_bounds = array<i64: 1, 16, 16, 4>}, {pipeline_mode = #tpu.pipeline_mode<synchronous>, transform_indices = @transform_1, window_bounds = array<i64: 3, 12, 4>}, {pipeline_mode = #tpu.pipeline_mode<synchronous>, transform_indices = @transform_2, window_bounds = array<i64: 1, 1, 4>}, {pipeline_mode = #tpu.pipeline_mode<synchronous>, transform_indices = @transform_3, window_bounds = array<i64: 3, 12, 4>}, {pipeline_mode = #tpu.pipeline_mode<synchronous>, transform_indices = @transform_4, window_bounds = array<i64: 1, 1, 4>}, {transform_indices = @transform_5, window_bounds = array<i64: 1, 16, 16, 4>}]} {
    %cst = arith.constant 0.000000e+00 : bf16
    %0 = vector.broadcast %cst : bf16 to vector<18x18x4xbf16>
    %c0 = arith.constant 0 : index
    %c0_0 = arith.constant 0 : index
    %c0_1 = arith.constant 0 : index
    %1 = vector.load %arg7[%c0, %c0_0, %c0_1] : memref<18x18x4xbf16, #tpu.memory_space<vmem>>, vector<18x18x4xbf16>
    tpu.vector_store %arg7[%c0, %c0_0, %c0_1], %0 {strides = array<i32>} : memref<18x18x4xbf16, #tpu.memory_space<vmem>>, vector<18x18x4xbf16>,
    %cst_2 = arith.constant 0.000000e+00 : bf16
    %2 = vector.broadcast %cst_2 : bf16 to vector<18x18x4xbf16>
    %c0_3 = arith.constant 0 : index
    %c0_4 = arith.constant 0 : index
    %c0_5 = arith.constant 0 : index
    %3 = vector.load %arg8[%c0_3, %c0_4, %c0_5] : memref<18x18x4xbf16, #tpu.memory_space<vmem>>, vector<18x18x4xbf16>
    tpu.vector_store %arg8[%c0_3, %c0_4, %c0_5], %2 {strides = array<i32>} : memref<18x18x4xbf16, #tpu.memory_space<vmem>>, vector<18x18x4xbf16>,
    %c0_6 = arith.constant 0 : index
    %c0_7 = arith.constant 0 : index
    %c0_8 = arith.constant 0 : index
    %c0_9 = arith.constant 0 : index
    %4 = vector.load %arg1[%c0_6, %c0_7, %c0_8, %c0_9] : memref<1x16x16x4xf32, #tpu.memory_space<vmem>>, vector<1x16x16x4xf32>
    %5 = vector.shape_cast %4 : vector<1x16x16x4xf32> to vector<16x16x4xf32>
    %6 = arith.truncf %5 : vector<16x16x4xf32> to vector<16x16x4xbf16>
    %c1 = arith.constant 1 : index
    %c1_10 = arith.constant 1 : index
    %c0_11 = arith.constant 0 : index
    %7 = vector.load %arg7[%c1, %c1_10, %c0_11] : memref<18x18x4xbf16, #tpu.memory_space<vmem>>, vector<16x16x4xbf16>
    tpu.vector_store %arg7[%c1, %c1_10, %c0_11], %6 {strides = array<i32>} : memref<18x18x4xbf16, #tpu.memory_space<vmem>>, vector<16x16x4xbf16>,
    %c0_12 = arith.constant 0 : index
    %c0_13 = arith.constant 0 : index
    %c0_14 = arith.constant 0 : index
    %8 = vector.load %arg7[%c0_12, %c0_13, %c0_14] : memref<18x18x4xbf16, #tpu.memory_space<vmem>>, vector<18x18x4xbf16>
    %9 = vector.extract_strided_slice %8 {offsets = [0, 0, 0], sizes = [18, 16, 4], strides = [1, 1, 1]} : vector<18x18x4xbf16> to vector<18x16x4xbf16>
    %10 = vector.extract_strided_slice %8 {offsets = [0, 1, 0], sizes = [18, 16, 4], strides = [1, 1, 1]} : vector<18x18x4xbf16> to vector<18x16x4xbf16>
    %11 = vector.extract_strided_slice %8 {offsets = [0, 2, 0], sizes = [18, 16, 4], strides = [1, 1, 1]} : vector<18x18x4xbf16> to vector<18x16x4xbf16>
    %c0_15 = arith.constant 0 : index
    %c0_16 = arith.constant 0 : index
    %c0_17 = arith.constant 0 : index
    %12 = vector.load %arg2[%c0_15, %c0_16, %c0_17] : memref<3x12x4xbf16, #tpu.memory_space<vmem>>, vector<1x4x4xbf16>
    %13 = vector.shape_cast %12 : vector<1x4x4xbf16> to vector<4x4xbf16>
    %14 = vector.extract_strided_slice %9 {offsets = [0, 0, 0], sizes = [16, 16, 4], strides = [1, 1, 1]} : vector<18x16x4xbf16> to vector<16x16x4xbf16>
    "tpu.trace_start"() <{level = 10 : i32, message = "hwc,co->hwo"}> : () -> ()
    %cst_18 = arith.constant dense<0.000000e+00> : vector<16x16x4xf32>
    %15 = tpu.matmul %14, %13, %cst_18 {dimension_numbers = #tpu.dot_dimension_numbers<[2], [0], [0, 1], [1], [0, 0, 0, 1, 1, 1], [], []>} : vector<16x16x4xbf16>, vector<4x4xbf16>, vector<16x16x4xf32> -> vector<16x16x4xf32>
    "tpu.trace_stop"() : () -> ()
    %c0_19 = arith.constant 0 : index
    %c4 = arith.constant 4 : index
    %c0_20 = arith.constant 0 : index
    %16 = vector.load %arg2[%c0_19, %c4, %c0_20] : memref<3x12x4xbf16, #tpu.memory_space<vmem>>, vector<1x4x4xbf16>
    %17 = vector.shape_cast %16 : vector<1x4x4xbf16> to vector<4x4xbf16>
    %18 = vector.extract_strided_slice %10 {offsets = [0, 0, 0], sizes = [16, 16, 4], strides = [1, 1, 1]} : vector<18x16x4xbf16> to vector<16x16x4xbf16>
    "tpu.trace_start"() <{level = 10 : i32, message = "hwc,co->hwo"}> : () -> ()
    %cst_21 = arith.constant dense<0.000000e+00> : vector<16x16x4xf32>
    %19 = tpu.matmul %18, %17, %cst_21 {dimension_numbers = #tpu.dot_dimension_numbers<[2], [0], [0, 1], [1], [0, 0, 0, 1, 1, 1], [], []>} : vector<16x16x4xbf16>, vector<4x4xbf16>, vector<16x16x4xf32> -> vector<16x16x4xf32>
    "tpu.trace_stop"() : () -> ()
    %20 = arith.addf %15, %19 : vector<16x16x4xf32>
    %c0_22 = arith.constant 0 : index
    %c8 = arith.constant 8 : index
    %c0_23 = arith.constant 0 : index
    %21 = vector.load %arg2[%c0_22, %c8, %c0_23] : memref<3x12x4xbf16, #tpu.memory_space<vmem>>, vector<1x4x4xbf16>
    %22 = vector.shape_cast %21 : vector<1x4x4xbf16> to vector<4x4xbf16>
    %23 = vector.extract_strided_slice %11 {offsets = [0, 0, 0], sizes = [16, 16, 4], strides = [1, 1, 1]} : vector<18x16x4xbf16> to vector<16x16x4xbf16>
    "tpu.trace_start"() <{level = 10 : i32, message = "hwc,co->hwo"}> : () -> ()
    %cst_24 = arith.constant dense<0.000000e+00> : vector<16x16x4xf32>
    %24 = tpu.matmul %23, %22, %cst_24 {dimension_numbers = #tpu.dot_dimension_numbers<[2], [0], [0, 1], [1], [0, 0, 0, 1, 1, 1], [], []>} : vector<16x16x4xbf16>, vector<4x4xbf16>, vector<16x16x4xf32> -> vector<16x16x4xf32>
    "tpu.trace_stop"() : () -> ()
    %25 = arith.addf %20, %24 : vector<16x16x4xf32>
    %c1_25 = arith.constant 1 : index
    %c0_26 = arith.constant 0 : index
    %c0_27 = arith.constant 0 : index
    %26 = vector.load %arg2[%c1_25, %c0_26, %c0_27] : memref<3x12x4xbf16, #tpu.memory_space<vmem>>, vector<1x4x4xbf16>
    %27 = vector.shape_cast %26 : vector<1x4x4xbf16> to vector<4x4xbf16>
    %28 = vector.extract_strided_slice %9 {offsets = [1, 0, 0], sizes = [16, 16, 4], strides = [1, 1, 1]} : vector<18x16x4xbf16> to vector<16x16x4xbf16>
    "tpu.trace_start"() <{level = 10 : i32, message = "hwc,co->hwo"}> : () -> ()
    %cst_28 = arith.constant dense<0.000000e+00> : vector<16x16x4xf32>
    %29 = tpu.matmul %28, %27, %cst_28 {dimension_numbers = #tpu.dot_dimension_numbers<[2], [0], [0, 1], [1], [0, 0, 0, 1, 1, 1], [], []>} : vector<16x16x4xbf16>, vector<4x4xbf16>, vector<16x16x4xf32> -> vector<16x16x4xf32>
    "tpu.trace_stop"() : () -> ()
    %30 = arith.addf %25, %29 : vector<16x16x4xf32>
    %c1_29 = arith.constant 1 : index
    %c4_30 = arith.constant 4 : index
    %c0_31 = arith.constant 0 : index
    %31 = vector.load %arg2[%c1_29, %c4_30, %c0_31] : memref<3x12x4xbf16, #tpu.memory_space<vmem>>, vector<1x4x4xbf16>
    %32 = vector.shape_cast %31 : vector<1x4x4xbf16> to vector<4x4xbf16>
    %33 = vector.extract_strided_slice %10 {offsets = [1, 0, 0], sizes = [16, 16, 4], strides = [1, 1, 1]} : vector<18x16x4xbf16> to vector<16x16x4xbf16>
    "tpu.trace_start"() <{level = 10 : i32, message = "hwc,co->hwo"}> : () -> ()
    %cst_32 = arith.constant dense<0.000000e+00> : vector<16x16x4xf32>
    %34 = tpu.matmul %33, %32, %cst_32 {dimension_numbers = #tpu.dot_dimension_numbers<[2], [0], [0, 1], [1], [0, 0, 0, 1, 1, 1], [], []>} : vector<16x16x4xbf16>, vector<4x4xbf16>, vector<16x16x4xf32> -> vector<16x16x4xf32>
    "tpu.trace_stop"() : () -> ()
    %35 = arith.addf %30, %34 : vector<16x16x4xf32>
    %c1_33 = arith.constant 1 : index
    %c8_34 = arith.constant 8 : index
    %c0_35 = arith.constant 0 : index
    %36 = vector.load %arg2[%c1_33, %c8_34, %c0_35] : memref<3x12x4xbf16, #tpu.memory_space<vmem>>, vector<1x4x4xbf16>
    %37 = vector.shape_cast %36 : vector<1x4x4xbf16> to vector<4x4xbf16>
    %38 = vector.extract_strided_slice %11 {offsets = [1, 0, 0], sizes = [16, 16, 4], strides = [1, 1, 1]} : vector<18x16x4xbf16> to vector<16x16x4xbf16>
    "tpu.trace_start"() <{level = 10 : i32, message = "hwc,co->hwo"}> : () -> ()
    %cst_36 = arith.constant dense<0.000000e+00> : vector<16x16x4xf32>
    %39 = tpu.matmul %38, %37, %cst_36 {dimension_numbers = #tpu.dot_dimension_numbers<[2], [0], [0, 1], [1], [0, 0, 0, 1, 1, 1], [], []>} : vector<16x16x4xbf16>, vector<4x4xbf16>, vector<16x16x4xf32> -> vector<16x16x4xf32>
    "tpu.trace_stop"() : () -> ()
    %40 = arith.addf %35, %39 : vector<16x16x4xf32>
    %c2 = arith.constant 2 : index
    %c0_37 = arith.constant 0 : index
    %c0_38 = arith.constant 0 : index
    %41 = vector.load %arg2[%c2, %c0_37, %c0_38] : memref<3x12x4xbf16, #tpu.memory_space<vmem>>, vector<1x4x4xbf16>
    %42 = vector.shape_cast %41 : vector<1x4x4xbf16> to vector<4x4xbf16>
    %43 = vector.extract_strided_slice %9 {offsets = [2, 0, 0], sizes = [16, 16, 4], strides = [1, 1, 1]} : vector<18x16x4xbf16> to vector<16x16x4xbf16>
    "tpu.trace_start"() <{level = 10 : i32, message = "hwc,co->hwo"}> : () -> ()
    %cst_39 = arith.constant dense<0.000000e+00> : vector<16x16x4xf32>
    %44 = tpu.matmul %43, %42, %cst_39 {dimension_numbers = #tpu.dot_dimension_numbers<[2], [0], [0, 1], [1], [0, 0, 0, 1, 1, 1], [], []>} : vector<16x16x4xbf16>, vector<4x4xbf16>, vector<16x16x4xf32> -> vector<16x16x4xf32>
    "tpu.trace_stop"() : () -> ()
    %45 = arith.addf %40, %44 : vector<16x16x4xf32>
    %c2_40 = arith.constant 2 : index
    %c4_41 = arith.constant 4 : index
    %c0_42 = arith.constant 0 : index
    %46 = vector.load %arg2[%c2_40, %c4_41, %c0_42] : memref<3x12x4xbf16, #tpu.memory_space<vmem>>, vector<1x4x4xbf16>
    %47 = vector.shape_cast %46 : vector<1x4x4xbf16> to vector<4x4xbf16>
    %48 = vector.extract_strided_slice %10 {offsets = [2, 0, 0], sizes = [16, 16, 4], strides = [1, 1, 1]} : vector<18x16x4xbf16> to vector<16x16x4xbf16>
    "tpu.trace_start"() <{level = 10 : i32, message = "hwc,co->hwo"}> : () -> ()
    %cst_43 = arith.constant dense<0.000000e+00> : vector<16x16x4xf32>
    %49 = tpu.matmul %48, %47, %cst_43 {dimension_numbers = #tpu.dot_dimension_numbers<[2], [0], [0, 1], [1], [0, 0, 0, 1, 1, 1], [], []>} : vector<16x16x4xbf16>, vector<4x4xbf16>, vector<16x16x4xf32> -> vector<16x16x4xf32>
    "tpu.trace_stop"() : () -> ()
    %50 = arith.addf %45, %49 : vector<16x16x4xf32>
    %c2_44 = arith.constant 2 : index
    %c8_45 = arith.constant 8 : index
    %c0_46 = arith.constant 0 : index
    %51 = vector.load %arg2[%c2_44, %c8_45, %c0_46] : memref<3x12x4xbf16, #tpu.memory_space<vmem>>, vector<1x4x4xbf16>
    %52 = vector.shape_cast %51 : vector<1x4x4xbf16> to vector<4x4xbf16>
    %53 = vector.extract_strided_slice %11 {offsets = [2, 0, 0], sizes = [16, 16, 4], strides = [1, 1, 1]} : vector<18x16x4xbf16> to vector<16x16x4xbf16>
    "tpu.trace_start"() <{level = 10 : i32, message = "hwc,co->hwo"}> : () -> ()
    %cst_47 = arith.constant dense<0.000000e+00> : vector<16x16x4xf32>
    %54 = tpu.matmul %53, %52, %cst_47 {dimension_numbers = #tpu.dot_dimension_numbers<[2], [0], [0, 1], [1], [0, 0, 0, 1, 1, 1], [], []>} : vector<16x16x4xbf16>, vector<4x4xbf16>, vector<16x16x4xf32> -> vector<16x16x4xf32>
    "tpu.trace_stop"() : () -> ()
    %55 = arith.addf %50, %54 : vector<16x16x4xf32>
    %c0_48 = arith.constant 0 : index
    %c0_49 = arith.constant 0 : index
    %c0_50 = arith.constant 0 : index
    %56 = vector.load %arg3[%c0_48, %c0_49, %c0_50] : memref<1x1x4xf32, #tpu.memory_space<vmem>>, vector<1x1x4xf32>
    %57 = vector.broadcast %56 : vector<1x1x4xf32> to vector<16x16x4xf32>
    %58 = arith.addf %55, %57 : vector<16x16x4xf32>
    %cst_51 = arith.constant 0.000000e+00 : f32
    %59 = vector.broadcast %cst_51 : f32 to vector<16x16x4xf32>
    %60 = arith.maximumf %58, %59 : vector<16x16x4xf32>
    %61 = arith.truncf %60 : vector<16x16x4xf32> to vector<16x16x4xbf16>
    %c1_52 = arith.constant 1 : index
    %c1_53 = arith.constant 1 : index
    %c0_54 = arith.constant 0 : index
    %62 = vector.load %arg8[%c1_52, %c1_53, %c0_54] : memref<18x18x4xbf16, #tpu.memory_space<vmem>>, vector<16x16x4xbf16>
    tpu.vector_store %arg8[%c1_52, %c1_53, %c0_54], %61 {strides = array<i32>} : memref<18x18x4xbf16, #tpu.memory_space<vmem>>, vector<16x16x4xbf16>,
    %c0_55 = arith.constant 0 : index
    %c0_56 = arith.constant 0 : index
    %c0_57 = arith.constant 0 : index
    %63 = vector.load %arg8[%c0_55, %c0_56, %c0_57] : memref<18x18x4xbf16, #tpu.memory_space<vmem>>, vector<18x18x4xbf16>
    %64 = vector.extract_strided_slice %63 {offsets = [0, 0, 0], sizes = [18, 16, 4], strides = [1, 1, 1]} : vector<18x18x4xbf16> to vector<18x16x4xbf16>
    %65 = vector.extract_strided_slice %63 {offsets = [0, 1, 0], sizes = [18, 16, 4], strides = [1, 1, 1]} : vector<18x18x4xbf16> to vector<18x16x4xbf16>
    %66 = vector.extract_strided_slice %63 {offsets = [0, 2, 0], sizes = [18, 16, 4], strides = [1, 1, 1]} : vector<18x18x4xbf16> to vector<18x16x4xbf16>
    %c0_58 = arith.constant 0 : index
    %c0_59 = arith.constant 0 : index
    %c0_60 = arith.constant 0 : index
    %67 = vector.load %arg4[%c0_58, %c0_59, %c0_60] : memref<3x12x4xbf16, #tpu.memory_space<vmem>>, vector<1x4x4xbf16>
    %68 = vector.shape_cast %67 : vector<1x4x4xbf16> to vector<4x4xbf16>
    %69 = vector.extract_strided_slice %64 {offsets = [0, 0, 0], sizes = [16, 16, 4], strides = [1, 1, 1]} : vector<18x16x4xbf16> to vector<16x16x4xbf16>
    "tpu.trace_start"() <{level = 10 : i32, message = "hwc,co->hwo"}> : () -> ()
    %cst_61 = arith.constant dense<0.000000e+00> : vector<16x16x4xf32>
    %70 = tpu.matmul %69, %68, %cst_61 {dimension_numbers = #tpu.dot_dimension_numbers<[2], [0], [0, 1], [1], [0, 0, 0, 1, 1, 1], [], []>} : vector<16x16x4xbf16>, vector<4x4xbf16>, vector<16x16x4xf32> -> vector<16x16x4xf32>
    "tpu.trace_stop"() : () -> ()
    %c0_62 = arith.constant 0 : index
    %c4_63 = arith.constant 4 : index
    %c0_64 = arith.constant 0 : index
    %71 = vector.load %arg4[%c0_62, %c4_63, %c0_64] : memref<3x12x4xbf16, #tpu.memory_space<vmem>>, vector<1x4x4xbf16>
    %72 = vector.shape_cast %71 : vector<1x4x4xbf16> to vector<4x4xbf16>
    %73 = vector.extract_strided_slice %65 {offsets = [0, 0, 0], sizes = [16, 16, 4], strides = [1, 1, 1]} : vector<18x16x4xbf16> to vector<16x16x4xbf16>
    "tpu.trace_start"() <{level = 10 : i32, message = "hwc,co->hwo"}> : () -> ()
    %cst_65 = arith.constant dense<0.000000e+00> : vector<16x16x4xf32>
    %74 = tpu.matmul %73, %72, %cst_65 {dimension_numbers = #tpu.dot_dimension_numbers<[2], [0], [0, 1], [1], [0, 0, 0, 1, 1, 1], [], []>} : vector<16x16x4xbf16>, vector<4x4xbf16>, vector<16x16x4xf32> -> vector<16x16x4xf32>
    "tpu.trace_stop"() : () -> ()
    %75 = arith.addf %70, %74 : vector<16x16x4xf32>
    %c0_66 = arith.constant 0 : index
    %c8_67 = arith.constant 8 : index
    %c0_68 = arith.constant 0 : index
    %76 = vector.load %arg4[%c0_66, %c8_67, %c0_68] : memref<3x12x4xbf16, #tpu.memory_space<vmem>>, vector<1x4x4xbf16>
    %77 = vector.shape_cast %76 : vector<1x4x4xbf16> to vector<4x4xbf16>
    %78 = vector.extract_strided_slice %66 {offsets = [0, 0, 0], sizes = [16, 16, 4], strides = [1, 1, 1]} : vector<18x16x4xbf16> to vector<16x16x4xbf16>
    "tpu.trace_start"() <{level = 10 : i32, message = "hwc,co->hwo"}> : () -> ()
    %cst_69 = arith.constant dense<0.000000e+00> : vector<16x16x4xf32>
    %79 = tpu.matmul %78, %77, %cst_69 {dimension_numbers = #tpu.dot_dimension_numbers<[2], [0], [0, 1], [1], [0, 0, 0, 1, 1, 1], [], []>} : vector<16x16x4xbf16>, vector<4x4xbf16>, vector<16x16x4xf32> -> vector<16x16x4xf32>
    "tpu.trace_stop"() : () -> ()
    %80 = arith.addf %75, %79 : vector<16x16x4xf32>
    %c1_70 = arith.constant 1 : index
    %c0_71 = arith.constant 0 : index
    %c0_72 = arith.constant 0 : index
    %81 = vector.load %arg4[%c1_70, %c0_71, %c0_72] : memref<3x12x4xbf16, #tpu.memory_space<vmem>>, vector<1x4x4xbf16>
    %82 = vector.shape_cast %81 : vector<1x4x4xbf16> to vector<4x4xbf16>
    %83 = vector.extract_strided_slice %64 {offsets = [1, 0, 0], sizes = [16, 16, 4], strides = [1, 1, 1]} : vector<18x16x4xbf16> to vector<16x16x4xbf16>
    "tpu.trace_start"() <{level = 10 : i32, message = "hwc,co->hwo"}> : () -> ()
    %cst_73 = arith.constant dense<0.000000e+00> : vector<16x16x4xf32>
    %84 = tpu.matmul %83, %82, %cst_73 {dimension_numbers = #tpu.dot_dimension_numbers<[2], [0], [0, 1], [1], [0, 0, 0, 1, 1, 1], [], []>} : vector<16x16x4xbf16>, vector<4x4xbf16>, vector<16x16x4xf32> -> vector<16x16x4xf32>
    "tpu.trace_stop"() : () -> ()
    %85 = arith.addf %80, %84 : vector<16x16x4xf32>
    %c1_74 = arith.constant 1 : index
    %c4_75 = arith.constant 4 : index
    %c0_76 = arith.constant 0 : index
    %86 = vector.load %arg4[%c1_74, %c4_75, %c0_76] : memref<3x12x4xbf16, #tpu.memory_space<vmem>>, vector<1x4x4xbf16>
    %87 = vector.shape_cast %86 : vector<1x4x4xbf16> to vector<4x4xbf16>
    %88 = vector.extract_strided_slice %65 {offsets = [1, 0, 0], sizes = [16, 16, 4], strides = [1, 1, 1]} : vector<18x16x4xbf16> to vector<16x16x4xbf16>
    "tpu.trace_start"() <{level = 10 : i32, message = "hwc,co->hwo"}> : () -> ()
    %cst_77 = arith.constant dense<0.000000e+00> : vector<16x16x4xf32>
    %89 = tpu.matmul %88, %87, %cst_77 {dimension_numbers = #tpu.dot_dimension_numbers<[2], [0], [0, 1], [1], [0, 0, 0, 1, 1, 1], [], []>} : vector<16x16x4xbf16>, vector<4x4xbf16>, vector<16x16x4xf32> -> vector<16x16x4xf32>
    "tpu.trace_stop"() : () -> ()
    %90 = arith.addf %85, %89 : vector<16x16x4xf32>
    %c1_78 = arith.constant 1 : index
    %c8_79 = arith.constant 8 : index
    %c0_80 = arith.constant 0 : index
    %91 = vector.load %arg4[%c1_78, %c8_79, %c0_80] : memref<3x12x4xbf16, #tpu.memory_space<vmem>>, vector<1x4x4xbf16>
    %92 = vector.shape_cast %91 : vector<1x4x4xbf16> to vector<4x4xbf16>
    %93 = vector.extract_strided_slice %66 {offsets = [1, 0, 0], sizes = [16, 16, 4], strides = [1, 1, 1]} : vector<18x16x4xbf16> to vector<16x16x4xbf16>
    "tpu.trace_start"() <{level = 10 : i32, message = "hwc,co->hwo"}> : () -> ()
    %cst_81 = arith.constant dense<0.000000e+00> : vector<16x16x4xf32>
    %94 = tpu.matmul %93, %92, %cst_81 {dimension_numbers = #tpu.dot_dimension_numbers<[2], [0], [0, 1], [1], [0, 0, 0, 1, 1, 1], [], []>} : vector<16x16x4xbf16>, vector<4x4xbf16>, vector<16x16x4xf32> -> vector<16x16x4xf32>
    "tpu.trace_stop"() : () -> ()
    %95 = arith.addf %90, %94 : vector<16x16x4xf32>
    %c2_82 = arith.constant 2 : index
    %c0_83 = arith.constant 0 : index
    %c0_84 = arith.constant 0 : index
    %96 = vector.load %arg4[%c2_82, %c0_83, %c0_84] : memref<3x12x4xbf16, #tpu.memory_space<vmem>>, vector<1x4x4xbf16>
    %97 = vector.shape_cast %96 : vector<1x4x4xbf16> to vector<4x4xbf16>
    %98 = vector.extract_strided_slice %64 {offsets = [2, 0, 0], sizes = [16, 16, 4], strides = [1, 1, 1]} : vector<18x16x4xbf16> to vector<16x16x4xbf16>
    "tpu.trace_start"() <{level = 10 : i32, message = "hwc,co->hwo"}> : () -> ()
    %cst_85 = arith.constant dense<0.000000e+00> : vector<16x16x4xf32>
    %99 = tpu.matmul %98, %97, %cst_85 {dimension_numbers = #tpu.dot_dimension_numbers<[2], [0], [0, 1], [1], [0, 0, 0, 1, 1, 1], [], []>} : vector<16x16x4xbf16>, vector<4x4xbf16>, vector<16x16x4xf32> -> vector<16x16x4xf32>
    "tpu.trace_stop"() : () -> ()
    %100 = arith.addf %95, %99 : vector<16x16x4xf32>
    %c2_86 = arith.constant 2 : index
    %c4_87 = arith.constant 4 : index
    %c0_88 = arith.constant 0 : index
    %101 = vector.load %arg4[%c2_86, %c4_87, %c0_88] : memref<3x12x4xbf16, #tpu.memory_space<vmem>>, vector<1x4x4xbf16>
    %102 = vector.shape_cast %101 : vector<1x4x4xbf16> to vector<4x4xbf16>
    %103 = vector.extract_strided_slice %65 {offsets = [2, 0, 0], sizes = [16, 16, 4], strides = [1, 1, 1]} : vector<18x16x4xbf16> to vector<16x16x4xbf16>
    "tpu.trace_start"() <{level = 10 : i32, message = "hwc,co->hwo"}> : () -> ()
    %cst_89 = arith.constant dense<0.000000e+00> : vector<16x16x4xf32>
    %104 = tpu.matmul %103, %102, %cst_89 {dimension_numbers = #tpu.dot_dimension_numbers<[2], [0], [0, 1], [1], [0, 0, 0, 1, 1, 1], [], []>} : vector<16x16x4xbf16>, vector<4x4xbf16>, vector<16x16x4xf32> -> vector<16x16x4xf32>
    "tpu.trace_stop"() : () -> ()
    %105 = arith.addf %100, %104 : vector<16x16x4xf32>
    %c2_90 = arith.constant 2 : index
    %c8_91 = arith.constant 8 : index
    %c0_92 = arith.constant 0 : index
    %106 = vector.load %arg4[%c2_90, %c8_91, %c0_92] : memref<3x12x4xbf16, #tpu.memory_space<vmem>>, vector<1x4x4xbf16>
    %107 = vector.shape_cast %106 : vector<1x4x4xbf16> to vector<4x4xbf16>
    %108 = vector.extract_strided_slice %66 {offsets = [2, 0, 0], sizes = [16, 16, 4], strides = [1, 1, 1]} : vector<18x16x4xbf16> to vector<16x16x4xbf16>
    "tpu.trace_start"() <{level = 10 : i32, message = "hwc,co->hwo"}> : () -> ()
    %cst_93 = arith.constant dense<0.000000e+00> : vector<16x16x4xf32>
    %109 = tpu.matmul %108, %107, %cst_93 {dimension_numbers = #tpu.dot_dimension_numbers<[2], [0], [0, 1], [1], [0, 0, 0, 1, 1, 1], [], []>} : vector<16x16x4xbf16>, vector<4x4xbf16>, vector<16x16x4xf32> -> vector<16x16x4xf32>
    "tpu.trace_stop"() : () -> ()
    %110 = arith.addf %105, %109 : vector<16x16x4xf32>
    %c0_94 = arith.constant 0 : index
    %c0_95 = arith.constant 0 : index
    %c0_96 = arith.constant 0 : index
    %111 = vector.load %arg5[%c0_94, %c0_95, %c0_96] : memref<1x1x4xf32, #tpu.memory_space<vmem>>, vector<1x1x4xf32>
    %112 = vector.broadcast %111 : vector<1x1x4xf32> to vector<16x16x4xf32>
    %113 = arith.addf %110, %112 : vector<16x16x4xf32>
    %114 = arith.addf %113, %5 : vector<16x16x4xf32>
    %cst_97 = arith.constant 0.000000e+00 : f32
    %115 = vector.broadcast %cst_97 : f32 to vector<16x16x4xf32>
    %116 = arith.maximumf %114, %115 : vector<16x16x4xf32>
    %c0_98 = arith.constant 0 : index
    %c0_99 = arith.constant 0 : index
    %c0_100 = arith.constant 0 : index
    %c0_101 = arith.constant 0 : index
    %117 = vector.load %arg6[%c0_98, %c0_99, %c0_100, %c0_101] : memref<1x16x16x4xf32, #tpu.memory_space<vmem>>, vector<1x16x16x4xf32>
    %118 = vector.shape_cast %117 : vector<1x16x16x4xf32> to vector<16x16x4xf32>
    %119 = vector.shape_cast %116 : vector<16x16x4xf32> to vector<1x16x16x4xf32>
    tpu.vector_store %arg6[%c0_98, %c0_99, %c0_100, %c0_101], %119 {strides = array<i32>} : memref<1x16x16x4xf32, #tpu.memory_space<vmem>>, vector<1x16x16x4xf32>,
    return
  }
  func.func @transform_0(%arg0: i32) -> (i32, i32, i32, i32) {
    %c0_i32 = arith.constant 0 : i32
    %c0_i32_0 = arith.constant 0 : i32
    %c0_i32_1 = arith.constant 0 : i32
    %c0_i32_2 = arith.constant 0 : i32
    return %arg0, %c0_i32, %c0_i32_0, %c0_i32_1 : i32, i32, i32, i32
  }
  func.func @transform_1(%arg0: i32) -> (i32, i32, i32) {
    %c0_i32 = arith.constant 0 : i32
    %c0_i32_0 = arith.constant 0 : i32
    %c0_i32_1 = arith.constant 0 : i32
    %c0_i32_2 = arith.constant 0 : i32
    return %c0_i32, %c0_i32_0, %c0_i32_1 : i32, i32, i32
  }
  func.func @transform_2(%arg0: i32) -> (i32, i32, i32) {
    %c0_i32 = arith.constant 0 : i32
    %c0_i32_0 = arith.constant 0 : i32
    %c0_i32_1 = arith.constant 0 : i32
    %c0_i32_2 = arith.constant 0 : i32
    return %c0_i32, %c0_i32_0, %c0_i32_1 : i32, i32, i32
  }
  func.func @transform_3(%arg0: i32) -> (i32, i32, i32) {
    %c0_i32 = arith.constant 0 : i32
    %c0_i32_0 = arith.constant 0 : i32
    %c0_i32_1 = arith.constant 0 : i32
    %c0_i32_2 = arith.constant 0 : i32
    return %c0_i32, %c0_i32_0, %c0_i32_1 : i32, i32, i32
  }
  func.func @transform_4(%arg0: i32) -> (i32, i32, i32) {
    %c0_i32 = arith.constant 0 : i32
    %c0_i32_0 = arith.constant 0 : i32
    %c0_i32_1 = arith.constant 0 : i32
    %c0_i32_2 = arith.constant 0 : i32
    return %c0_i32, %c0_i32_0, %c0_i32_1 : i32, i32, i32
  }
  func.func @transform_5(%arg0: i32) -> (i32, i32, i32, i32) {
    %c0_i32 = arith.constant 0 : i32
    %c0_i32_0 = arith.constant 0 : i32
    %c0_i32_1 = arith.constant 0 : i32
    %c0_i32_2 = arith.constant 0 : i32
    return %arg0, %c0_i32, %c0_i32_0, %c0_i32_1 : i32, i32, i32, i32
  }
}

</mosaic_0001>

<llo_original>
// kernel: tpu_custom_call.1
$region0: #{tpu_custom_call.1}
  #allocation0 [shape = 'u32[]', space=smem, size = 0x4, offset = 0x4, fixed_abs, tag = 'smem constant byte address 0x4 - core index']
  #allocation1 [shape = 'u32[72,128]{1,0:T(1,128)}', space=vmem, size = 0x9000, scoped, tag = 'internal scratch']
  #allocation2 [shape = 'bf16[18,18,4]{2,1,0:T(8,128)(2,1)}', space=vmem, size = 0x1b000, scoped, tag = 'scratch operand']
  #allocation3 [shape = 'bf16[18,18,4]{2,1,0:T(8,128)(2,1)}', space=vmem, size = 0x1b000, scoped, tag = 'scratch operand']
  %s0 = inlined_call_operand.vmem [shape: f32[2,16,16,4], index: 0, kind: input, shape index: {}]
  %s1 = inlined_call_operand.vmem [shape: bf16[3,12,4], index: 1, kind: input, shape index: {}]
  %s2 = inlined_call_operand.vmem [shape: f32[1,1,4], index: 2, kind: input, shape index: {}]
  %s3 = inlined_call_operand.vmem [shape: bf16[3,12,4], index: 3, kind: input, shape index: {}]
  %s4 = inlined_call_operand.vmem [shape: f32[1,1,4], index: 4, kind: input, shape index: {}]
  %s5 = inlined_call_operand.vmem [shape: f32[2,16,16,4], index: 5, kind: output, shape index: {}]
  %s6 = sld [smem:[#allocation0]]
  $region53: #{tpu_custom_call.1} parent=0
    _
  %s8 = ssub.s32 1, %s6
  %s9 = scalar_select 0, %s8, %s6
  loop: start=0, step=1, limit=4
  $region2: #{tpu_custom_call.1} parent=0 // loop_pre_header
    _
  $region3: #{tpu_custom_call.1} parent=0 // loop_header
    %s11 = sphi 0, %s15
    %p12 = scmp.ge.s32.totalorder %s11, 4
    %s21 = sphi 0, %s23
    %s24 = sphi 0, %s21
    %s25 = sphi 0, %s24
    %s41 = sphi 0, %s25
    %s45 = sphi 0, %s45
    %s47 = sphi 0, %s45
    %s48 = sphi 0, %s47
    %s62 = sphi 0, %s48
    %s66 = sphi 0, %s66
    %s68 = sphi 0, %s66
    %s69 = sphi 0, %s68
    %s83 = sphi 0, %s69
    %s87 = sphi 0, %s87
    %s89 = sphi 0, %s87
    %s90 = sphi 0, %s89
    %s104 = sphi 0, %s90
    %s108 = sphi 0, %s108
    %s110 = sphi 0, %s108
    %s111 = sphi 0, %s110
    %s125 = sphi 0, %s111
    %s131 = sphi 0, %s133
    %s134 = sphi 0, %s131
    %s135 = sphi 0, %s134
    %s151 = sphi 0, %s135
  $region4: #{tpu_custom_call.1} parent=0 // loop_header_branch
    %14 = sbr.rel (%p12) target = $region8
  $region5: #{tpu_custom_call.1} parent=0 // loop_body
    %s16 = ssub.s32 %s11, 1
    %s17 = ssub.s32 %s11, 2
    %s18 = sadd.s32 %s11, 1
    %s19 = ssub.s32 %s11, %s18
    %p20 = scmp.eq.s32.totalorder %s19, 0
    %s22 = sadd.s32 %s21, 1
    %s23 = scalar_select %p20, %s21, %s22
    %p26 = pneg %p20
    %p27 = scmp.eq.s32.totalorder %s11, 1
    %p28 = por %p26, %p27
    %p29 = scmp.ne.s32.totalorder %s21, %s24
    %p30 = scmp.eq.s32.totalorder %s11, 0
    %p31 = por %p29, %p30
    %p32 = scmp.ne.s32.totalorder %s21, %s24
    %p33 = scmp.eq.s32.totalorder %s16, 1
    %p34 = por %p32, %p33
    %p35 = scmp.ne.s32.totalorder %s24, %s25
    %p36 = scmp.eq.s32.totalorder %s16, 0
    %p37 = por %p35, %p36
    %p38 = scmp.ne.s32.totalorder %s24, %s25
    %p39 = scmp.eq.s32.totalorder %s17, 1
    %p40 = por %p38, %p39
    %p42 = scmp.ne.s32.totalorder %s25, %s41
    %p43 = scmp.eq.s32.totalorder %s17, 0
    %p44 = por %p42, %p43
    %s46 = sadd.s32 %s45, 1
    %p49 = scmp.eq.s32.totalorder %s11, 1
    %p50 = scmp.ne.s32.totalorder %s45, %s47
    %p51 = scmp.eq.s32.totalorder %s11, 0
    %p52 = por %p50, %p51
    %p53 = scmp.ne.s32.totalorder %s45, %s47
    %p54 = scmp.eq.s32.totalorder %s16, 1
    %p55 = por %p53, %p54
    %p56 = scmp.ne.s32.totalorder %s47, %s48
    %p57 = scmp.eq.s32.totalorder %s16, 0
    %p58 = por %p56, %p57
    %p59 = scmp.ne.s32.totalorder %s47, %s48
    %p60 = scmp.eq.s32.totalorder %s17, 1
    %p61 = por %p59, %p60
    %p63 = scmp.ne.s32.totalorder %s48, %s62
    %p64 = scmp.eq.s32.totalorder %s17, 0
    %p65 = por %p63, %p64
    %s67 = sadd.s32 %s66, 1
    %p70 = scmp.eq.s32.totalorder %s11, 1
    %p71 = scmp.ne.s32.totalorder %s66, %s68
    %p72 = scmp.eq.s32.totalorder %s11, 0
    %p73 = por %p71, %p72
    %p74 = scmp.ne.s32.totalorder %s66, %s68
    %p75 = scmp.eq.s32.totalorder %s16, 1
    %p76 = por %p74, %p75
    %p77 = scmp.ne.s32.totalorder %s68, %s69
    %p78 = scmp.eq.s32.totalorder %s16, 0
    %p79 = por %p77, %p78
    %p80 = scmp.ne.s32.totalorder %s68, %s69
    %p81 = scmp.eq.s32.totalorder %s17, 1
    %p82 = por %p80, %p81
    %p84 = scmp.ne.s32.totalorder %s69, %s83
    %p85 = scmp.eq.s32.totalorder %s17, 0
    %p86 = por %p84, %p85
    %s88 = sadd.s32 %s87, 1
    %p91 = scmp.eq.s32.totalorder %s11, 1
    %p92 = scmp.ne.s32.totalorder %s87, %s89
    %p93 = scmp.eq.s32.totalorder %s11, 0
    %p94 = por %p92, %p93
    %p95 = scmp.ne.s32.totalorder %s87, %s89
    %p96 = scmp.eq.s32.totalorder %s16, 1
    %p97 = por %p95, %p96
    %p98 = scmp.ne.s32.totalorder %s89, %s90
    %p99 = scmp.eq.s32.totalorder %s16, 0
    %p100 = por %p98, %p99
    %p101 = scmp.ne.s32.totalorder %s89, %s90
    %p102 = scmp.eq.s32.totalorder %s17, 1
    %p103 = por %p101, %p102
    %p105 = scmp.ne.s32.totalorder %s90, %s104
    %p106 = scmp.eq.s32.totalorder %s17, 0
    %p107 = por %p105, %p106
    %s109 = sadd.s32 %s108, 1
    %p112 = scmp.eq.s32.totalorder %s11, 1
    %p113 = scmp.ne.s32.totalorder %s108, %s110
    %p114 = scmp.eq.s32.totalorder %s11, 0
    %p115 = por %p113, %p114
    %p116 = scmp.ne.s32.totalorder %s108, %s110
    %p117 = scmp.eq.s32.totalorder %s16, 1
    %p118 = por %p116, %p117
    %p119 = scmp.ne.s32.totalorder %s110, %s111
    %p120 = scmp.eq.s32.totalorder %s16, 0
    %p121 = por %p119, %p120
    %p122 = scmp.ne.s32.totalorder %s110, %s111
    %p123 = scmp.eq.s32.totalorder %s17, 1
    %p124 = por %p122, %p123
    %p126 = scmp.ne.s32.totalorder %s111, %s125
    %p127 = scmp.eq.s32.totalorder %s17, 0
    %p128 = por %p126, %p127
    %s129 = ssub.s32 %s11, %s18
    %p130 = scmp.eq.s32.totalorder %s129, 0
    %s132 = sadd.s32 %s131, 1
    %s133 = scalar_select %p130, %s131, %s132
    %p136 = pneg %p130
    %p137 = scmp.eq.s32.totalorder %s11, 1
    %p138 = por %p136, %p137
    %p139 = scmp.ne.s32.totalorder %s131, %s134
    %p140 = scmp.eq.s32.totalorder %s11, 0
    %p141 = por %p139, %p140
    %p142 = scmp.ne.s32.totalorder %s131, %s134
    %p143 = scmp.eq.s32.totalorder %s16, 1
    %p144 = por %p142, %p143
    %p145 = scmp.ne.s32.totalorder %s134, %s135
    %p146 = scmp.eq.s32.totalorder %s16, 0
    %p147 = por %p145, %p146
    %p148 = scmp.ne.s32.totalorder %s134, %s135
    %p149 = scmp.eq.s32.totalorder %s17, 1
    %p150 = por %p148, %p149
    %p152 = scmp.ne.s32.totalorder %s135, %s151
    %p153 = scmp.eq.s32.totalorder %s17, 0
    %p154 = por %p152, %p153
    %p155 = scmp.le.s32.totalorder 1, %s11
    %p156 = scmp.lt.s32.totalorder %s11, 3
    %p157 = pnand %p155, %p156
    %p158 = pneg %p157
    // Predicated region
    $region9: #{tpu_custom_call.1} parent=5 // pred_check
      _
    $region10: #{tpu_custom_call.1} parent=5 // pred_check_branch
      %160 = sbr.rel (%p157) target = $region12
    $region11: #{tpu_custom_call.1} parent=5 // pred_region
      %s161 = ssub.s32 %s11, 1
      // Predicated region
      $region13: #{tpu_custom_call.1} parent=11 // pred_check
        %p162 = pneg %p58
      $region14: #{tpu_custom_call.1} parent=11 // pred_check_branch
        %164 = sbr.rel (%p162) target = $region16
      $region15: #{tpu_custom_call.1} parent=11 // pred_region
        _
      $region16: #{tpu_custom_call.1} parent=11 // pred_fallthru
        _
      // Predicated region
      $region17: #{tpu_custom_call.1} parent=11 // pred_check
        %p165 = pneg %p79
      $region18: #{tpu_custom_call.1} parent=11 // pred_check_branch
        %167 = sbr.rel (%p165) target = $region20
      $region19: #{tpu_custom_call.1} parent=11 // pred_region
        _
      $region20: #{tpu_custom_call.1} parent=11 // pred_fallthru
        _
      // Predicated region
      $region21: #{tpu_custom_call.1} parent=11 // pred_check
        %p168 = pneg %p100
      $region22: #{tpu_custom_call.1} parent=11 // pred_check_branch
        %170 = sbr.rel (%p168) target = $region24
      $region23: #{tpu_custom_call.1} parent=11 // pred_region
        _
      $region24: #{tpu_custom_call.1} parent=11 // pred_fallthru
        _
      // Predicated region
      $region25: #{tpu_custom_call.1} parent=11 // pred_check
        %p171 = pneg %p121
      $region26: #{tpu_custom_call.1} parent=11 // pred_check_branch
        %173 = sbr.rel (%p171) target = $region28
      $region27: #{tpu_custom_call.1} parent=11 // pred_region
        _
      $region28: #{tpu_custom_call.1} parent=11 // pred_fallthru
        _
    $region12: #{tpu_custom_call.1} parent=5 // pred_fallthru
      _
    %p174 = scmp.lt.s32.totalorder %s11, 2
    // Predicated region
    $region29: #{tpu_custom_call.1} parent=5 // pred_check
      %p175 = pneg %p174
    $region30: #{tpu_custom_call.1} parent=5 // pred_check_branch
      %177 = sbr.rel (%p175) target = $region32
    $region31: #{tpu_custom_call.1} parent=5 // pred_region
      // Predicated region
      $region33: #{tpu_custom_call.1} parent=31 // pred_check
        %p178 = pneg %p31
      $region34: #{tpu_custom_call.1} parent=31 // pred_check_branch
        %180 = sbr.rel (%p178) target = $region36
      $region35: #{tpu_custom_call.1} parent=31 // pred_region
        %p181 = scmp.lt.s32.totalorder %s11, 1
        %s182 = scalar_select %p181, %s11, 1
        %s183 = smul.addr %s182, 32
        %s184 = smul.addr %s183, 8
        %s185 = scalar_lea.vmem %s0, %s184
      $region36: #{tpu_custom_call.1} parent=31 // pred_fallthru
        _
    $region32: #{tpu_custom_call.1} parent=5 // pred_fallthru
      _
    %p186 = scmp.le.s32.totalorder 1, %s11
    %p187 = scmp.lt.s32.totalorder %s11, 3
    %p188 = pnand %p186, %p187
    %p189 = pneg %p188
    // Predicated region
    $region37: #{tpu_custom_call.1} parent=5 // pred_check
      _
    $region38: #{tpu_custom_call.1} parent=5 // pred_check_branch
      %191 = sbr.rel (%p188) target = $region40
    $region39: #{tpu_custom_call.1} parent=5 // pred_region
      %s192 = ssub.s32 %s11, 1
      %p193 = scmp.lt.s32.totalorder %s16, 1
      %s194 = scalar_select %p193, %s16, 1
      %s195 = smul.addr %s194, 32
      %s196 = smul.addr %s195, 8
      %s197 = scalar_lea.vmem %s0, %s196
      %p198 = pneg %p37
      %p199 = pneg %p34
      %p200 = pneg %p58
      %p201 = pneg %p55
      %p202 = pneg %p79
      %p203 = pneg %p76
      %p204 = pneg %p100
      %p205 = pneg %p97
      %p206 = pneg %p121
      %p207 = pneg %p118
      %p208 = pneg %p147
      %p209 = pneg %p144
      %p210 = scmp.lt.s32.totalorder %s16, 1
      %s211 = scalar_select %p210, %s16, 1
      %s212 = smul.addr %s211, 32
      %s213 = smul.addr %s212, 8
      %s214 = scalar_lea.vmem %s5, %s213
      %p215 = scmp.lt.s32.totalorder %s16, 1
      %s216 = scalar_select %p215, %s16, 1
      %s217 = smul.addr %s216, 32
      %s218 = smul.addr %s217, 8
      %s219 = scalar_lea.vmem %s0, %s218
      %p220 = scmp.lt.s32.totalorder %s16, 1
      %s221 = scalar_select %p220, %s16, 1
      %s222 = smul.addr %s221, 32
      %s223 = smul.addr %s222, 8
      %s224 = scalar_lea.vmem %s5, %s223
      %vm226 = vcmask 27648
      %227 = vst.msk [vmem:[#allocation2] sm:$0xf] %vm226, 0
      %228 = vst.msk [vmem:[#allocation2 + $0x4] sm:$0xf] %vm226, 0
      %vm229 = vcmask 24576
      %230 = vst.msk [vmem:[#allocation2 + $0x8] sm:$0x1] %vm229, 0
      %231 = vst.msk [vmem:[#allocation2 + $0xc] sm:$0xf] %vm226, 0
      %232 = vst.msk [vmem:[#allocation2 + $0x10] sm:$0xf] %vm226, 0
      %233 = vst.msk [vmem:[#allocation2 + $0x14] sm:$0x1] %vm229, 0
      %234 = vst.msk [vmem:[#allocation2 + $0x18] sm:$0xf] %vm226, 0
      %235 = vst.msk [vmem:[#allocation2 + $0x1c] sm:$0xf] %vm226, 0
      %236 = vst.msk [vmem:[#allocation2 + $0x20] sm:$0x1] %vm229, 0
      %237 = vst.msk [vmem:[#allocation2 + $0x24] sm:$0xf] %vm226, 0
      %238 = vst.msk [vmem:[#allocation2 + $0x28] sm:$0xf] %vm226, 0
      %239 = vst.msk [vmem:[#allocation2 + $0x2c] sm:$0x1] %vm229, 0
      %240 = vst.msk [vmem:[#allocation2 + $0x30] sm:$0xf] %vm226, 0
      %241 = vst.msk [vmem:[#allocation2 + $0x34] sm:$0xf] %vm226, 0
      %242 = vst.msk [vmem:[#allocation2 + $0x38] sm:$0x1] %vm229, 0
      %243 = vst.msk [vmem:[#allocation2 + $0x3c] sm:$0xf] %vm226, 0
      %244 = vst.msk [vmem:[#allocation2 + $0x40] sm:$0xf] %vm226, 0
      %245 = vst.msk [vmem:[#allocation2 + $0x44] sm:$0x1] %vm229, 0
      %246 = vst.msk [vmem:[#allocation2 + $0x48] sm:$0xf] %vm226, 0
      %247 = vst.msk [vmem:[#allocation2 + $0x4c] sm:$0xf] %vm226, 0
      %248 = vst.msk [vmem:[#allocation2 + $0x50] sm:$0x1] %vm229, 0
      %249 = vst.msk [vmem:[#allocation2 + $0x54] sm:$0xf] %vm226, 0
      %250 = vst.msk [vmem:[#allocation2 + $0x58] sm:$0xf] %vm226, 0
      %251 = vst.msk [vmem:[#allocation2 + $0x5c] sm:$0x1] %vm229, 0
      %252 = vst.msk [vmem:[#allocation2 + $0x60] sm:$0xf] %vm226, 0
      %253 = vst.msk [vmem:[#allocation2 + $0x64] sm:$0xf] %vm226, 0
      %254 = vst.msk [vmem:[#allocation2 + $0x68] sm:$0x1] %vm229, 0
      %255 = vst.msk [vmem:[#allocation2 + $0x6c] sm:$0xf] %vm226, 0
      %256 = vst.msk [vmem:[#allocation2 + $0x70] sm:$0xf] %vm226, 0
      %257 = vst.msk [vmem:[#allocation2 + $0x74] sm:$0x1] %vm229, 0
      %258 = vst.msk [vmem:[#allocation2 + $0x78] sm:$0xf] %vm226, 0
      %259 = vst.msk [vmem:[#allocation2 + $0x7c] sm:$0xf] %vm226, 0
      %260 = vst.msk [vmem:[#allocation2 + $0x80] sm:$0x1] %vm229, 0
      %261 = vst.msk [vmem:[#allocation2 + $0x84] sm:$0xf] %vm226, 0
      %262 = vst.msk [vmem:[#allocation2 + $0x88] sm:$0xf] %vm226, 0
      %263 = vst.msk [vmem:[#allocation2 + $0x8c] sm:$0x1] %vm229, 0
      %264 = vst.msk [vmem:[#allocation2 + $0x90] sm:$0xf] %vm226, 0
      %265 = vst.msk [vmem:[#allocation2 + $0x94] sm:$0xf] %vm226, 0
      %266 = vst.msk [vmem:[#allocation2 + $0x98] sm:$0x1] %vm229, 0
      %267 = vst.msk [vmem:[#allocation2 + $0x9c] sm:$0xf] %vm226, 0
      %268 = vst.msk [vmem:[#allocation2 + $0xa0] sm:$0xf] %vm226, 0
      %269 = vst.msk [vmem:[#allocation2 + $0xa4] sm:$0x1] %vm229, 0
      %270 = vst.msk [vmem:[#allocation2 + $0xa8] sm:$0xf] %vm226, 0
      %271 = vst.msk [vmem:[#allocation2 + $0xac] sm:$0xf] %vm226, 0
      %272 = vst.msk [vmem:[#allocation2 + $0xb0] sm:$0x1] %vm229, 0
      %273 = vst.msk [vmem:[#allocation2 + $0xb4] sm:$0xf] %vm226, 0
      %274 = vst.msk [vmem:[#allocation2 + $0xb8] sm:$0xf] %vm226, 0
      %275 = vst.msk [vmem:[#allocation2 + $0xbc] sm:$0x1] %vm229, 0
      %276 = vst.msk [vmem:[#allocation2 + $0xc0] sm:$0xf] %vm226, 0
      %277 = vst.msk [vmem:[#allocation2 + $0xc4] sm:$0xf] %vm226, 0
      %278 = vst.msk [vmem:[#allocation2 + $0xc8] sm:$0x1] %vm229, 0
      %279 = vst.msk [vmem:[#allocation2 + $0xcc] sm:$0xf] %vm226, 0
      %280 = vst.msk [vmem:[#allocation2 + $0xd0] sm:$0xf] %vm226, 0
      %281 = vst.msk [vmem:[#allocation2 + $0xd4] sm:$0x1] %vm229, 0
      %282 = vst.msk [vmem:[#allocation3] sm:$0xf] %vm226, 0
      %283 = vst.msk [vmem:[#allocation3 + $0x4] sm:$0xf] %vm226, 0
      %284 = vst.msk [vmem:[#allocation3 + $0x8] sm:$0x1] %vm229, 0
      %285 = vst.msk [vmem:[#allocation3 + $0xc] sm:$0xf] %vm226, 0
      %286 = vst.msk [vmem:[#allocation3 + $0x10] sm:$0xf] %vm226, 0
      %287 = vst.msk [vmem:[#allocation3 + $0x14] sm:$0x1] %vm229, 0
      %288 = vst.msk [vmem:[#allocation3 + $0x18] sm:$0xf] %vm226, 0
      %289 = vst.msk [vmem:[#allocation3 + $0x1c] sm:$0xf] %vm226, 0
      %290 = vst.msk [vmem:[#allocation3 + $0x20] sm:$0x1] %vm229, 0
      %291 = vst.msk [vmem:[#allocation3 + $0x24] sm:$0xf] %vm226, 0
      %292 = vst.msk [vmem:[#allocation3 + $0x28] sm:$0xf] %vm226, 0
      %293 = vst.msk [vmem:[#allocation3 + $0x2c] sm:$0x1] %vm229, 0
      %294 = vst.msk [vmem:[#allocation3 + $0x30] sm:$0xf] %vm226, 0
      %295 = vst.msk [vmem:[#allocation3 + $0x34] sm:$0xf] %vm226, 0
      %296 = vst.msk [vmem:[#allocation3 + $0x38] sm:$0x1] %vm229, 0
      %297 = vst.msk [vmem:[#allocation3 + $0x3c] sm:$0xf] %vm226, 0
      %298 = vst.msk [vmem:[#allocation3 + $0x40] sm:$0xf] %vm226, 0
      %299 = vst.msk [vmem:[#allocation3 + $0x44] sm:$0x1] %vm229, 0
      %300 = vst.msk [vmem:[#allocation3 + $0x48] sm:$0xf] %vm226, 0
      %301 = vst.msk [vmem:[#allocation3 + $0x4c] sm:$0xf] %vm226, 0
      %302 = vst.msk [vmem:[#allocation3 + $0x50] sm:$0x1] %vm229, 0
      %303 = vst.msk [vmem:[#allocation3 + $0x54] sm:$0xf] %vm226, 0
      %304 = vst.msk [vmem:[#allocation3 + $0x58] sm:$0xf] %vm226, 0
      %305 = vst.msk [vmem:[#allocation3 + $0x5c] sm:$0x1] %vm229, 0
      %306 = vst.msk [vmem:[#allocation3 + $0x60] sm:$0xf] %vm226, 0
      %307 = vst.msk [vmem:[#allocation3 + $0x64] sm:$0xf] %vm226, 0
      %308 = vst.msk [vmem:[#allocation3 + $0x68] sm:$0x1] %vm229, 0
      %309 = vst.msk [vmem:[#allocation3 + $0x6c] sm:$0xf] %vm226, 0
      %310 = vst.msk [vmem:[#allocation3 + $0x70] sm:$0xf] %vm226, 0
      %311 = vst.msk [vmem:[#allocation3 + $0x74] sm:$0x1] %vm229, 0
      %312 = vst.msk [vmem:[#allocation3 + $0x78] sm:$0xf] %vm226, 0
      %313 = vst.msk [vmem:[#allocation3 + $0x7c] sm:$0xf] %vm226, 0
      %314 = vst.msk [vmem:[#allocation3 + $0x80] sm:$0x1] %vm229, 0
      %315 = vst.msk [vmem:[#allocation3 + $0x84] sm:$0xf] %vm226, 0
      %316 = vst.msk [vmem:[#allocation3 + $0x88] sm:$0xf] %vm226, 0
      %317 = vst.msk [vmem:[#allocation3 + $0x8c] sm:$0x1] %vm229, 0
      %318 = vst.msk [vmem:[#allocation3 + $0x90] sm:$0xf] %vm226, 0
      %319 = vst.msk [vmem:[#allocation3 + $0x94] sm:$0xf] %vm226, 0
      %320 = vst.msk [vmem:[#allocation3 + $0x98] sm:$0x1] %vm229, 0
      %321 = vst.msk [vmem:[#allocation3 + $0x9c] sm:$0xf] %vm226, 0
      %322 = vst.msk [vmem:[#allocation3 + $0xa0] sm:$0xf] %vm226, 0
      %323 = vst.msk [vmem:[#allocation3 + $0xa4] sm:$0x1] %vm229, 0
      %324 = vst.msk [vmem:[#allocation3 + $0xa8] sm:$0xf] %vm226, 0
      %325 = vst.msk [vmem:[#allocation3 + $0xac] sm:$0xf] %vm226, 0
      %326 = vst.msk [vmem:[#allocation3 + $0xb0] sm:$0x1] %vm229, 0
      %327 = vst.msk [vmem:[#allocation3 + $0xb4] sm:$0xf] %vm226, 0
      %328 = vst.msk [vmem:[#allocation3 + $0xb8] sm:$0xf] %vm226, 0
      %329 = vst.msk [vmem:[#allocation3 + $0xbc] sm:$0x1] %vm229, 0
      %330 = vst.msk [vmem:[#allocation3 + $0xc0] sm:$0xf] %vm226, 0
      %331 = vst.msk [vmem:[#allocation3 + $0xc4] sm:$0xf] %vm226, 0
      %332 = vst.msk [vmem:[#allocation3 + $0xc8] sm:$0x1] %vm229, 0
      %333 = vst.msk [vmem:[#allocation3 + $0xcc] sm:$0xf] %vm226, 0
      %334 = vst.msk [vmem:[#allocation3 + $0xd0] sm:$0xf] %vm226, 0
      %335 = vst.msk [vmem:[#allocation3 + $0xd4] sm:$0x1] %vm229, 0
      %v336 = vld [vmem:[%s219] sm:$0xff]
      %v337 = vld [vmem:[%s219 + $0x8] sm:$0xff]
      %v338 = vld [vmem:[%s219 + $0x10] sm:$0xff]
      %v339 = vld [vmem:[%s219 + $0x18] sm:$0xff]
      %v340 = vld [vmem:[%s219 + $0x20] sm:$0xff]
      %v341 = vld [vmem:[%s219 + $0x28] sm:$0xff]
      %v342 = vld [vmem:[%s219 + $0x30] sm:$0xff]
      %v343 = vld [vmem:[%s219 + $0x38] sm:$0xff]
      %v344 = vld [vmem:[%s219 + $0x40] sm:$0xff]
      %v345 = vld [vmem:[%s219 + $0x48] sm:$0xff]
      %v346 = vld [vmem:[%s219 + $0x50] sm:$0xff]
      %v347 = vld [vmem:[%s219 + $0x58] sm:$0xff]
      %v348 = vld [vmem:[%s219 + $0x60] sm:$0xff]
      %v349 = vld [vmem:[%s219 + $0x68] sm:$0xff]
      %v350 = vld [vmem:[%s219 + $0x70] sm:$0xff]
      %v351 = vld [vmem:[%s219 + $0x78] sm:$0xff]
      %v352 = vld [vmem:[%s219 + $0x80] sm:$0xff]
      %v353 = vld [vmem:[%s219 + $0x88] sm:$0xff]
      %v354 = vld [vmem:[%s219 + $0x90] sm:$0xff]
      %v355 = vld [vmem:[%s219 + $0x98] sm:$0xff]
      %v356 = vld [vmem:[%s219 + $0xa0] sm:$0xff]
      %v357 = vld [vmem:[%s219 + $0xa8] sm:$0xff]
      %v358 = vld [vmem:[%s219 + $0xb0] sm:$0xff]
      %v359 = vld [vmem:[%s219 + $0xb8] sm:$0xff]
      %v360 = vld [vmem:[%s219 + $0xc0] sm:$0xff]
      %v361 = vld [vmem:[%s219 + $0xc8] sm:$0xff]
      %v362 = vld [vmem:[%s219 + $0xd0] sm:$0xff]
      %v363 = vld [vmem:[%s219 + $0xd8] sm:$0xff]
      %v364 = vld [vmem:[%s219 + $0xe0] sm:$0xff]
      %v365 = vld [vmem:[%s219 + $0xe8] sm:$0xff]
      %v366 = vld [vmem:[%s219 + $0xf0] sm:$0xff]
      %v367 = vld [vmem:[%s219 + $0xf8] sm:$0xff]
      %v368 = vpack.c.bf16 %v336, %v336
      %v369 = vpack.c.bf16 %v337, %v337
      %v370 = vpack.c.bf16 %v338, %v338
      %v371 = vpack.c.bf16 %v339, %v339
      %v372 = vpack.c.bf16 %v340, %v340
      %v373 = vpack.c.bf16 %v341, %v341
      %v374 = vpack.c.bf16 %v342, %v342
      %v375 = vpack.c.bf16 %v343, %v343
      %v376 = vpack.c.bf16 %v344, %v344
      %v377 = vpack.c.bf16 %v345, %v345
      %v378 = vpack.c.bf16 %v346, %v346
      %v379 = vpack.c.bf16 %v347, %v347
      %v380 = vpack.c.bf16 %v348, %v348
      %v381 = vpack.c.bf16 %v349, %v349
      %v382 = vpack.c.bf16 %v350, %v350
      %v383 = vpack.c.bf16 %v351, %v351
      %v384 = vpack.c.bf16 %v352, %v352
      %v385 = vpack.c.bf16 %v353, %v353
      %v386 = vpack.c.bf16 %v354, %v354
      %v387 = vpack.c.bf16 %v355, %v355
      %v388 = vpack.c.bf16 %v356, %v356
      %v389 = vpack.c.bf16 %v357, %v357
      %v390 = vpack.c.bf16 %v358, %v358
      %v391 = vpack.c.bf16 %v359, %v359
      %v392 = vpack.c.bf16 %v360, %v360
      %v393 = vpack.c.bf16 %v361, %v361
      %v394 = vpack.c.bf16 %v362, %v362
      %v395 = vpack.c.bf16 %v363, %v363
      %v396 = vpack.c.bf16 %v364, %v364
      %v397 = vpack.c.bf16 %v365, %v365
      %v398 = vpack.c.bf16 %v366, %v366
      %v399 = vpack.c.bf16 %v367, %v367
      %vm400 = vsmask.f32 256
      %vm401 = vsmask.f32 4368
      %vm402 = vmor %vm400, %vm401
      %v404 = vshrl.u32 %v368, 16
      %v406 = vrot.slane %v404, 7
      %v407 = vshll.u32 %v368, 16
      %v409 = vor.u32 %v406, %v407
      %v410 = vrot.slane %v406, 4
      %v412 = vshrl.u32 %v369, 16
      %v414 = vrot.slane %v412, 7
      %v415 = vshll.u32 %v369, 16
      %v417 = vor.u32 %v414, %v415
      %v418 = vsel %vm402, %v410, %v417
      %v419 = vrot.slane %v414, 4
      %v421 = vshrl.u32 %v370, 16
      %v423 = vrot.slane %v421, 7
      %v424 = vshll.u32 %v370, 16
      %v426 = vor.u32 %v423, %v424
      %v427 = vrot.slane %v423, 4
      %v429 = vshrl.u32 %v371, 16
      %v431 = vrot.slane %v429, 7
      %v432 = vshll.u32 %v371, 16
      %v434 = vor.u32 %v431, %v432
      %v435 = vsel %vm402, %v427, %v434
      %v436 = vrot.slane %v431, 4
      %v438 = vshrl.u32 %v372, 16
      %v440 = vrot.slane %v438, 7
      %v441 = vshll.u32 %v372, 16
      %v443 = vor.u32 %v440, %v441
      %v444 = vrot.slane %v440, 4
      %v446 = vshrl.u32 %v373, 16
      %v448 = vrot.slane %v446, 7
      %v449 = vshll.u32 %v373, 16
      %v451 = vor.u32 %v448, %v449
      %v452 = vsel %vm402, %v444, %v451
      %v453 = vrot.slane %v448, 4
      %v455 = vshrl.u32 %v374, 16
      %v457 = vrot.slane %v455, 7
      %v458 = vshll.u32 %v374, 16
      %v460 = vor.u32 %v457, %v458
      %v461 = vrot.slane %v457, 4
      %v463 = vshrl.u32 %v375, 16
      %v465 = vrot.slane %v463, 7
      %v466 = vshll.u32 %v375, 16
      %v468 = vor.u32 %v465, %v466
      %v469 = vsel %vm402, %v461, %v468
      %v470 = vrot.slane %v465, 4
      %v472 = vshrl.u32 %v376, 16
      %v474 = vrot.slane %v472, 7
      %v475 = vshll.u32 %v376, 16
      %v477 = vor.u32 %v474, %v475
      %v478 = vrot.slane %v474, 4
      %v480 = vshrl.u32 %v377, 16
      %v482 = vrot.slane %v480, 7
      %v483 = vshll.u32 %v377, 16
      %v485 = vor.u32 %v482, %v483
      %v486 = vsel %vm402, %v478, %v485
      %v487 = vrot.slane %v482, 4
      %v489 = vshrl.u32 %v378, 16
      %v491 = vrot.slane %v489, 7
      %v492 = vshll.u32 %v378, 16
      %v494 = vor.u32 %v491, %v492
      %v495 = vrot.slane %v491, 4
      %v497 = vshrl.u32 %v379, 16
      %v499 = vrot.slane %v497, 7
      %v500 = vshll.u32 %v379, 16
      %v502 = vor.u32 %v499, %v500
      %v503 = vsel %vm402, %v495, %v502
      %v504 = vrot.slane %v499, 4
      %v506 = vshrl.u32 %v380, 16
      %v508 = vrot.slane %v506, 7
      %v509 = vshll.u32 %v380, 16
      %v511 = vor.u32 %v508, %v509
      %v512 = vrot.slane %v508, 4
      %v514 = vshrl.u32 %v381, 16
      %v516 = vrot.slane %v514, 7
      %v517 = vshll.u32 %v381, 16
      %v519 = vor.u32 %v516, %v517
      %v520 = vsel %vm402, %v512, %v519
      %v521 = vrot.slane %v516, 4
      %v523 = vshrl.u32 %v382, 16
      %v525 = vrot.slane %v523, 7
      %v526 = vshll.u32 %v382, 16
      %v528 = vor.u32 %v525, %v526
      %v529 = vrot.slane %v525, 4
      %v531 = vshrl.u32 %v383, 16
      %v533 = vrot.slane %v531, 7
      %v534 = vshll.u32 %v383, 16
      %v536 = vor.u32 %v533, %v534
      %v537 = vsel %vm402, %v529, %v536
      %v538 = vrot.slane %v533, 4
      %v540 = vshrl.u32 %v384, 16
      %v542 = vrot.slane %v540, 7
      %v543 = vshll.u32 %v384, 16
      %v545 = vor.u32 %v542, %v543
      %v546 = vrot.slane %v542, 4
      %v548 = vshrl.u32 %v385, 16
      %v550 = vrot.slane %v548, 7
      %v551 = vshll.u32 %v385, 16
      %v553 = vor.u32 %v550, %v551
      %v554 = vsel %vm402, %v546, %v553
      %v555 = vrot.slane %v550, 4
      %v557 = vshrl.u32 %v386, 16
      %v559 = vrot.slane %v557, 7
      %v560 = vshll.u32 %v386, 16
      %v562 = vor.u32 %v559, %v560
      %v563 = vrot.slane %v559, 4
      %v565 = vshrl.u32 %v387, 16
      %v567 = vrot.slane %v565, 7
      %v568 = vshll.u32 %v387, 16
      %v570 = vor.u32 %v567, %v568
      %v571 = vsel %vm402, %v563, %v570
      %v572 = vrot.slane %v567, 4
      %v574 = vshrl.u32 %v388, 16
      %v576 = vrot.slane %v574, 7
      %v577 = vshll.u32 %v388, 16
      %v579 = vor.u32 %v576, %v577
      %v580 = vrot.slane %v576, 4
      %v582 = vshrl.u32 %v389, 16
      %v584 = vrot.slane %v582, 7
      %v585 = vshll.u32 %v389, 16
      %v587 = vor.u32 %v584, %v585
      %v588 = vsel %vm402, %v580, %v587
      %v589 = vrot.slane %v584, 4
      %v591 = vshrl.u32 %v390, 16
      %v593 = vrot.slane %v591, 7
      %v594 = vshll.u32 %v390, 16
      %v596 = vor.u32 %v593, %v594
      %v597 = vrot.slane %v593, 4
      %v599 = vshrl.u32 %v391, 16
      %v601 = vrot.slane %v599, 7
      %v602 = vshll.u32 %v391, 16
      %v604 = vor.u32 %v601, %v602
      %v605 = vsel %vm402, %v597, %v604
      %v606 = vrot.slane %v601, 4
      %v608 = vshrl.u32 %v392, 16
      %v610 = vrot.slane %v608, 7
      %v611 = vshll.u32 %v392, 16
      %v613 = vor.u32 %v610, %v611
      %v614 = vrot.slane %v610, 4
      %v616 = vshrl.u32 %v393, 16
      %v618 = vrot.slane %v616, 7
      %v619 = vshll.u32 %v393, 16
      %v621 = vor.u32 %v618, %v619
      %v622 = vsel %vm402, %v614, %v621
      %v623 = vrot.slane %v618, 4
      %v625 = vshrl.u32 %v394, 16
      %v627 = vrot.slane %v625, 7
      %v628 = vshll.u32 %v394, 16
      %v630 = vor.u32 %v627, %v628
      %v631 = vrot.slane %v627, 4
      %v633 = vshrl.u32 %v395, 16
      %v635 = vrot.slane %v633, 7
      %v636 = vshll.u32 %v395, 16
      %v638 = vor.u32 %v635, %v636
      %v639 = vsel %vm402, %v631, %v638
      %v640 = vrot.slane %v635, 4
      %v642 = vshrl.u32 %v396, 16
      %v644 = vrot.slane %v642, 7
      %v645 = vshll.u32 %v396, 16
      %v647 = vor.u32 %v644, %v645
      %v648 = vrot.slane %v644, 4
      %v650 = vshrl.u32 %v397, 16
      %v652 = vrot.slane %v650, 7
      %v653 = vshll.u32 %v397, 16
      %v655 = vor.u32 %v652, %v653
      %v656 = vsel %vm402, %v648, %v655
      %v657 = vrot.slane %v652, 4
      %v659 = vshrl.u32 %v398, 16
      %v661 = vrot.slane %v659, 7
      %v662 = vshll.u32 %v398, 16
      %v664 = vor.u32 %v661, %v662
      %v665 = vrot.slane %v661, 4
      %v667 = vshrl.u32 %v399, 16
      %v669 = vrot.slane %v667, 7
      %v670 = vshll.u32 %v399, 16
      %v672 = vor.u32 %v669, %v670
      %v673 = vsel %vm402, %v665, %v672
      %v674 = vrot.slane %v669, 4
      %s723 = scalar_lea.vmem [#allocation2], 12
      %vm724 = vcmask 27648
      %vm725 = vsmask.f32 7938
      %vm726 = vmand %vm724, %vm725
      %v727 = vld [vmem:[%s723] sm:$0xf]
      %v728 = vsel %vm726, %v409, %v727
      %729 = vst [vmem:[%s723] sm:$0xf] %v728
      %730 = vst.msk [vmem:[%s723 + $0x4] sm:$0xf] %vm226, %v418
      %vm731 = vcmask 24576
      %vm732 = vmand %vm731, %vm400
      %v733 = vld [vmem:[%s723 + $0x8] sm:$0x1]
      %v734 = vsel %vm732, %v419, %v733
      %735 = vst [vmem:[%s723 + $0x8] sm:$0x1] %v734
      %v736 = vld [vmem:[%s723 + $0xc] sm:$0xf]
      %v737 = vsel %vm726, %v426, %v736
      %738 = vst [vmem:[%s723 + $0xc] sm:$0xf] %v737
      %739 = vst.msk [vmem:[%s723 + $0x10] sm:$0xf] %vm226, %v435
      %v740 = vld [vmem:[%s723 + $0x14] sm:$0x1]
      %v741 = vsel %vm732, %v436, %v740
      %742 = vst [vmem:[%s723 + $0x14] sm:$0x1] %v741
      %v743 = vld [vmem:[%s723 + $0x18] sm:$0xf]
      %v744 = vsel %vm726, %v443, %v743
      %745 = vst [vmem:[%s723 + $0x18] sm:$0xf] %v744
      %746 = vst.msk [vmem:[%s723 + $0x1c] sm:$0xf] %vm226, %v452
      %v747 = vld [vmem:[%s723 + $0x20] sm:$0x1]
      %v748 = vsel %vm732, %v453, %v747
      %749 = vst [vmem:[%s723 + $0x20] sm:$0x1] %v748
      %v750 = vld [vmem:[%s723 + $0x24] sm:$0xf]
      %v751 = vsel %vm726, %v460, %v750
      %752 = vst [vmem:[%s723 + $0x24] sm:$0xf] %v751
      %753 = vst.msk [vmem:[%s723 + $0x28] sm:$0xf] %vm226, %v469
      %v754 = vld [vmem:[%s723 + $0x2c] sm:$0x1]
      %v755 = vsel %vm732, %v470, %v754
      %756 = vst [vmem:[%s723 + $0x2c] sm:$0x1] %v755
      %v757 = vld [vmem:[%s723 + $0x30] sm:$0xf]
      %v758 = vsel %vm726, %v477, %v757
      %759 = vst [vmem:[%s723 + $0x30] sm:$0xf] %v758
      %760 = vst.msk [vmem:[%s723 + $0x34] sm:$0xf] %vm226, %v486
      %v761 = vld [vmem:[%s723 + $0x38] sm:$0x1]
      %v762 = vsel %vm732, %v487, %v761
      %763 = vst [vmem:[%s723 + $0x38] sm:$0x1] %v762
      %v764 = vld [vmem:[%s723 + $0x3c] sm:$0xf]
      %v765 = vsel %vm726, %v494, %v764
      %766 = vst [vmem:[%s723 + $0x3c] sm:$0xf] %v765
      %767 = vst.msk [vmem:[%s723 + $0x40] sm:$0xf] %vm226, %v503
      %v768 = vld [vmem:[%s723 + $0x44] sm:$0x1]
      %v769 = vsel %vm732, %v504, %v768
      %770 = vst [vmem:[%s723 + $0x44] sm:$0x1] %v769
      %v771 = vld [vmem:[%s723 + $0x48] sm:$0xf]
      %v772 = vsel %vm726, %v511, %v771
      %773 = vst [vmem:[%s723 + $0x48] sm:$0xf] %v772
      %774 = vst.msk [vmem:[%s723 + $0x4c] sm:$0xf] %vm226, %v520
      %v775 = vld [vmem:[%s723 + $0x50] sm:$0x1]
      %v776 = vsel %vm732, %v521, %v775
      %777 = vst [vmem:[%s723 + $0x50] sm:$0x1] %v776
      %v778 = vld [vmem:[%s723 + $0x54] sm:$0xf]
      %v779 = vsel %vm726, %v528, %v778
      %780 = vst [vmem:[%s723 + $0x54] sm:$0xf] %v779
      %781 = vst.msk [vmem:[%s723 + $0x58] sm:$0xf] %vm226, %v537
      %v782 = vld [vmem:[%s723 + $0x5c] sm:$0x1]
      %v783 = vsel %vm732, %v538, %v782
      %784 = vst [vmem:[%s723 + $0x5c] sm:$0x1] %v783
      %v785 = vld [vmem:[%s723 + $0x60] sm:$0xf]
      %v786 = vsel %vm726, %v545, %v785
      %787 = vst [vmem:[%s723 + $0x60] sm:$0xf] %v786
      %788 = vst.msk [vmem:[%s723 + $0x64] sm:$0xf] %vm226, %v554
      %v789 = vld [vmem:[%s723 + $0x68] sm:$0x1]
      %v790 = vsel %vm732, %v555, %v789
      %791 = vst [vmem:[%s723 + $0x68] sm:$0x1] %v790
      %v792 = vld [vmem:[%s723 + $0x6c] sm:$0xf]
      %v793 = vsel %vm726, %v562, %v792
      %794 = vst [vmem:[%s723 + $0x6c] sm:$0xf] %v793
      %795 = vst.msk [vmem:[%s723 + $0x70] sm:$0xf] %vm226, %v571
      %v796 = vld [vmem:[%s723 + $0x74] sm:$0x1]
      %v797 = vsel %vm732, %v572, %v796
      %798 = vst [vmem:[%s723 + $0x74] sm:$0x1] %v797
      %v799 = vld [vmem:[%s723 + $0x78] sm:$0xf]
      %v800 = vsel %vm726, %v579, %v799
      %801 = vst [vmem:[%s723 + $0x78] sm:$0xf] %v800
      %802 = vst.msk [vmem:[%s723 + $0x7c] sm:$0xf] %vm226, %v588
      %v803 = vld [vmem:[%s723 + $0x80] sm:$0x1]
      %v804 = vsel %vm732, %v589, %v803
      %805 = vst [vmem:[%s723 + $0x80] sm:$0x1] %v804
      %v806 = vld [vmem:[%s723 + $0x84] sm:$0xf]
      %v807 = vsel %vm726, %v596, %v806
      %808 = vst [vmem:[%s723 + $0x84] sm:$0xf] %v807
      %809 = vst.msk [vmem:[%s723 + $0x88] sm:$0xf] %vm226, %v605
      %v810 = vld [vmem:[%s723 + $0x8c] sm:$0x1]
      %v811 = vsel %vm732, %v606, %v810
      %812 = vst [vmem:[%s723 + $0x8c] sm:$0x1] %v811
      %v813 = vld [vmem:[%s723 + $0x90] sm:$0xf]
      %v814 = vsel %vm726, %v613, %v813
      %815 = vst [vmem:[%s723 + $0x90] sm:$0xf] %v814
      %816 = vst.msk [vmem:[%s723 + $0x94] sm:$0xf] %vm226, %v622
      %v817 = vld [vmem:[%s723 + $0x98] sm:$0x1]
      %v818 = vsel %vm732, %v623, %v817
      %819 = vst [vmem:[%s723 + $0x98] sm:$0x1] %v818
      %v820 = vld [vmem:[%s723 + $0x9c] sm:$0xf]
      %v821 = vsel %vm726, %v630, %v820
      %822 = vst [vmem:[%s723 + $0x9c] sm:$0xf] %v821
      %823 = vst.msk [vmem:[%s723 + $0xa0] sm:$0xf] %vm226, %v639
      %v824 = vld [vmem:[%s723 + $0xa4] sm:$0x1]
      %v825 = vsel %vm732, %v640, %v824
      %826 = vst [vmem:[%s723 + $0xa4] sm:$0x1] %v825
      %v827 = vld [vmem:[%s723 + $0xa8] sm:$0xf]
      %v828 = vsel %vm726, %v647, %v827
      %829 = vst [vmem:[%s723 + $0xa8] sm:$0xf] %v828
      %830 = vst.msk [vmem:[%s723 + $0xac] sm:$0xf] %vm226, %v656
      %v831 = vld [vmem:[%s723 + $0xb0] sm:$0x1]
      %v832 = vsel %vm732, %v657, %v831
      %833 = vst [vmem:[%s723 + $0xb0] sm:$0x1] %v832
      %v834 = vld [vmem:[%s723 + $0xb4] sm:$0xf]
      %v835 = vsel %vm726, %v664, %v834
      %836 = vst [vmem:[%s723 + $0xb4] sm:$0xf] %v835
      %837 = vst.msk [vmem:[%s723 + $0xb8] sm:$0xf] %vm226, %v673
      %v838 = vld [vmem:[%s723 + $0xbc] sm:$0x1]
      %v839 = vsel %vm732, %v674, %v838
      %840 = vst [vmem:[%s723 + $0xbc] sm:$0x1] %v839
      %v841 = vld [vmem:[#allocation2] sm:$0xf]
      %v842 = vld [vmem:[#allocation2 + $0x4] sm:$0xf]
      %v843 = vld [vmem:[#allocation2 + $0x8] sm:$0x1]
      %v844 = vld [vmem:[#allocation2 + $0xc] sm:$0xf]
      %v845 = vld [vmem:[#allocation2 + $0x10] sm:$0xf]
      %v846 = vld [vmem:[#allocation2 + $0x14] sm:$0x1]
      %v847 = vld [vmem:[#allocation2 + $0x18] sm:$0xf]
      %v848 = vld [vmem:[#allocation2 + $0x1c] sm:$0xf]
      %v849 = vld [vmem:[#allocation2 + $0x20] sm:$0x1]
      %v850 = vld [vmem:[#allocation2 + $0x24] sm:$0xf]
      %v851 = vld [vmem:[#allocation2 + $0x28] sm:$0xf]
      %v852 = vld [vmem:[#allocation2 + $0x2c] sm:$0x1]
      %v853 = vld [vmem:[#allocation2 + $0x30] sm:$0xf]
      %v854 = vld [vmem:[#allocation2 + $0x34] sm:$0xf]
      %v855 = vld [vmem:[#allocation2 + $0x38] sm:$0x1]
      %v856 = vld [vmem:[#allocation2 + $0x3c] sm:$0xf]
      %v857 = vld [vmem:[#allocation2 + $0x40] sm:$0xf]
      %v858 = vld [vmem:[#allocation2 + $0x44] sm:$0x1]
      %v859 = vld [vmem:[#allocation2 + $0x48] sm:$0xf]
      %v860 = vld [vmem:[#allocation2 + $0x4c] sm:$0xf]
      %v861 = vld [vmem:[#allocation2 + $0x50] sm:$0x1]
      %v862 = vld [vmem:[#allocation2 + $0x54] sm:$0xf]
      %v863 = vld [vmem:[#allocation2 + $0x58] sm:$0xf]
      %v864 = vld [vmem:[#allocation2 + $0x5c] sm:$0x1]
      %v865 = vld [vmem:[#allocation2 + $0x60] sm:$0xf]
      %v866 = vld [vmem:[#allocation2 + $0x64] sm:$0xf]
      %v867 = vld [vmem:[#allocation2 + $0x68] sm:$0x1]
      %v868 = vld [vmem:[#allocation2 + $0x6c] sm:$0xf]
      %v869 = vld [vmem:[#allocation2 + $0x70] sm:$0xf]
      %v870 = vld [vmem:[#allocation2 + $0x74] sm:$0x1]
      %v871 = vld [vmem:[#allocation2 + $0x78] sm:$0xf]
      %v872 = vld [vmem:[#allocation2 + $0x7c] sm:$0xf]
      %v873 = vld [vmem:[#allocation2 + $0x80] sm:$0x1]
      %v874 = vld [vmem:[#allocation2 + $0x84] sm:$0xf]
      %v875 = vld [vmem:[#allocation2 + $0x88] sm:$0xf]
      %v876 = vld [vmem:[#allocation2 + $0x8c] sm:$0x1]
      %v877 = vld [vmem:[#allocation2 + $0x90] sm:$0xf]
      %v878 = vld [vmem:[#allocation2 + $0x94] sm:$0xf]
      %v879 = vld [vmem:[#allocation2 + $0x98] sm:$0x1]
      %v880 = vld [vmem:[#allocation2 + $0x9c] sm:$0xf]
      %v881 = vld [vmem:[#allocation2 + $0xa0] sm:$0xf]
      %v882 = vld [vmem:[#allocation2 + $0xa4] sm:$0x1]
      %v883 = vld [vmem:[#allocation2 + $0xa8] sm:$0xf]
      %v884 = vld [vmem:[#allocation2 + $0xac] sm:$0xf]
      %v885 = vld [vmem:[#allocation2 + $0xb0] sm:$0x1]
      %v886 = vld [vmem:[#allocation2 + $0xb4] sm:$0xf]
      %v887 = vld [vmem:[#allocation2 + $0xb8] sm:$0xf]
      %v888 = vld [vmem:[#allocation2 + $0xbc] sm:$0x1]
      %v889 = vld [vmem:[#allocation2 + $0xc0] sm:$0xf]
      %v890 = vld [vmem:[#allocation2 + $0xc4] sm:$0xf]
      %v891 = vld [vmem:[#allocation2 + $0xc8] sm:$0x1]
      %v892 = vld [vmem:[#allocation2 + $0xcc] sm:$0xf]
      %v893 = vld [vmem:[#allocation2 + $0xd0] sm:$0xf]
      %v894 = vld [vmem:[#allocation2 + $0xd4] sm:$0x1]
      %v895 = vld [vmem:[%s1] sm:$0x3]
      %v896 = vld [vmem:[%s1] sm:$0xc]
      %vm897 = vsmask.f32 3328
      %vm898 = vsmask.f32 7440
      %vm899 = vmor %vm897, %vm898
      %v901 = vshrl.u32 %v841, 16
      %v903 = vrot.slane %v901, 4
      %v904 = vshll.u32 %v841, 16
      %v906 = vrot.slane %v904, 5
      %v907 = vor.u32 %v903, %v906
      %v908 = vrot.slane %v907, 4
      %v910 = vshll.u32 %v842, 16
      %v912 = vrot.slane %v910, 5
      %v913 = vsel %vm899, %v908, %v912
      %v914 = vshrl.u32 %v842, 16
      %v916 = vrot.slane %v914, 4
      %v917 = vor.u32 %v916, %v912
      %v918 = vrot.slane %v917, 4
      %v920 = vshll.u32 %v843, 16
      %v922 = vrot.slane %v920, 5
      %v923 = vsel %vm899, %v918, %v922
      %v925 = vshrl.u32 %v844, 16
      %v927 = vrot.slane %v925, 4
      %v928 = vshll.u32 %v844, 16
      %v930 = vrot.slane %v928, 5
      %v931 = vor.u32 %v927, %v930
      %v932 = vrot.slane %v931, 4
      %v934 = vshll.u32 %v845, 16
      %v936 = vrot.slane %v934, 5
      %v937 = vsel %vm899, %v932, %v936
      %v938 = vshrl.u32 %v845, 16
      %v940 = vrot.slane %v938, 4
      %v941 = vor.u32 %v940, %v936
      %v942 = vrot.slane %v941, 4
      %v944 = vshll.u32 %v846, 16
      %v946 = vrot.slane %v944, 5
      %v947 = vsel %vm899, %v942, %v946
      %v949 = vshrl.u32 %v847, 16
      %v951 = vrot.slane %v949, 4
      %v952 = vshll.u32 %v847, 16
      %v954 = vrot.slane %v952, 5
      %v955 = vor.u32 %v951, %v954
      %v956 = vrot.slane %v955, 4
      %v958 = vshll.u32 %v848, 16
      %v960 = vrot.slane %v958, 5
      %v961 = vsel %vm899, %v956, %v960
      %v962 = vshrl.u32 %v848, 16
      %v964 = vrot.slane %v962, 4
      %v965 = vor.u32 %v964, %v960
      %v966 = vrot.slane %v965, 4
      %v968 = vshll.u32 %v849, 16
      %v970 = vrot.slane %v968, 5
      %v971 = vsel %vm899, %v966, %v970
      %v973 = vshrl.u32 %v850, 16
      %v975 = vrot.slane %v973, 4
      %v976 = vshll.u32 %v850, 16
      %v978 = vrot.slane %v976, 5
      %v979 = vor.u32 %v975, %v978
      %v980 = vrot.slane %v979, 4
      %v982 = vshll.u32 %v851, 16
      %v984 = vrot.slane %v982, 5
      %v985 = vsel %vm899, %v980, %v984
      %v986 = vshrl.u32 %v851, 16
      %v988 = vrot.slane %v986, 4
      %v989 = vor.u32 %v988, %v984
      %v990 = vrot.slane %v989, 4
      %v992 = vshll.u32 %v852, 16
      %v994 = vrot.slane %v992, 5
      %v995 = vsel %vm899, %v990, %v994
      %v997 = vshrl.u32 %v853, 16
      %v999 = vrot.slane %v997, 4
      %v1000 = vshll.u32 %v853, 16
      %v1002 = vrot.slane %v1000, 5
      %v1003 = vor.u32 %v999, %v1002
      %v1004 = vrot.slane %v1003, 4
      %v1006 = vshll.u32 %v854, 16
      %v1008 = vrot.slane %v1006, 5
      %v1009 = vsel %vm899, %v1004, %v1008
      %v1010 = vshrl.u32 %v854, 16
      %v1012 = vrot.slane %v1010, 4
      %v1013 = vor.u32 %v1012, %v1008
      %v1014 = vrot.slane %v1013, 4
      %v1016 = vshll.u32 %v855, 16
      %v1018 = vrot.slane %v1016, 5
      %v1019 = vsel %vm899, %v1014, %v1018
      %v1021 = vshrl.u32 %v856, 16
      %v1023 = vrot.slane %v1021, 4
      %v1024 = vshll.u32 %v856, 16
      %v1026 = vrot.slane %v1024, 5
      %v1027 = vor.u32 %v1023, %v1026
      %v1028 = vrot.slane %v1027, 4
      %v1030 = vshll.u32 %v857, 16
      %v1032 = vrot.slane %v1030, 5
      %v1033 = vsel %vm899, %v1028, %v1032
      %v1034 = vshrl.u32 %v857, 16
      %v1036 = vrot.slane %v1034, 4
      %v1037 = vor.u32 %v1036, %v1032
      %v1038 = vrot.slane %v1037, 4
      %v1040 = vshll.u32 %v858, 16
      %v1042 = vrot.slane %v1040, 5
      %v1043 = vsel %vm899, %v1038, %v1042
      %v1045 = vshrl.u32 %v859, 16
      %v1047 = vrot.slane %v1045, 4
      %v1048 = vshll.u32 %v859, 16
      %v1050 = vrot.slane %v1048, 5
      %v1051 = vor.u32 %v1047, %v1050
      %v1052 = vrot.slane %v1051, 4
      %v1054 = vshll.u32 %v860, 16
      %v1056 = vrot.slane %v1054, 5
      %v1057 = vsel %vm899, %v1052, %v1056
      %v1058 = vshrl.u32 %v860, 16
      %v1060 = vrot.slane %v1058, 4
      %v1061 = vor.u32 %v1060, %v1056
      %v1062 = vrot.slane %v1061, 4
      %v1064 = vshll.u32 %v861, 16
      %v1066 = vrot.slane %v1064, 5
      %v1067 = vsel %vm899, %v1062, %v1066
      %v1069 = vshrl.u32 %v862, 16
      %v1071 = vrot.slane %v1069, 4
      %v1072 = vshll.u32 %v862, 16
      %v1074 = vrot.slane %v1072, 5
      %v1075 = vor.u32 %v1071, %v1074
      %v1076 = vrot.slane %v1075, 4
      %v1078 = vshll.u32 %v863, 16
      %v1080 = vrot.slane %v1078, 5
      %v1081 = vsel %vm899, %v1076, %v1080
      %v1082 = vshrl.u32 %v863, 16
      %v1084 = vrot.slane %v1082, 4
      %v1085 = vor.u32 %v1084, %v1080
      %v1086 = vrot.slane %v1085, 4
      %v1088 = vshll.u32 %v864, 16
      %v1090 = vrot.slane %v1088, 5
      %v1091 = vsel %vm899, %v1086, %v1090
      %v1093 = vshrl.u32 %v865, 16
      %v1095 = vrot.slane %v1093, 4
      %v1096 = vshll.u32 %v865, 16
      %v1098 = vrot.slane %v1096, 5
      %v1099 = vor.u32 %v1095, %v1098
      %v1100 = vrot.slane %v1099, 4
      %v1102 = vshll.u32 %v866, 16
      %v1104 = vrot.slane %v1102, 5
      %v1105 = vsel %vm899, %v1100, %v1104
      %v1106 = vshrl.u32 %v866, 16
      %v1108 = vrot.slane %v1106, 4
      %v1109 = vor.u32 %v1108, %v1104
      %v1110 = vrot.slane %v1109, 4
      %v1112 = vshll.u32 %v867, 16
      %v1114 = vrot.slane %v1112, 5
      %v1115 = vsel %vm899, %v1110, %v1114
      %v1117 = vshrl.u32 %v868, 16
      %v1119 = vrot.slane %v1117, 4
      %v1120 = vshll.u32 %v868, 16
      %v1122 = vrot.slane %v1120, 5
      %v1123 = vor.u32 %v1119, %v1122
      %v1124 = vrot.slane %v1123, 4
      %v1126 = vshll.u32 %v869, 16
      %v1128 = vrot.slane %v1126, 5
      %v1129 = vsel %vm899, %v1124, %v1128
      %v1130 = vshrl.u32 %v869, 16
      %v1132 = vrot.slane %v1130, 4
      %v1133 = vor.u32 %v1132, %v1128
      %v1134 = vrot.slane %v1133, 4
      %v1136 = vshll.u32 %v870, 16
      %v1138 = vrot.slane %v1136, 5
      %v1139 = vsel %vm899, %v1134, %v1138
      %v1141 = vshrl.u32 %v871, 16
      %v1143 = vrot.slane %v1141, 4
      %v1144 = vshll.u32 %v871, 16
      %v1146 = vrot.slane %v1144, 5
      %v1147 = vor.u32 %v1143, %v1146
      %v1148 = vrot.slane %v1147, 4
      %v1150 = vshll.u32 %v872, 16
      %v1152 = vrot.slane %v1150, 5
      %v1153 = vsel %vm899, %v1148, %v1152
      %v1154 = vshrl.u32 %v872, 16
      %v1156 = vrot.slane %v1154, 4
      %v1157 = vor.u32 %v1156, %v1152
      %v1158 = vrot.slane %v1157, 4
      %v1160 = vshll.u32 %v873, 16
      %v1162 = vrot.slane %v1160, 5
      %v1163 = vsel %vm899, %v1158, %v1162
      %v1165 = vshrl.u32 %v874, 16
      %v1167 = vrot.slane %v1165, 4
      %v1168 = vshll.u32 %v874, 16
      %v1170 = vrot.slane %v1168, 5
      %v1171 = vor.u32 %v1167, %v1170
      %v1172 = vrot.slane %v1171, 4
      %v1174 = vshll.u32 %v875, 16
      %v1176 = vrot.slane %v1174, 5
      %v1177 = vsel %vm899, %v1172, %v1176
      %v1178 = vshrl.u32 %v875, 16
      %v1180 = vrot.slane %v1178, 4
      %v1181 = vor.u32 %v1180, %v1176
      %v1182 = vrot.slane %v1181, 4
      %v1184 = vshll.u32 %v876, 16
      %v1186 = vrot.slane %v1184, 5
      %v1187 = vsel %vm899, %v1182, %v1186
      %v1189 = vshrl.u32 %v877, 16
      %v1191 = vrot.slane %v1189, 4
      %v1192 = vshll.u32 %v877, 16
      %v1194 = vrot.slane %v1192, 5
      %v1195 = vor.u32 %v1191, %v1194
      %v1196 = vrot.slane %v1195, 4
      %v1198 = vshll.u32 %v878, 16
      %v1200 = vrot.slane %v1198, 5
      %v1201 = vsel %vm899, %v1196, %v1200
      %v1202 = vshrl.u32 %v878, 16
      %v1204 = vrot.slane %v1202, 4
      %v1205 = vor.u32 %v1204, %v1200
      %v1206 = vrot.slane %v1205, 4
      %v1208 = vshll.u32 %v879, 16
      %v1210 = vrot.slane %v1208, 5
      %v1211 = vsel %vm899, %v1206, %v1210
      %v1213 = vshrl.u32 %v880, 16
      %v1215 = vrot.slane %v1213, 4
      %v1216 = vshll.u32 %v880, 16
      %v1218 = vrot.slane %v1216, 5
      %v1219 = vor.u32 %v1215, %v1218
      %v1220 = vrot.slane %v1219, 4
      %v1222 = vshll.u32 %v881, 16
      %v1224 = vrot.slane %v1222, 5
      %v1225 = vsel %vm899, %v1220, %v1224
      %v1226 = vshrl.u32 %v881, 16
      %v1228 = vrot.slane %v1226, 4
      %v1229 = vor.u32 %v1228, %v1224
      %v1230 = vrot.slane %v1229, 4
      %v1232 = vshll.u32 %v882, 16
      %v1234 = vrot.slane %v1232, 5
      %v1235 = vsel %vm899, %v1230, %v1234
      %v1237 = vshrl.u32 %v883, 16
      %v1239 = vrot.slane %v1237, 4
      %v1240 = vshll.u32 %v883, 16
      %v1242 = vrot.slane %v1240, 5
      %v1243 = vor.u32 %v1239, %v1242
      %v1244 = vrot.slane %v1243, 4
      %v1246 = vshll.u32 %v884, 16
      %v1248 = vrot.slane %v1246, 5
      %v1249 = vsel %vm899, %v1244, %v1248
      %v1250 = vshrl.u32 %v884, 16
      %v1252 = vrot.slane %v1250, 4
      %v1253 = vor.u32 %v1252, %v1248
      %v1254 = vrot.slane %v1253, 4
      %v1256 = vshll.u32 %v885, 16
      %v1258 = vrot.slane %v1256, 5
      %v1259 = vsel %vm899, %v1254, %v1258
      %v1261 = vshrl.u32 %v886, 16
      %v1263 = vrot.slane %v1261, 4
      %v1264 = vshll.u32 %v886, 16
      %v1266 = vrot.slane %v1264, 5
      %v1267 = vor.u32 %v1263, %v1266
      %v1268 = vrot.slane %v1267, 4
      %v1270 = vshll.u32 %v887, 16
      %v1272 = vrot.slane %v1270, 5
      %v1273 = vsel %vm899, %v1268, %v1272
      %v1274 = vshrl.u32 %v887, 16
      %v1276 = vrot.slane %v1274, 4
      %v1277 = vor.u32 %v1276, %v1272
      %v1278 = vrot.slane %v1277, 4
      %v1280 = vshll.u32 %v888, 16
      %v1282 = vrot.slane %v1280, 5
      %v1283 = vsel %vm899, %v1278, %v1282
      %v1284 = vunpack.c.l.b16 %v913
      %v1285 = vunpack.c.l.b16 %v923
      %v1286 = vunpack.c.l.b16 %v937
      %v1287 = vunpack.c.l.b16 %v947
      %v1288 = vunpack.c.l.b16 %v961
      %v1289 = vunpack.c.l.b16 %v971
      %v1290 = vunpack.c.l.b16 %v985
      %v1291 = vunpack.c.l.b16 %v995
      %v1292 = vunpack.c.l.b16 %v1009
      %v1293 = vunpack.c.l.b16 %v1019
      %v1294 = vunpack.c.l.b16 %v1033
      %v1295 = vunpack.c.l.b16 %v1043
      %v1296 = vunpack.c.l.b16 %v1057
      %v1297 = vunpack.c.l.b16 %v1067
      %v1298 = vunpack.c.l.b16 %v1081
      %v1299 = vunpack.c.l.b16 %v1091
      %v1300 = vunpack.c.l.b16 %v1105
      %v1301 = vunpack.c.l.b16 %v1115
      %v1302 = vunpack.c.l.b16 %v1129
      %v1303 = vunpack.c.l.b16 %v1139
      %v1304 = vunpack.c.l.b16 %v1153
      %v1305 = vunpack.c.l.b16 %v1163
      %v1306 = vunpack.c.l.b16 %v1177
      %v1307 = vunpack.c.l.b16 %v1187
      %v1308 = vunpack.c.l.b16 %v1201
      %v1309 = vunpack.c.l.b16 %v1211
      %v1310 = vunpack.c.l.b16 %v1225
      %v1311 = vunpack.c.l.b16 %v1235
      %v1312 = vunpack.c.l.b16 %v1249
      %v1313 = vunpack.c.l.b16 %v1259
      %v1314 = vunpack.c.l.b16 %v1273
      %v1315 = vunpack.c.l.b16 %v1283
      %v1316 = vpack.c.b16 %v1285, %v1284
      %v1317 = vpack.c.b16 %v1287, %v1286
      %v1318 = vpack.c.b16 %v1289, %v1288
      %v1319 = vpack.c.b16 %v1291, %v1290
      %v1320 = vpack.c.b16 %v1293, %v1292
      %v1321 = vpack.c.b16 %v1295, %v1294
      %v1322 = vpack.c.b16 %v1297, %v1296
      %v1323 = vpack.c.b16 %v1299, %v1298
      %v1324 = vpack.c.b16 %v1301, %v1300
      %v1325 = vpack.c.b16 %v1303, %v1302
      %v1326 = vpack.c.b16 %v1305, %v1304
      %v1327 = vpack.c.b16 %v1307, %v1306
      %v1328 = vpack.c.b16 %v1309, %v1308
      %v1329 = vpack.c.b16 %v1311, %v1310
      %v1330 = vpack.c.b16 %v1313, %v1312
      %v1331 = vpack.c.b16 %v1315, %v1314
      %v1333 = vunpack.c.l.b16 %v896
      %v1334 = vpack.c.b16 %v1333, %v1333
      %v1335 = vrot.slane %v1334, 2
      %vm1336 = vcmask 31744
      %v1338 = vsel %vm1336, %v1316, 0
      %v1341 = vsel %vm1336, %v1317, 0
      %v1344 = vsel %vm1336, %v1318, 0
      %v1347 = vsel %vm1336, %v1319, 0
      %v1350 = vsel %vm1336, %v1320, 0
      %v1353 = vsel %vm1336, %v1321, 0
      %v1356 = vsel %vm1336, %v1322, 0
      %v1359 = vsel %vm1336, %v1323, 0
      %v1362 = vsel %vm1336, %v1324, 0
      %v1365 = vsel %vm1336, %v1325, 0
      %v1368 = vsel %vm1336, %v1326, 0
      %v1371 = vsel %vm1336, %v1327, 0
      %v1374 = vsel %vm1336, %v1328, 0
      %v1377 = vsel %vm1336, %v1329, 0
      %v1380 = vsel %vm1336, %v1330, 0
      %v1383 = vsel %vm1336, %v1331, 0
      %vm1385 = vcmask 1041408
      %v1387 = vsel %vm1385, %v1335, 0
      %1389 = vmatpush.bf16.msra.mxu0 0
      %1390 = vmatpush.bf16.msra.mxu0 0
      %1391 = vmatpush.bf16.msra.mxu0 0
      %1392 = vmatpush.bf16.msra.mxu0 0
      %1393 = vmatpush.bf16.msra.mxu0 0
      %1394 = vmatpush.bf16.msra.mxu0 0
      %1395 = vmatpush.bf16.msra.mxu0 0
      %1396 = vmatpush.bf16.msra.mxu0 %v1387
      %1397 = vmatmul.bf16.gmra.mxu0 %v1338
      %v1398 = vpop.f32.mrf.mxu0
      %v1399 = vadd.f32 0.0, %v1398
      %v1400 = vpop.f32.mrf.mxu0
      %v1401 = vadd.f32 0.0, %v1400
      %1402 = vmatmul.bf16.gmra.mxu0 %v1341
      %v1403 = vpop.f32.mrf.mxu0
      %v1404 = vadd.f32 0.0, %v1403
      %v1405 = vpop.f32.mrf.mxu0
      %v1406 = vadd.f32 0.0, %v1405
      %1407 = vmatmul.bf16.gmra.mxu0 %v1344
      %v1408 = vpop.f32.mrf.mxu0
      %v1409 = vadd.f32 0.0, %v1408
      %v1410 = vpop.f32.mrf.mxu0
      %v1411 = vadd.f32 0.0, %v1410
      %1412 = vmatmul.bf16.gmra.mxu0 %v1347
      %v1413 = vpop.f32.mrf.mxu0
      %v1414 = vadd.f32 0.0, %v1413
      %v1415 = vpop.f32.mrf.mxu0
      %v1416 = vadd.f32 0.0, %v1415
      %1417 = vmatmul.bf16.gmra.mxu0 %v1350
      %v1418 = vpop.f32.mrf.mxu0
      %v1419 = vadd.f32 0.0, %v1418
      %v1420 = vpop.f32.mrf.mxu0
      %v1421 = vadd.f32 0.0, %v1420
      %1422 = vmatmul.bf16.gmra.mxu0 %v1353
      %v1423 = vpop.f32.mrf.mxu0
      %v1424 = vadd.f32 0.0, %v1423
      %v1425 = vpop.f32.mrf.mxu0
      %v1426 = vadd.f32 0.0, %v1425
      %1427 = vmatmul.bf16.gmra.mxu0 %v1356
      %v1428 = vpop.f32.mrf.mxu0
      %v1429 = vadd.f32 0.0, %v1428
      %v1430 = vpop.f32.mrf.mxu0
      %v1431 = vadd.f32 0.0, %v1430
      %1432 = vmatmul.bf16.gmra.mxu0 %v1359
      %v1433 = vpop.f32.mrf.mxu0
      %v1434 = vadd.f32 0.0, %v1433
      %v1435 = vpop.f32.mrf.mxu0
      %v1436 = vadd.f32 0.0, %v1435
      %1437 = vmatmul.bf16.gmra.mxu0 %v1362
      %v1438 = vpop.f32.mrf.mxu0
      %v1439 = vadd.f32 0.0, %v1438
      %v1440 = vpop.f32.mrf.mxu0
      %v1441 = vadd.f32 0.0, %v1440
      %1442 = vmatmul.bf16.gmra.mxu0 %v1365
      %v1443 = vpop.f32.mrf.mxu0
      %v1444 = vadd.f32 0.0, %v1443
      %v1445 = vpop.f32.mrf.mxu0
      %v1446 = vadd.f32 0.0, %v1445
      %1447 = vmatmul.bf16.gmra.mxu0 %v1368
      %v1448 = vpop.f32.mrf.mxu0
      %v1449 = vadd.f32 0.0, %v1448
      %v1450 = vpop.f32.mrf.mxu0
      %v1451 = vadd.f32 0.0, %v1450
      %1452 = vmatmul.bf16.gmra.mxu0 %v1371
      %v1453 = vpop.f32.mrf.mxu0
      %v1454 = vadd.f32 0.0, %v1453
      %v1455 = vpop.f32.mrf.mxu0
      %v1456 = vadd.f32 0.0, %v1455
      %1457 = vmatmul.bf16.gmra.mxu0 %v1374
      %v1458 = vpop.f32.mrf.mxu0
      %v1459 = vadd.f32 0.0, %v1458
      %v1460 = vpop.f32.mrf.mxu0
      %v1461 = vadd.f32 0.0, %v1460
      %1462 = vmatmul.bf16.gmra.mxu0 %v1377
      %v1463 = vpop.f32.mrf.mxu0
      %v1464 = vadd.f32 0.0, %v1463
      %v1465 = vpop.f32.mrf.mxu0
      %v1466 = vadd.f32 0.0, %v1465
      %1467 = vmatmul.bf16.gmra.mxu0 %v1380
      %v1468 = vpop.f32.mrf.mxu0
      %v1469 = vadd.f32 0.0, %v1468
      %v1470 = vpop.f32.mrf.mxu0
      %v1471 = vadd.f32 0.0, %v1470
      %1472 = vmatmul.bf16.gmra.mxu0 %v1383
      %v1473 = vpop.f32.mrf.mxu0
      %v1474 = vadd.f32 0.0, %v1473
      %v1475 = vpop.f32.mrf.mxu0
      %v1476 = vadd.f32 0.0, %v1475
      %1477 = vdwg.mxu0
      %v1510 = vunpack.c.l.b16 %v841
      %v1511 = vunpack.c.l.b16 %v842
      %v1512 = vunpack.c.l.b16 %v844
      %v1513 = vunpack.c.l.b16 %v845
      %v1514 = vunpack.c.l.b16 %v847
      %v1515 = vunpack.c.l.b16 %v848
      %v1516 = vunpack.c.l.b16 %v850
      %v1517 = vunpack.c.l.b16 %v851
      %v1518 = vunpack.c.l.b16 %v853
      %v1519 = vunpack.c.l.b16 %v854
      %v1520 = vunpack.c.l.b16 %v856
      %v1521 = vunpack.c.l.b16 %v857
      %v1522 = vunpack.c.l.b16 %v859
      %v1523 = vunpack.c.l.b16 %v860
      %v1524 = vunpack.c.l.b16 %v862
      %v1525 = vunpack.c.l.b16 %v863
      %v1526 = vunpack.c.l.b16 %v865
      %v1527 = vunpack.c.l.b16 %v866
      %v1528 = vunpack.c.l.b16 %v868
      %v1529 = vunpack.c.l.b16 %v869
      %v1530 = vunpack.c.l.b16 %v871
      %v1531 = vunpack.c.l.b16 %v872
      %v1532 = vunpack.c.l.b16 %v874
      %v1533 = vunpack.c.l.b16 %v875
      %v1534 = vunpack.c.l.b16 %v877
      %v1535 = vunpack.c.l.b16 %v878
      %v1536 = vunpack.c.l.b16 %v880
      %v1537 = vunpack.c.l.b16 %v881
      %v1538 = vunpack.c.l.b16 %v883
      %v1539 = vunpack.c.l.b16 %v884
      %v1540 = vunpack.c.l.b16 %v886
      %v1541 = vunpack.c.l.b16 %v887
      %v1542 = vpack.c.b16 %v1511, %v1510
      %v1543 = vpack.c.b16 %v1513, %v1512
      %v1544 = vpack.c.b16 %v1515, %v1514
      %v1545 = vpack.c.b16 %v1517, %v1516
      %v1546 = vpack.c.b16 %v1519, %v1518
      %v1547 = vpack.c.b16 %v1521, %v1520
      %v1548 = vpack.c.b16 %v1523, %v1522
      %v1549 = vpack.c.b16 %v1525, %v1524
      %v1550 = vpack.c.b16 %v1527, %v1526
      %v1551 = vpack.c.b16 %v1529, %v1528
      %v1552 = vpack.c.b16 %v1531, %v1530
      %v1553 = vpack.c.b16 %v1533, %v1532
      %v1554 = vpack.c.b16 %v1535, %v1534
      %v1555 = vpack.c.b16 %v1537, %v1536
      %v1556 = vpack.c.b16 %v1539, %v1538
      %v1557 = vpack.c.b16 %v1541, %v1540
      %v1559 = vsel %vm1336, %v1542, 0
      %v1562 = vsel %vm1336, %v1543, 0
      %v1565 = vsel %vm1336, %v1544, 0
      %v1568 = vsel %vm1336, %v1545, 0
      %v1571 = vsel %vm1336, %v1546, 0
      %v1574 = vsel %vm1336, %v1547, 0
      %v1577 = vsel %vm1336, %v1548, 0
      %v1580 = vsel %vm1336, %v1549, 0
      %v1583 = vsel %vm1336, %v1550, 0
      %v1586 = vsel %vm1336, %v1551, 0
      %v1589 = vsel %vm1336, %v1552, 0
      %v1592 = vsel %vm1336, %v1553, 0
      %v1595 = vsel %vm1336, %v1554, 0
      %v1598 = vsel %vm1336, %v1555, 0
      %v1601 = vsel %vm1336, %v1556, 0
      %v1604 = vsel %vm1336, %v1557, 0
      %v1607 = vsel %vm1385, %v895, 0
      %1609 = vmatpush.bf16.msra.mxu0 0
      %1610 = vmatpush.bf16.msra.mxu0 0
      %1611 = vmatpush.bf16.msra.mxu0 0
      %1612 = vmatpush.bf16.msra.mxu0 0
      %1613 = vmatpush.bf16.msra.mxu0 0
      %1614 = vmatpush.bf16.msra.mxu0 0
      %1615 = vmatpush.bf16.msra.mxu0 0
      %1616 = vmatpush.bf16.msra.mxu0 %v1607
      %1617 = vmatmul.bf16.gmra.mxu0 %v1559
      %v1618 = vpop.f32.mrf.mxu0
      %v1619 = vadd.f32 %v1399, %v1618
      %v1620 = vpop.f32.mrf.mxu0
      %v1621 = vadd.f32 %v1401, %v1620
      %1622 = vmatmul.bf16.gmra.mxu0 %v1562
      %v1623 = vpop.f32.mrf.mxu0
      %v1624 = vadd.f32 %v1404, %v1623
      %v1625 = vpop.f32.mrf.mxu0
      %v1626 = vadd.f32 %v1406, %v1625
      %1627 = vmatmul.bf16.gmra.mxu0 %v1565
      %v1628 = vpop.f32.mrf.mxu0
      %v1629 = vadd.f32 %v1409, %v1628
      %v1630 = vpop.f32.mrf.mxu0
      %v1631 = vadd.f32 %v1411, %v1630
      %1632 = vmatmul.bf16.gmra.mxu0 %v1568
      %v1633 = vpop.f32.mrf.mxu0
      %v1634 = vadd.f32 %v1414, %v1633
      %v1635 = vpop.f32.mrf.mxu0
      %v1636 = vadd.f32 %v1416, %v1635
      %1637 = vmatmul.bf16.gmra.mxu0 %v1571
      %v1638 = vpop.f32.mrf.mxu0
      %v1639 = vadd.f32 %v1419, %v1638
      %v1640 = vpop.f32.mrf.mxu0
      %v1641 = vadd.f32 %v1421, %v1640
      %1642 = vmatmul.bf16.gmra.mxu0 %v1574
      %v1643 = vpop.f32.mrf.mxu0
      %v1644 = vadd.f32 %v1424, %v1643
      %v1645 = vpop.f32.mrf.mxu0
      %v1646 = vadd.f32 %v1426, %v1645
      %1647 = vmatmul.bf16.gmra.mxu0 %v1577
      %v1648 = vpop.f32.mrf.mxu0
      %v1649 = vadd.f32 %v1429, %v1648
      %v1650 = vpop.f32.mrf.mxu0
      %v1651 = vadd.f32 %v1431, %v1650
      %1652 = vmatmul.bf16.gmra.mxu0 %v1580
      %v1653 = vpop.f32.mrf.mxu0
      %v1654 = vadd.f32 %v1434, %v1653
      %v1655 = vpop.f32.mrf.mxu0
      %v1656 = vadd.f32 %v1436, %v1655
      %1657 = vmatmul.bf16.gmra.mxu0 %v1583
      %v1658 = vpop.f32.mrf.mxu0
      %v1659 = vadd.f32 %v1439, %v1658
      %v1660 = vpop.f32.mrf.mxu0
      %v1661 = vadd.f32 %v1441, %v1660
      %1662 = vmatmul.bf16.gmra.mxu0 %v1586
      %v1663 = vpop.f32.mrf.mxu0
      %v1664 = vadd.f32 %v1444, %v1663
      %v1665 = vpop.f32.mrf.mxu0
      %v1666 = vadd.f32 %v1446, %v1665
      %1667 = vmatmul.bf16.gmra.mxu0 %v1589
      %v1668 = vpop.f32.mrf.mxu0
      %v1669 = vadd.f32 %v1449, %v1668
      %v1670 = vpop.f32.mrf.mxu0
      %v1671 = vadd.f32 %v1451, %v1670
      %1672 = vmatmul.bf16.gmra.mxu0 %v1592
      %v1673 = vpop.f32.mrf.mxu0
      %v1674 = vadd.f32 %v1454, %v1673
      %v1675 = vpop.f32.mrf.mxu0
      %v1676 = vadd.f32 %v1456, %v1675
      %1677 = vmatmul.bf16.gmra.mxu0 %v1595
      %v1678 = vpop.f32.mrf.mxu0
      %v1679 = vadd.f32 %v1459, %v1678
      %v1680 = vpop.f32.mrf.mxu0
      %v1681 = vadd.f32 %v1461, %v1680
      %1682 = vmatmul.bf16.gmra.mxu0 %v1598
      %v1683 = vpop.f32.mrf.mxu0
      %v1684 = vadd.f32 %v1464, %v1683
      %v1685 = vpop.f32.mrf.mxu0
      %v1686 = vadd.f32 %v1466, %v1685
      %1687 = vmatmul.bf16.gmra.mxu0 %v1601
      %v1688 = vpop.f32.mrf.mxu0
      %v1689 = vadd.f32 %v1469, %v1688
      %v1690 = vpop.f32.mrf.mxu0
      %v1691 = vadd.f32 %v1471, %v1690
      %1692 = vmatmul.bf16.gmra.mxu0 %v1604
      %v1693 = vpop.f32.mrf.mxu0
      %v1694 = vadd.f32 %v1474, %v1693
      %v1695 = vpop.f32.mrf.mxu0
      %v1696 = vadd.f32 %v1476, %v1695
      %1697 = vdwg.mxu0
      %v1698 = vld [vmem:[%s1 + $0x4] sm:$0x3]
      %vm1715 = vcmask 1042432
      %vm1716 = vcmask 1046532
      %vm1717 = vmor %vm1715, %vm1716
      %v1718 = vrot.slane %v841, 5
      %v1719 = vrot.slane %v1718, 4
      %v1720 = vrot.slane %v842, 5
      %v1721 = vsel %vm1717, %v1719, %v1720
      %v1722 = vrot.slane %v1720, 4
      %v1723 = vrot.slane %v843, 5
      %v1724 = vsel %vm1717, %v1722, %v1723
      %v1725 = vrot.slane %v844, 5
      %v1726 = vrot.slane %v1725, 4
      %v1727 = vrot.slane %v845, 5
      %v1728 = vsel %vm1717, %v1726, %v1727
      %v1729 = vrot.slane %v1727, 4
      %v1730 = vrot.slane %v846, 5
      %v1731 = vsel %vm1717, %v1729, %v1730
      %v1732 = vrot.slane %v847, 5
      %v1733 = vrot.slane %v1732, 4
      %v1734 = vrot.slane %v848, 5
      %v1735 = vsel %vm1717, %v1733, %v1734
      %v1736 = vrot.slane %v1734, 4
      %v1737 = vrot.slane %v849, 5
      %v1738 = vsel %vm1717, %v1736, %v1737
      %v1739 = vrot.slane %v850, 5
      %v1740 = vrot.slane %v1739, 4
      %v1741 = vrot.slane %v851, 5
      %v1742 = vsel %vm1717, %v1740, %v1741
      %v1743 = vrot.slane %v1741, 4
      %v1744 = vrot.slane %v852, 5
      %v1745 = vsel %vm1717, %v1743, %v1744
      %v1746 = vrot.slane %v853, 5
      %v1747 = vrot.slane %v1746, 4
      %v1748 = vrot.slane %v854, 5
      %v1749 = vsel %vm1717, %v1747, %v1748
      %v1750 = vrot.slane %v1748, 4
      %v1751 = vrot.slane %v855, 5
      %v1752 = vsel %vm1717, %v1750, %v1751
      %v1753 = vrot.slane %v856, 5
      %v1754 = vrot.slane %v1753, 4
      %v1755 = vrot.slane %v857, 5
      %v1756 = vsel %vm1717, %v1754, %v1755
      %v1757 = vrot.slane %v1755, 4
      %v1758 = vrot.slane %v858, 5
      %v1759 = vsel %vm1717, %v1757, %v1758
      %v1760 = vrot.slane %v859, 5
      %v1761 = vrot.slane %v1760, 4
      %v1762 = vrot.slane %v860, 5
      %v1763 = vsel %vm1717, %v1761, %v1762
      %v1764 = vrot.slane %v1762, 4
      %v1765 = vrot.slane %v861, 5
      %v1766 = vsel %vm1717, %v1764, %v1765
      %v1767 = vrot.slane %v862, 5
      %v1768 = vrot.slane %v1767, 4
      %v1769 = vrot.slane %v863, 5
      %v1770 = vsel %vm1717, %v1768, %v1769
      %v1771 = vrot.slane %v1769, 4
      %v1772 = vrot.slane %v864, 5
      %v1773 = vsel %vm1717, %v1771, %v1772
      %v1774 = vrot.slane %v865, 5
      %v1775 = vrot.slane %v1774, 4
      %v1776 = vrot.slane %v866, 5
      %v1777 = vsel %vm1717, %v1775, %v1776
      %v1778 = vrot.slane %v1776, 4
      %v1779 = vrot.slane %v867, 5
      %v1780 = vsel %vm1717, %v1778, %v1779
      %v1781 = vrot.slane %v868, 5
      %v1782 = vrot.slane %v1781, 4
      %v1783 = vrot.slane %v869, 5
      %v1784 = vsel %vm1717, %v1782, %v1783
      %v1785 = vrot.slane %v1783, 4
      %v1786 = vrot.slane %v870, 5
      %v1787 = vsel %vm1717, %v1785, %v1786
      %v1788 = vrot.slane %v871, 5
      %v1789 = vrot.slane %v1788, 4
      %v1790 = vrot.slane %v872, 5
      %v1791 = vsel %vm1717, %v1789, %v1790
      %v1792 = vrot.slane %v1790, 4
      %v1793 = vrot.slane %v873, 5
      %v1794 = vsel %vm1717, %v1792, %v1793
      %v1795 = vrot.slane %v874, 5
      %v1796 = vrot.slane %v1795, 4
      %v1797 = vrot.slane %v875, 5
      %v1798 = vsel %vm1717, %v1796, %v1797
      %v1799 = vrot.slane %v1797, 4
      %v1800 = vrot.slane %v876, 5
      %v1801 = vsel %vm1717, %v1799, %v1800
      %v1802 = vrot.slane %v877, 5
      %v1803 = vrot.slane %v1802, 4
      %v1804 = vrot.slane %v878, 5
      %v1805 = vsel %vm1717, %v1803, %v1804
      %v1806 = vrot.slane %v1804, 4
      %v1807 = vrot.slane %v879, 5
      %v1808 = vsel %vm1717, %v1806, %v1807
      %v1809 = vrot.slane %v880, 5
      %v1810 = vrot.slane %v1809, 4
      %v1811 = vrot.slane %v881, 5
      %v1812 = vsel %vm1717, %v1810, %v1811
      %v1813 = vrot.slane %v1811, 4
      %v1814 = vrot.slane %v882, 5
      %v1815 = vsel %vm1717, %v1813, %v1814
      %v1816 = vrot.slane %v883, 5
      %v1817 = vrot.slane %v1816, 4
      %v1818 = vrot.slane %v884, 5
      %v1819 = vsel %vm1717, %v1817, %v1818
      %v1820 = vrot.slane %v1818, 4
      %v1821 = vrot.slane %v885, 5
      %v1822 = vsel %vm1717, %v1820, %v1821
      %v1823 = vrot.slane %v886, 5
      %v1824 = vrot.slane %v1823, 4
      %v1825 = vrot.slane %v887, 5
      %v1826 = vsel %vm1717, %v1824, %v1825
      %v1827 = vrot.slane %v1825, 4
      %v1828 = vrot.slane %v888, 5
      %v1829 = vsel %vm1717, %v1827, %v1828
      %v1830 = vunpack.c.l.b16 %v1721
      %v1831 = vunpack.c.l.b16 %v1724
      %v1832 = vunpack.c.l.b16 %v1728
      %v1833 = vunpack.c.l.b16 %v1731
      %v1834 = vunpack.c.l.b16 %v1735
      %v1835 = vunpack.c.l.b16 %v1738
      %v1836 = vunpack.c.l.b16 %v1742
      %v1837 = vunpack.c.l.b16 %v1745
      %v1838 = vunpack.c.l.b16 %v1749
      %v1839 = vunpack.c.l.b16 %v1752
      %v1840 = vunpack.c.l.b16 %v1756
      %v1841 = vunpack.c.l.b16 %v1759
      %v1842 = vunpack.c.l.b16 %v1763
      %v1843 = vunpack.c.l.b16 %v1766
      %v1844 = vunpack.c.l.b16 %v1770
      %v1845 = vunpack.c.l.b16 %v1773
      %v1846 = vunpack.c.l.b16 %v1777
      %v1847 = vunpack.c.l.b16 %v1780
      %v1848 = vunpack.c.l.b16 %v1784
      %v1849 = vunpack.c.l.b16 %v1787
      %v1850 = vunpack.c.l.b16 %v1791
      %v1851 = vunpack.c.l.b16 %v1794
      %v1852 = vunpack.c.l.b16 %v1798
      %v1853 = vunpack.c.l.b16 %v1801
      %v1854 = vunpack.c.l.b16 %v1805
      %v1855 = vunpack.c.l.b16 %v1808
      %v1856 = vunpack.c.l.b16 %v1812
      %v1857 = vunpack.c.l.b16 %v1815
      %v1858 = vunpack.c.l.b16 %v1819
      %v1859 = vunpack.c.l.b16 %v1822
      %v1860 = vunpack.c.l.b16 %v1826
      %v1861 = vunpack.c.l.b16 %v1829
      %v1862 = vpack.c.b16 %v1831, %v1830
      %v1863 = vpack.c.b16 %v1833, %v1832
      %v1864 = vpack.c.b16 %v1835, %v1834
      %v1865 = vpack.c.b16 %v1837, %v1836
      %v1866 = vpack.c.b16 %v1839, %v1838
      %v1867 = vpack.c.b16 %v1841, %v1840
      %v1868 = vpack.c.b16 %v1843, %v1842
      %v1869 = vpack.c.b16 %v1845, %v1844
      %v1870 = vpack.c.b16 %v1847, %v1846
      %v1871 = vpack.c.b16 %v1849, %v1848
      %v1872 = vpack.c.b16 %v1851, %v1850
      %v1873 = vpack.c.b16 %v1853, %v1852
      %v1874 = vpack.c.b16 %v1855, %v1854
      %v1875 = vpack.c.b16 %v1857, %v1856
      %v1876 = vpack.c.b16 %v1859, %v1858
      %v1877 = vpack.c.b16 %v1861, %v1860
      %v1879 = vsel %vm1336, %v1862, 0
      %v1882 = vsel %vm1336, %v1863, 0
      %v1885 = vsel %vm1336, %v1864, 0
      %v1888 = vsel %vm1336, %v1865, 0
      %v1891 = vsel %vm1336, %v1866, 0
      %v1894 = vsel %vm1336, %v1867, 0
      %v1897 = vsel %vm1336, %v1868, 0
      %v1900 = vsel %vm1336, %v1869, 0
      %v1903 = vsel %vm1336, %v1870, 0
      %v1906 = vsel %vm1336, %v1871, 0
      %v1909 = vsel %vm1336, %v1872, 0
      %v1912 = vsel %vm1336, %v1873, 0
      %v1915 = vsel %vm1336, %v1874, 0
      %v1918 = vsel %vm1336, %v1875, 0
      %v1921 = vsel %vm1336, %v1876, 0
      %v1924 = vsel %vm1336, %v1877, 0
      %v1927 = vsel %vm1385, %v1698, 0
      %1929 = vmatpush.bf16.msra.mxu0 0
      %1930 = vmatpush.bf16.msra.mxu0 0
      %1931 = vmatpush.bf16.msra.mxu0 0
      %1932 = vmatpush.bf16.msra.mxu0 0
      %1933 = vmatpush.bf16.msra.mxu0 0
      %1934 = vmatpush.bf16.msra.mxu0 0
      %1935 = vmatpush.bf16.msra.mxu0 0
      %1936 = vmatpush.bf16.msra.mxu0 %v1927
      %1937 = vmatmul.bf16.gmra.mxu0 %v1879
      %v1938 = vpop.f32.mrf.mxu0
      %v1939 = vadd.f32 0.0, %v1938
      %v1940 = vpop.f32.mrf.mxu0
      %v1941 = vadd.f32 0.0, %v1940
      %1942 = vmatmul.bf16.gmra.mxu0 %v1882
      %v1943 = vpop.f32.mrf.mxu0
      %v1944 = vadd.f32 0.0, %v1943
      %v1945 = vpop.f32.mrf.mxu0
      %v1946 = vadd.f32 0.0, %v1945
      %1947 = vmatmul.bf16.gmra.mxu0 %v1885
      %v1948 = vpop.f32.mrf.mxu0
      %v1949 = vadd.f32 0.0, %v1948
      %v1950 = vpop.f32.mrf.mxu0
      %v1951 = vadd.f32 0.0, %v1950
      %1952 = vmatmul.bf16.gmra.mxu0 %v1888
      %v1953 = vpop.f32.mrf.mxu0
      %v1954 = vadd.f32 0.0, %v1953
      %v1955 = vpop.f32.mrf.mxu0
      %v1956 = vadd.f32 0.0, %v1955
      %1957 = vmatmul.bf16.gmra.mxu0 %v1891
      %v1958 = vpop.f32.mrf.mxu0
      %v1959 = vadd.f32 0.0, %v1958
      %v1960 = vpop.f32.mrf.mxu0
      %v1961 = vadd.f32 0.0, %v1960
      %1962 = vmatmul.bf16.gmra.mxu0 %v1894
      %v1963 = vpop.f32.mrf.mxu0
      %v1964 = vadd.f32 0.0, %v1963
      %v1965 = vpop.f32.mrf.mxu0
      %v1966 = vadd.f32 0.0, %v1965
      %1967 = vmatmul.bf16.gmra.mxu0 %v1897
      %v1968 = vpop.f32.mrf.mxu0
      %v1969 = vadd.f32 0.0, %v1968
      %v1970 = vpop.f32.mrf.mxu0
      %v1971 = vadd.f32 0.0, %v1970
      %1972 = vmatmul.bf16.gmra.mxu0 %v1900
      %v1973 = vpop.f32.mrf.mxu0
      %v1974 = vadd.f32 0.0, %v1973
      %v1975 = vpop.f32.mrf.mxu0
      %v1976 = vadd.f32 0.0, %v1975
      %1977 = vmatmul.bf16.gmra.mxu0 %v1903
      %v1978 = vpop.f32.mrf.mxu0
      %v1979 = vadd.f32 0.0, %v1978
      %v1980 = vpop.f32.mrf.mxu0
      %v1981 = vadd.f32 0.0, %v1980
      %1982 = vmatmul.bf16.gmra.mxu0 %v1906
      %v1983 = vpop.f32.mrf.mxu0
      %v1984 = vadd.f32 0.0, %v1983
      %v1985 = vpop.f32.mrf.mxu0
      %v1986 = vadd.f32 0.0, %v1985
      %1987 = vmatmul.bf16.gmra.mxu0 %v1909
      %v1988 = vpop.f32.mrf.mxu0
      %v1989 = vadd.f32 0.0, %v1988
      %v1990 = vpop.f32.mrf.mxu0
      %v1991 = vadd.f32 0.0, %v1990
      %1992 = vmatmul.bf16.gmra.mxu0 %v1912
      %v1993 = vpop.f32.mrf.mxu0
      %v1994 = vadd.f32 0.0, %v1993
      %v1995 = vpop.f32.mrf.mxu0
      %v1996 = vadd.f32 0.0, %v1995
      %1997 = vmatmul.bf16.gmra.mxu0 %v1915
      %v1998 = vpop.f32.mrf.mxu0
      %v1999 = vadd.f32 0.0, %v1998
      %v2000 = vpop.f32.mrf.mxu0
      %v2001 = vadd.f32 0.0, %v2000
      %2002 = vmatmul.bf16.gmra.mxu0 %v1918
      %v2003 = vpop.f32.mrf.mxu0
      %v2004 = vadd.f32 0.0, %v2003
      %v2005 = vpop.f32.mrf.mxu0
      %v2006 = vadd.f32 0.0, %v2005
      %2007 = vmatmul.bf16.gmra.mxu0 %v1921
      %v2008 = vpop.f32.mrf.mxu0
      %v2009 = vadd.f32 0.0, %v2008
      %v2010 = vpop.f32.mrf.mxu0
      %v2011 = vadd.f32 0.0, %v2010
      %2012 = vmatmul.bf16.gmra.mxu0 %v1924
      %v2013 = vpop.f32.mrf.mxu0
      %v2014 = vadd.f32 0.0, %v2013
      %v2015 = vpop.f32.mrf.mxu0
      %v2016 = vadd.f32 0.0, %v2015
      %2017 = vdwg.mxu0
      %v2018 = vadd.f32 %v1619, %v1939
      %v2019 = vadd.f32 %v1621, %v1941
      %v2020 = vadd.f32 %v1624, %v1944
      %v2021 = vadd.f32 %v1626, %v1946
      %v2022 = vadd.f32 %v1629, %v1949
      %v2023 = vadd.f32 %v1631, %v1951
      %v2024 = vadd.f32 %v1634, %v1954
      %v2025 = vadd.f32 %v1636, %v1956
      %v2026 = vadd.f32 %v1639, %v1959
      %v2027 = vadd.f32 %v1641, %v1961
      %v2028 = vadd.f32 %v1644, %v1964
      %v2029 = vadd.f32 %v1646, %v1966
      %v2030 = vadd.f32 %v1649, %v1969
      %v2031 = vadd.f32 %v1651, %v1971
      %v2032 = vadd.f32 %v1654, %v1974
      %v2033 = vadd.f32 %v1656, %v1976
      %v2034 = vadd.f32 %v1659, %v1979
      %v2035 = vadd.f32 %v1661, %v1981
      %v2036 = vadd.f32 %v1664, %v1984
      %v2037 = vadd.f32 %v1666, %v1986
      %v2038 = vadd.f32 %v1669, %v1989
      %v2039 = vadd.f32 %v1671, %v1991
      %v2040 = vadd.f32 %v1674, %v1994
      %v2041 = vadd.f32 %v1676, %v1996
      %v2042 = vadd.f32 %v1679, %v1999
      %v2043 = vadd.f32 %v1681, %v2001
      %v2044 = vadd.f32 %v1684, %v2004
      %v2045 = vadd.f32 %v1686, %v2006
      %v2046 = vadd.f32 %v1689, %v2009
      %v2047 = vadd.f32 %v1691, %v2011
      %v2048 = vadd.f32 %v1694, %v2014
      %v2049 = vadd.f32 %v1696, %v2016
      %s2050 = scalar_lea.vmem %s1, 8
      %v2051 = vld [vmem:[%s2050] sm:$0x3]
      %v2054 = vunpack.c.l.b16 %v889
      %v2055 = vunpack.c.l.b16 %v890
      %v2056 = vpack.c.b16 %v2055, %v2054
      %v2058 = vsel %vm1336, %v2056, 0
      %v2061 = vsel %vm1385, %v2051, 0
      %2063 = vmatpush.bf16.msra.mxu0 0
      %2064 = vmatpush.bf16.msra.mxu0 0
      %2065 = vmatpush.bf16.msra.mxu0 0
      %2066 = vmatpush.bf16.msra.mxu0 0
      %2067 = vmatpush.bf16.msra.mxu0 0
      %2068 = vmatpush.bf16.msra.mxu0 0
      %2069 = vmatpush.bf16.msra.mxu0 0
      %2070 = vmatpush.bf16.msra.mxu0 %v2061
      %2071 = vmatmul.bf16.gmra.mxu0 %v1562
      %v2072 = vpop.f32.mrf.mxu0
      %v2073 = vadd.f32 0.0, %v2072
      %v2074 = vpop.f32.mrf.mxu0
      %v2075 = vadd.f32 0.0, %v2074
      %2076 = vmatmul.bf16.gmra.mxu0 %v1565
      %v2077 = vpop.f32.mrf.mxu0
      %v2078 = vadd.f32 0.0, %v2077
      %v2079 = vpop.f32.mrf.mxu0
      %v2080 = vadd.f32 0.0, %v2079
      %2081 = vmatmul.bf16.gmra.mxu0 %v1568
      %v2082 = vpop.f32.mrf.mxu0
      %v2083 = vadd.f32 0.0, %v2082
      %v2084 = vpop.f32.mrf.mxu0
      %v2085 = vadd.f32 0.0, %v2084
      %2086 = vmatmul.bf16.gmra.mxu0 %v1571
      %v2087 = vpop.f32.mrf.mxu0
      %v2088 = vadd.f32 0.0, %v2087
      %v2089 = vpop.f32.mrf.mxu0
      %v2090 = vadd.f32 0.0, %v2089
      %2091 = vmatmul.bf16.gmra.mxu0 %v1574
      %v2092 = vpop.f32.mrf.mxu0
      %v2093 = vadd.f32 0.0, %v2092
      %v2094 = vpop.f32.mrf.mxu0
      %v2095 = vadd.f32 0.0, %v2094
      %2096 = vmatmul.bf16.gmra.mxu0 %v1577
      %v2097 = vpop.f32.mrf.mxu0
      %v2098 = vadd.f32 0.0, %v2097
      %v2099 = vpop.f32.mrf.mxu0
      %v2100 = vadd.f32 0.0, %v2099
      %2101 = vmatmul.bf16.gmra.mxu0 %v1580
      %v2102 = vpop.f32.mrf.mxu0
      %v2103 = vadd.f32 0.0, %v2102
      %v2104 = vpop.f32.mrf.mxu0
      %v2105 = vadd.f32 0.0, %v2104
      %2106 = vmatmul.bf16.gmra.mxu0 %v1583
      %v2107 = vpop.f32.mrf.mxu0
      %v2108 = vadd.f32 0.0, %v2107
      %v2109 = vpop.f32.mrf.mxu0
      %v2110 = vadd.f32 0.0, %v2109
      %2111 = vmatmul.bf16.gmra.mxu0 %v1586
      %v2112 = vpop.f32.mrf.mxu0
      %v2113 = vadd.f32 0.0, %v2112
      %v2114 = vpop.f32.mrf.mxu0
      %v2115 = vadd.f32 0.0, %v2114
      %2116 = vmatmul.bf16.gmra.mxu0 %v1589
      %v2117 = vpop.f32.mrf.mxu0
      %v2118 = vadd.f32 0.0, %v2117
      %v2119 = vpop.f32.mrf.mxu0
      %v2120 = vadd.f32 0.0, %v2119
      %2121 = vmatmul.bf16.gmra.mxu0 %v1592
      %v2122 = vpop.f32.mrf.mxu0
      %v2123 = vadd.f32 0.0, %v2122
      %v2124 = vpop.f32.mrf.mxu0
      %v2125 = vadd.f32 0.0, %v2124
      %2126 = vmatmul.bf16.gmra.mxu0 %v1595
      %v2127 = vpop.f32.mrf.mxu0
      %v2128 = vadd.f32 0.0, %v2127
      %v2129 = vpop.f32.mrf.mxu0
      %v2130 = vadd.f32 0.0, %v2129
      %2131 = vmatmul.bf16.gmra.mxu0 %v1598
      %v2132 = vpop.f32.mrf.mxu0
      %v2133 = vadd.f32 0.0, %v2132
      %v2134 = vpop.f32.mrf.mxu0
      %v2135 = vadd.f32 0.0, %v2134
      %2136 = vmatmul.bf16.gmra.mxu0 %v1601
      %v2137 = vpop.f32.mrf.mxu0
      %v2138 = vadd.f32 0.0, %v2137
      %v2139 = vpop.f32.mrf.mxu0
      %v2140 = vadd.f32 0.0, %v2139
      %2141 = vmatmul.bf16.gmra.mxu0 %v1604
      %v2142 = vpop.f32.mrf.mxu0
      %v2143 = vadd.f32 0.0, %v2142
      %v2144 = vpop.f32.mrf.mxu0
      %v2145 = vadd.f32 0.0, %v2144
      %2146 = vmatmul.bf16.gmra.mxu0 %v2058
      %v2147 = vpop.f32.mrf.mxu0
      %v2148 = vadd.f32 0.0, %v2147
      %v2149 = vpop.f32.mrf.mxu0
      %v2150 = vadd.f32 0.0, %v2149
      %2151 = vdwg.mxu0
      %v2152 = vadd.f32 %v2018, %v2073
      %v2153 = vadd.f32 %v2019, %v2075
      %v2154 = vadd.f32 %v2020, %v2078
      %v2155 = vadd.f32 %v2021, %v2080
      %v2156 = vadd.f32 %v2022, %v2083
      %v2157 = vadd.f32 %v2023, %v2085
      %v2158 = vadd.f32 %v2024, %v2088
      %v2159 = vadd.f32 %v2025, %v2090
      %v2160 = vadd.f32 %v2026, %v2093
      %v2161 = vadd.f32 %v2027, %v2095
      %v2162 = vadd.f32 %v2028, %v2098
      %v2163 = vadd.f32 %v2029, %v2100
      %v2164 = vadd.f32 %v2030, %v2103
      %v2165 = vadd.f32 %v2031, %v2105
      %v2166 = vadd.f32 %v2032, %v2108
      %v2167 = vadd.f32 %v2033, %v2110
      %v2168 = vadd.f32 %v2034, %v2113
      %v2169 = vadd.f32 %v2035, %v2115
      %v2170 = vadd.f32 %v2036, %v2118
      %v2171 = vadd.f32 %v2037, %v2120
      %v2172 = vadd.f32 %v2038, %v2123
      %v2173 = vadd.f32 %v2039, %v2125
      %v2174 = vadd.f32 %v2040, %v2128
      %v2175 = vadd.f32 %v2041, %v2130
      %v2176 = vadd.f32 %v2042, %v2133
      %v2177 = vadd.f32 %v2043, %v2135
      %v2178 = vadd.f32 %v2044, %v2138
      %v2179 = vadd.f32 %v2045, %v2140
      %v2180 = vadd.f32 %v2046, %v2143
      %v2181 = vadd.f32 %v2047, %v2145
      %v2182 = vadd.f32 %v2048, %v2148
      %v2183 = vadd.f32 %v2049, %v2150
      %v2184 = vld [vmem:[%s2050] sm:$0xc]
      %v2186 = vshrl.u32 %v889, 16
      %v2188 = vrot.slane %v2186, 4
      %v2189 = vshll.u32 %v889, 16
      %v2191 = vrot.slane %v2189, 5
      %v2192 = vor.u32 %v2188, %v2191
      %v2193 = vrot.slane %v2192, 4
      %v2195 = vshll.u32 %v890, 16
      %v2197 = vrot.slane %v2195, 5
      %v2198 = vsel %vm899, %v2193, %v2197
      %v2199 = vshrl.u32 %v890, 16
      %v2201 = vrot.slane %v2199, 4
      %v2202 = vor.u32 %v2201, %v2197
      %v2203 = vrot.slane %v2202, 4
      %v2205 = vshll.u32 %v891, 16
      %v2207 = vrot.slane %v2205, 5
      %v2208 = vsel %vm899, %v2203, %v2207
      %v2209 = vunpack.c.l.b16 %v2198
      %v2210 = vunpack.c.l.b16 %v2208
      %v2211 = vpack.c.b16 %v2210, %v2209
      %v2213 = vunpack.c.l.b16 %v2184
      %v2214 = vpack.c.b16 %v2213, %v2213
      %v2215 = vrot.slane %v2214, 2
      %v2217 = vsel %vm1336, %v2211, 0
      %v2220 = vsel %vm1385, %v2215, 0
      %2222 = vmatpush.bf16.msra.mxu0 0
      %2223 = vmatpush.bf16.msra.mxu0 0
      %2224 = vmatpush.bf16.msra.mxu0 0
      %2225 = vmatpush.bf16.msra.mxu0 0
      %2226 = vmatpush.bf16.msra.mxu0 0
      %2227 = vmatpush.bf16.msra.mxu0 0
      %2228 = vmatpush.bf16.msra.mxu0 0
      %2229 = vmatpush.bf16.msra.mxu0 %v2220
      %2230 = vmatmul.bf16.gmra.mxu0 %v1341
      %v2231 = vpop.f32.mrf.mxu0
      %v2232 = vadd.f32 0.0, %v2231
      %v2233 = vpop.f32.mrf.mxu0
      %v2234 = vadd.f32 0.0, %v2233
      %2235 = vmatmul.bf16.gmra.mxu0 %v1344
      %v2236 = vpop.f32.mrf.mxu0
      %v2237 = vadd.f32 0.0, %v2236
      %v2238 = vpop.f32.mrf.mxu0
      %v2239 = vadd.f32 0.0, %v2238
      %2240 = vmatmul.bf16.gmra.mxu0 %v1347
      %v2241 = vpop.f32.mrf.mxu0
      %v2242 = vadd.f32 0.0, %v2241
      %v2243 = vpop.f32.mrf.mxu0
      %v2244 = vadd.f32 0.0, %v2243
      %2245 = vmatmul.bf16.gmra.mxu0 %v1350
      %v2246 = vpop.f32.mrf.mxu0
      %v2247 = vadd.f32 0.0, %v2246
      %v2248 = vpop.f32.mrf.mxu0
      %v2249 = vadd.f32 0.0, %v2248
      %2250 = vmatmul.bf16.gmra.mxu0 %v1353
      %v2251 = vpop.f32.mrf.mxu0
      %v2252 = vadd.f32 0.0, %v2251
      %v2253 = vpop.f32.mrf.mxu0
      %v2254 = vadd.f32 0.0, %v2253
      %2255 = vmatmul.bf16.gmra.mxu0 %v1356
      %v2256 = vpop.f32.mrf.mxu0
      %v2257 = vadd.f32 0.0, %v2256
      %v2258 = vpop.f32.mrf.mxu0
      %v2259 = vadd.f32 0.0, %v2258
      %2260 = vmatmul.bf16.gmra.mxu0 %v1359
      %v2261 = vpop.f32.mrf.mxu0
      %v2262 = vadd.f32 0.0, %v2261
      %v2263 = vpop.f32.mrf.mxu0
      %v2264 = vadd.f32 0.0, %v2263
      %2265 = vmatmul.bf16.gmra.mxu0 %v1362
      %v2266 = vpop.f32.mrf.mxu0
      %v2267 = vadd.f32 0.0, %v2266
      %v2268 = vpop.f32.mrf.mxu0
      %v2269 = vadd.f32 0.0, %v2268
      %2270 = vmatmul.bf16.gmra.mxu0 %v1365
      %v2271 = vpop.f32.mrf.mxu0
      %v2272 = vadd.f32 0.0, %v2271
      %v2273 = vpop.f32.mrf.mxu0
      %v2274 = vadd.f32 0.0, %v2273
      %2275 = vmatmul.bf16.gmra.mxu0 %v1368
      %v2276 = vpop.f32.mrf.mxu0
      %v2277 = vadd.f32 0.0, %v2276
      %v2278 = vpop.f32.mrf.mxu0
      %v2279 = vadd.f32 0.0, %v2278
      %2280 = vmatmul.bf16.gmra.mxu0 %v1371
      %v2281 = vpop.f32.mrf.mxu0
      %v2282 = vadd.f32 0.0, %v2281
      %v2283 = vpop.f32.mrf.mxu0
      %v2284 = vadd.f32 0.0, %v2283
      %2285 = vmatmul.bf16.gmra.mxu0 %v1374
      %v2286 = vpop.f32.mrf.mxu0
      %v2287 = vadd.f32 0.0, %v2286
      %v2288 = vpop.f32.mrf.mxu0
      %v2289 = vadd.f32 0.0, %v2288
      %2290 = vmatmul.bf16.gmra.mxu0 %v1377
      %v2291 = vpop.f32.mrf.mxu0
      %v2292 = vadd.f32 0.0, %v2291
      %v2293 = vpop.f32.mrf.mxu0
      %v2294 = vadd.f32 0.0, %v2293
      %2295 = vmatmul.bf16.gmra.mxu0 %v1380
      %v2296 = vpop.f32.mrf.mxu0
      %v2297 = vadd.f32 0.0, %v2296
      %v2298 = vpop.f32.mrf.mxu0
      %v2299 = vadd.f32 0.0, %v2298
      %2300 = vmatmul.bf16.gmra.mxu0 %v1383
      %v2301 = vpop.f32.mrf.mxu0
      %v2302 = vadd.f32 0.0, %v2301
      %v2303 = vpop.f32.mrf.mxu0
      %v2304 = vadd.f32 0.0, %v2303
      %2305 = vmatmul.bf16.gmra.mxu0 %v2217
      %v2306 = vpop.f32.mrf.mxu0
      %v2307 = vadd.f32 0.0, %v2306
      %v2308 = vpop.f32.mrf.mxu0
      %v2309 = vadd.f32 0.0, %v2308
      %2310 = vdwg.mxu0
      %v2311 = vadd.f32 %v2152, %v2232
      %v2312 = vadd.f32 %v2153, %v2234
      %v2313 = vadd.f32 %v2154, %v2237
      %v2314 = vadd.f32 %v2155, %v2239
      %v2315 = vadd.f32 %v2156, %v2242
      %v2316 = vadd.f32 %v2157, %v2244
      %v2317 = vadd.f32 %v2158, %v2247
      %v2318 = vadd.f32 %v2159, %v2249
      %v2319 = vadd.f32 %v2160, %v2252
      %v2320 = vadd.f32 %v2161, %v2254
      %v2321 = vadd.f32 %v2162, %v2257
      %v2322 = vadd.f32 %v2163, %v2259
      %v2323 = vadd.f32 %v2164, %v2262
      %v2324 = vadd.f32 %v2165, %v2264
      %v2325 = vadd.f32 %v2166, %v2267
      %v2326 = vadd.f32 %v2167, %v2269
      %v2327 = vadd.f32 %v2168, %v2272
      %v2328 = vadd.f32 %v2169, %v2274
      %v2329 = vadd.f32 %v2170, %v2277
      %v2330 = vadd.f32 %v2171, %v2279
      %v2331 = vadd.f32 %v2172, %v2282
      %v2332 = vadd.f32 %v2173, %v2284
      %v2333 = vadd.f32 %v2174, %v2287
      %v2334 = vadd.f32 %v2175, %v2289
      %v2335 = vadd.f32 %v2176, %v2292
      %v2336 = vadd.f32 %v2177, %v2294
      %v2337 = vadd.f32 %v2178, %v2297
      %v2338 = vadd.f32 %v2179, %v2299
      %v2339 = vadd.f32 %v2180, %v2302
      %v2340 = vadd.f32 %v2181, %v2304
      %v2341 = vadd.f32 %v2182, %v2307
      %v2342 = vadd.f32 %v2183, %v2309
      %v2343 = vld [vmem:[%s2050 + $0x4] sm:$0x3]
      %v2345 = vrot.slane %v889, 5
      %v2346 = vrot.slane %v2345, 4
      %v2347 = vrot.slane %v890, 5
      %v2348 = vsel %vm1717, %v2346, %v2347
      %v2349 = vrot.slane %v2347, 4
      %v2350 = vrot.slane %v891, 5
      %v2351 = vsel %vm1717, %v2349, %v2350
      %v2352 = vunpack.c.l.b16 %v2348
      %v2353 = vunpack.c.l.b16 %v2351
      %v2354 = vpack.c.b16 %v2353, %v2352
      %v2356 = vsel %vm1336, %v2354, 0
      %v2359 = vsel %vm1385, %v2343, 0
      %2361 = vmatpush.bf16.msra.mxu0 0
      %2362 = vmatpush.bf16.msra.mxu0 0
      %2363 = vmatpush.bf16.msra.mxu0 0
      %2364 = vmatpush.bf16.msra.mxu0 0
      %2365 = vmatpush.bf16.msra.mxu0 0
      %2366 = vmatpush.bf16.msra.mxu0 0
      %2367 = vmatpush.bf16.msra.mxu0 0
      %2368 = vmatpush.bf16.msra.mxu0 %v2359
      %2369 = vmatmul.bf16.gmra.mxu0 %v1882
      %v2370 = vpop.f32.mrf.mxu0
      %v2371 = vadd.f32 0.0, %v2370
      %v2372 = vpop.f32.mrf.mxu0
      %v2373 = vadd.f32 0.0, %v2372
      %2374 = vmatmul.bf16.gmra.mxu0 %v1885
      %v2375 = vpop.f32.mrf.mxu0
      %v2376 = vadd.f32 0.0, %v2375
      %v2377 = vpop.f32.mrf.mxu0
      %v2378 = vadd.f32 0.0, %v2377
      %2379 = vmatmul.bf16.gmra.mxu0 %v1888
      %v2380 = vpop.f32.mrf.mxu0
      %v2381 = vadd.f32 0.0, %v2380
      %v2382 = vpop.f32.mrf.mxu0
      %v2383 = vadd.f32 0.0, %v2382
      %2384 = vmatmul.bf16.gmra.mxu0 %v1891
      %v2385 = vpop.f32.mrf.mxu0
      %v2386 = vadd.f32 0.0, %v2385
      %v2387 = vpop.f32.mrf.mxu0
      %v2388 = vadd.f32 0.0, %v2387
      %2389 = vmatmul.bf16.gmra.mxu0 %v1894
      %v2390 = vpop.f32.mrf.mxu0
      %v2391 = vadd.f32 0.0, %v2390
      %v2392 = vpop.f32.mrf.mxu0
      %v2393 = vadd.f32 0.0, %v2392
      %2394 = vmatmul.bf16.gmra.mxu0 %v1897
      %v2395 = vpop.f32.mrf.mxu0
      %v2396 = vadd.f32 0.0, %v2395
      %v2397 = vpop.f32.mrf.mxu0
      %v2398 = vadd.f32 0.0, %v2397
      %2399 = vmatmul.bf16.gmra.mxu0 %v1900
      %v2400 = vpop.f32.mrf.mxu0
      %v2401 = vadd.f32 0.0, %v2400
      %v2402 = vpop.f32.mrf.mxu0
      %v2403 = vadd.f32 0.0, %v2402
      %2404 = vmatmul.bf16.gmra.mxu0 %v1903
      %v2405 = vpop.f32.mrf.mxu0
      %v2406 = vadd.f32 0.0, %v2405
      %v2407 = vpop.f32.mrf.mxu0
      %v2408 = vadd.f32 0.0, %v2407
      %2409 = vmatmul.bf16.gmra.mxu0 %v1906
      %v2410 = vpop.f32.mrf.mxu0
      %v2411 = vadd.f32 0.0, %v2410
      %v2412 = vpop.f32.mrf.mxu0
      %v2413 = vadd.f32 0.0, %v2412
      %2414 = vmatmul.bf16.gmra.mxu0 %v1909
      %v2415 = vpop.f32.mrf.mxu0
      %v2416 = vadd.f32 0.0, %v2415
      %v2417 = vpop.f32.mrf.mxu0
      %v2418 = vadd.f32 0.0, %v2417
      %2419 = vmatmul.bf16.gmra.mxu0 %v1912
      %v2420 = vpop.f32.mrf.mxu0
      %v2421 = vadd.f32 0.0, %v2420
      %v2422 = vpop.f32.mrf.mxu0
      %v2423 = vadd.f32 0.0, %v2422
      %2424 = vmatmul.bf16.gmra.mxu0 %v1915
      %v2425 = vpop.f32.mrf.mxu0
      %v2426 = vadd.f32 0.0, %v2425
      %v2427 = vpop.f32.mrf.mxu0
      %v2428 = vadd.f32 0.0, %v2427
      %2429 = vmatmul.bf16.gmra.mxu0 %v1918
      %v2430 = vpop.f32.mrf.mxu0
      %v2431 = vadd.f32 0.0, %v2430
      %v2432 = vpop.f32.mrf.mxu0
      %v2433 = vadd.f32 0.0, %v2432
      %2434 = vmatmul.bf16.gmra.mxu0 %v1921
      %v2435 = vpop.f32.mrf.mxu0
      %v2436 = vadd.f32 0.0, %v2435
      %v2437 = vpop.f32.mrf.mxu0
      %v2438 = vadd.f32 0.0, %v2437
      %2439 = vmatmul.bf16.gmra.mxu0 %v1924
      %v2440 = vpop.f32.mrf.mxu0
      %v2441 = vadd.f32 0.0, %v2440
      %v2442 = vpop.f32.mrf.mxu0
      %v2443 = vadd.f32 0.0, %v2442
      %2444 = vmatmul.bf16.gmra.mxu0 %v2356
      %v2445 = vpop.f32.mrf.mxu0
      %v2446 = vadd.f32 0.0, %v2445
      %v2447 = vpop.f32.mrf.mxu0
      %v2448 = vadd.f32 0.0, %v2447
      %2449 = vdwg.mxu0
      %v2450 = vadd.f32 %v2311, %v2371
      %v2451 = vadd.f32 %v2312, %v2373
      %v2452 = vadd.f32 %v2313, %v2376
      %v2453 = vadd.f32 %v2314, %v2378
      %v2454 = vadd.f32 %v2315, %v2381
      %v2455 = vadd.f32 %v2316, %v2383
      %v2456 = vadd.f32 %v2317, %v2386
      %v2457 = vadd.f32 %v2318, %v2388
      %v2458 = vadd.f32 %v2319, %v2391
      %v2459 = vadd.f32 %v2320, %v2393
      %v2460 = vadd.f32 %v2321, %v2396
      %v2461 = vadd.f32 %v2322, %v2398
      %v2462 = vadd.f32 %v2323, %v2401
      %v2463 = vadd.f32 %v2324, %v2403
      %v2464 = vadd.f32 %v2325, %v2406
      %v2465 = vadd.f32 %v2326, %v2408
      %v2466 = vadd.f32 %v2327, %v2411
      %v2467 = vadd.f32 %v2328, %v2413
      %v2468 = vadd.f32 %v2329, %v2416
      %v2469 = vadd.f32 %v2330, %v2418
      %v2470 = vadd.f32 %v2331, %v2421
      %v2471 = vadd.f32 %v2332, %v2423
      %v2472 = vadd.f32 %v2333, %v2426
      %v2473 = vadd.f32 %v2334, %v2428
      %v2474 = vadd.f32 %v2335, %v2431
      %v2475 = vadd.f32 %v2336, %v2433
      %v2476 = vadd.f32 %v2337, %v2436
      %v2477 = vadd.f32 %v2338, %v2438
      %v2478 = vadd.f32 %v2339, %v2441
      %v2479 = vadd.f32 %v2340, %v2443
      %v2480 = vadd.f32 %v2341, %v2446
      %v2481 = vadd.f32 %v2342, %v2448
      %s2482 = scalar_lea.vmem %s1, 16
      %v2483 = vld [vmem:[%s2482] sm:$0x3]
      %v2486 = vunpack.c.l.b16 %v892
      %v2487 = vunpack.c.l.b16 %v893
      %v2488 = vpack.c.b16 %v2487, %v2486
      %v2490 = vsel %vm1336, %v2488, 0
      %v2493 = vsel %vm1385, %v2483, 0
      %2495 = vmatpush.bf16.msra.mxu0 0
      %2496 = vmatpush.bf16.msra.mxu0 0
      %2497 = vmatpush.bf16.msra.mxu0 0
      %2498 = vmatpush.bf16.msra.mxu0 0
      %2499 = vmatpush.bf16.msra.mxu0 0
      %2500 = vmatpush.bf16.msra.mxu0 0
      %2501 = vmatpush.bf16.msra.mxu0 0
      %2502 = vmatpush.bf16.msra.mxu0 %v2493
      %2503 = vmatmul.bf16.gmra.mxu0 %v1565
      %v2504 = vpop.f32.mrf.mxu0
      %v2505 = vadd.f32 0.0, %v2504
      %v2506 = vpop.f32.mrf.mxu0
      %v2507 = vadd.f32 0.0, %v2506
      %2508 = vmatmul.bf16.gmra.mxu0 %v1568
      %v2509 = vpop.f32.mrf.mxu0
      %v2510 = vadd.f32 0.0, %v2509
      %v2511 = vpop.f32.mrf.mxu0
      %v2512 = vadd.f32 0.0, %v2511
      %2513 = vmatmul.bf16.gmra.mxu0 %v1571
      %v2514 = vpop.f32.mrf.mxu0
      %v2515 = vadd.f32 0.0, %v2514
      %v2516 = vpop.f32.mrf.mxu0
      %v2517 = vadd.f32 0.0, %v2516
      %2518 = vmatmul.bf16.gmra.mxu0 %v1574
      %v2519 = vpop.f32.mrf.mxu0
      %v2520 = vadd.f32 0.0, %v2519
      %v2521 = vpop.f32.mrf.mxu0
      %v2522 = vadd.f32 0.0, %v2521
      %2523 = vmatmul.bf16.gmra.mxu0 %v1577
      %v2524 = vpop.f32.mrf.mxu0
      %v2525 = vadd.f32 0.0, %v2524
      %v2526 = vpop.f32.mrf.mxu0
      %v2527 = vadd.f32 0.0, %v2526
      %2528 = vmatmul.bf16.gmra.mxu0 %v1580
      %v2529 = vpop.f32.mrf.mxu0
      %v2530 = vadd.f32 0.0, %v2529
      %v2531 = vpop.f32.mrf.mxu0
      %v2532 = vadd.f32 0.0, %v2531
      %2533 = vmatmul.bf16.gmra.mxu0 %v1583
      %v2534 = vpop.f32.mrf.mxu0
      %v2535 = vadd.f32 0.0, %v2534
      %v2536 = vpop.f32.mrf.mxu0
      %v2537 = vadd.f32 0.0, %v2536
      %2538 = vmatmul.bf16.gmra.mxu0 %v1586
      %v2539 = vpop.f32.mrf.mxu0
      %v2540 = vadd.f32 0.0, %v2539
      %v2541 = vpop.f32.mrf.mxu0
      %v2542 = vadd.f32 0.0, %v2541
      %2543 = vmatmul.bf16.gmra.mxu0 %v1589
      %v2544 = vpop.f32.mrf.mxu0
      %v2545 = vadd.f32 0.0, %v2544
      %v2546 = vpop.f32.mrf.mxu0
      %v2547 = vadd.f32 0.0, %v2546
      %2548 = vmatmul.bf16.gmra.mxu0 %v1592
      %v2549 = vpop.f32.mrf.mxu0
      %v2550 = vadd.f32 0.0, %v2549
      %v2551 = vpop.f32.mrf.mxu0
      %v2552 = vadd.f32 0.0, %v2551
      %2553 = vmatmul.bf16.gmra.mxu0 %v1595
      %v2554 = vpop.f32.mrf.mxu0
      %v2555 = vadd.f32 0.0, %v2554
      %v2556 = vpop.f32.mrf.mxu0
      %v2557 = vadd.f32 0.0, %v2556
      %2558 = vmatmul.bf16.gmra.mxu0 %v1598
      %v2559 = vpop.f32.mrf.mxu0
      %v2560 = vadd.f32 0.0, %v2559
      %v2561 = vpop.f32.mrf.mxu0
      %v2562 = vadd.f32 0.0, %v2561
      %2563 = vmatmul.bf16.gmra.mxu0 %v1601
      %v2564 = vpop.f32.mrf.mxu0
      %v2565 = vadd.f32 0.0, %v2564
      %v2566 = vpop.f32.mrf.mxu0
      %v2567 = vadd.f32 0.0, %v2566
      %2568 = vmatmul.bf16.gmra.mxu0 %v1604
      %v2569 = vpop.f32.mrf.mxu0
      %v2570 = vadd.f32 0.0, %v2569
      %v2571 = vpop.f32.mrf.mxu0
      %v2572 = vadd.f32 0.0, %v2571
      %2573 = vmatmul.bf16.gmra.mxu0 %v2058
      %v2574 = vpop.f32.mrf.mxu0
      %v2575 = vadd.f32 0.0, %v2574
      %v2576 = vpop.f32.mrf.mxu0
      %v2577 = vadd.f32 0.0, %v2576
      %2578 = vmatmul.bf16.gmra.mxu0 %v2490
      %v2579 = vpop.f32.mrf.mxu0
      %v2580 = vadd.f32 0.0, %v2579
      %v2581 = vpop.f32.mrf.mxu0
      %v2582 = vadd.f32 0.0, %v2581
      %2583 = vdwg.mxu0
      %v2584 = vadd.f32 %v2450, %v2505
      %v2585 = vadd.f32 %v2451, %v2507
      %v2586 = vadd.f32 %v2452, %v2510
      %v2587 = vadd.f32 %v2453, %v2512
      %v2588 = vadd.f32 %v2454, %v2515
      %v2589 = vadd.f32 %v2455, %v2517
      %v2590 = vadd.f32 %v2456, %v2520
      %v2591 = vadd.f32 %v2457, %v2522
      %v2592 = vadd.f32 %v2458, %v2525
      %v2593 = vadd.f32 %v2459, %v2527
      %v2594 = vadd.f32 %v2460, %v2530
      %v2595 = vadd.f32 %v2461, %v2532
      %v2596 = vadd.f32 %v2462, %v2535
      %v2597 = vadd.f32 %v2463, %v2537
      %v2598 = vadd.f32 %v2464, %v2540
      %v2599 = vadd.f32 %v2465, %v2542
      %v2600 = vadd.f32 %v2466, %v2545
      %v2601 = vadd.f32 %v2467, %v2547
      %v2602 = vadd.f32 %v2468, %v2550
      %v2603 = vadd.f32 %v2469, %v2552
      %v2604 = vadd.f32 %v2470, %v2555
      %v2605 = vadd.f32 %v2471, %v2557
      %v2606 = vadd.f32 %v2472, %v2560
      %v2607 = vadd.f32 %v2473, %v2562
      %v2608 = vadd.f32 %v2474, %v2565
      %v2609 = vadd.f32 %v2475, %v2567
      %v2610 = vadd.f32 %v2476, %v2570
      %v2611 = vadd.f32 %v2477, %v2572
      %v2612 = vadd.f32 %v2478, %v2575
      %v2613 = vadd.f32 %v2479, %v2577
      %v2614 = vadd.f32 %v2480, %v2580
      %v2615 = vadd.f32 %v2481, %v2582
      %v2616 = vld [vmem:[%s2482] sm:$0xc]
      %v2618 = vshrl.u32 %v892, 16
      %v2620 = vrot.slane %v2618, 4
      %v2621 = vshll.u32 %v892, 16
      %v2623 = vrot.slane %v2621, 5
      %v2624 = vor.u32 %v2620, %v2623
      %v2625 = vrot.slane %v2624, 4
      %v2627 = vshll.u32 %v893, 16
      %v2629 = vrot.slane %v2627, 5
      %v2630 = vsel %vm899, %v2625, %v2629
      %v2631 = vshrl.u32 %v893, 16
      %v2633 = vrot.slane %v2631, 4
      %v2634 = vor.u32 %v2633, %v2629
      %v2635 = vrot.slane %v2634, 4
      %v2637 = vshll.u32 %v894, 16
      %v2639 = vrot.slane %v2637, 5
      %v2640 = vsel %vm899, %v2635, %v2639
      %v2641 = vunpack.c.l.b16 %v2630
      %v2642 = vunpack.c.l.b16 %v2640
      %v2643 = vpack.c.b16 %v2642, %v2641
      %v2645 = vunpack.c.l.b16 %v2616
      %v2646 = vpack.c.b16 %v2645, %v2645
      %v2647 = vrot.slane %v2646, 2
      %v2649 = vsel %vm1336, %v2643, 0
      %v2652 = vsel %vm1385, %v2647, 0
      %2654 = vmatpush.bf16.msra.mxu0 0
      %2655 = vmatpush.bf16.msra.mxu0 0
      %2656 = vmatpush.bf16.msra.mxu0 0
      %2657 = vmatpush.bf16.msra.mxu0 0
      %2658 = vmatpush.bf16.msra.mxu0 0
      %2659 = vmatpush.bf16.msra.mxu0 0
      %2660 = vmatpush.bf16.msra.mxu0 0
      %2661 = vmatpush.bf16.msra.mxu0 %v2652
      %2662 = vmatmul.bf16.gmra.mxu0 %v1344
      %v2663 = vpop.f32.mrf.mxu0
      %v2664 = vadd.f32 0.0, %v2663
      %v2665 = vpop.f32.mrf.mxu0
      %v2666 = vadd.f32 0.0, %v2665
      %2667 = vmatmul.bf16.gmra.mxu0 %v1347
      %v2668 = vpop.f32.mrf.mxu0
      %v2669 = vadd.f32 0.0, %v2668
      %v2670 = vpop.f32.mrf.mxu0
      %v2671 = vadd.f32 0.0, %v2670
      %2672 = vmatmul.bf16.gmra.mxu0 %v1350
      %v2673 = vpop.f32.mrf.mxu0
      %v2674 = vadd.f32 0.0, %v2673
      %v2675 = vpop.f32.mrf.mxu0
      %v2676 = vadd.f32 0.0, %v2675
      %2677 = vmatmul.bf16.gmra.mxu0 %v1353
      %v2678 = vpop.f32.mrf.mxu0
      %v2679 = vadd.f32 0.0, %v2678
      %v2680 = vpop.f32.mrf.mxu0
      %v2681 = vadd.f32 0.0, %v2680
      %2682 = vmatmul.bf16.gmra.mxu0 %v1356
      %v2683 = vpop.f32.mrf.mxu0
      %v2684 = vadd.f32 0.0, %v2683
      %v2685 = vpop.f32.mrf.mxu0
      %v2686 = vadd.f32 0.0, %v2685
      %2687 = vmatmul.bf16.gmra.mxu0 %v1359
      %v2688 = vpop.f32.mrf.mxu0
      %v2689 = vadd.f32 0.0, %v2688
      %v2690 = vpop.f32.mrf.mxu0
      %v2691 = vadd.f32 0.0, %v2690
      %2692 = vmatmul.bf16.gmra.mxu0 %v1362
      %v2693 = vpop.f32.mrf.mxu0
      %v2694 = vadd.f32 0.0, %v2693
      %v2695 = vpop.f32.mrf.mxu0
      %v2696 = vadd.f32 0.0, %v2695
      %2697 = vmatmul.bf16.gmra.mxu0 %v1365
      %v2698 = vpop.f32.mrf.mxu0
      %v2699 = vadd.f32 0.0, %v2698
      %v2700 = vpop.f32.mrf.mxu0
      %v2701 = vadd.f32 0.0, %v2700
      %2702 = vmatmul.bf16.gmra.mxu0 %v1368
      %v2703 = vpop.f32.mrf.mxu0
      %v2704 = vadd.f32 0.0, %v2703
      %v2705 = vpop.f32.mrf.mxu0
      %v2706 = vadd.f32 0.0, %v2705
      %2707 = vmatmul.bf16.gmra.mxu0 %v1371
      %v2708 = vpop.f32.mrf.mxu0
      %v2709 = vadd.f32 0.0, %v2708
      %v2710 = vpop.f32.mrf.mxu0
      %v2711 = vadd.f32 0.0, %v2710
      %2712 = vmatmul.bf16.gmra.mxu0 %v1374
      %v2713 = vpop.f32.mrf.mxu0
      %v2714 = vadd.f32 0.0, %v2713
      %v2715 = vpop.f32.mrf.mxu0
      %v2716 = vadd.f32 0.0, %v2715
      %2717 = vmatmul.bf16.gmra.mxu0 %v1377
      %v2718 = vpop.f32.mrf.mxu0
      %v2719 = vadd.f32 0.0, %v2718
      %v2720 = vpop.f32.mrf.mxu0
      %v2721 = vadd.f32 0.0, %v2720
      %2722 = vmatmul.bf16.gmra.mxu0 %v1380
      %v2723 = vpop.f32.mrf.mxu0
      %v2724 = vadd.f32 0.0, %v2723
      %v2725 = vpop.f32.mrf.mxu0
      %v2726 = vadd.f32 0.0, %v2725
      %2727 = vmatmul.bf16.gmra.mxu0 %v1383
      %v2728 = vpop.f32.mrf.mxu0
      %v2729 = vadd.f32 0.0, %v2728
      %v2730 = vpop.f32.mrf.mxu0
      %v2731 = vadd.f32 0.0, %v2730
      %2732 = vmatmul.bf16.gmra.mxu0 %v2217
      %v2733 = vpop.f32.mrf.mxu0
      %v2734 = vadd.f32 0.0, %v2733
      %v2735 = vpop.f32.mrf.mxu0
      %v2736 = vadd.f32 0.0, %v2735
      %2737 = vmatmul.bf16.gmra.mxu0 %v2649
      %v2738 = vpop.f32.mrf.mxu0
      %v2739 = vadd.f32 0.0, %v2738
      %v2740 = vpop.f32.mrf.mxu0
      %v2741 = vadd.f32 0.0, %v2740
      %2742 = vdwg.mxu0
      %v2743 = vadd.f32 %v2584, %v2664
      %v2744 = vadd.f32 %v2585, %v2666
      %v2745 = vadd.f32 %v2586, %v2669
      %v2746 = vadd.f32 %v2587, %v2671
      %v2747 = vadd.f32 %v2588, %v2674
      %v2748 = vadd.f32 %v2589, %v2676
      %v2749 = vadd.f32 %v2590, %v2679
      %v2750 = vadd.f32 %v2591, %v2681
      %v2751 = vadd.f32 %v2592, %v2684
      %v2752 = vadd.f32 %v2593, %v2686
      %v2753 = vadd.f32 %v2594, %v2689
      %v2754 = vadd.f32 %v2595, %v2691
      %v2755 = vadd.f32 %v2596, %v2694
      %v2756 = vadd.f32 %v2597, %v2696
      %v2757 = vadd.f32 %v2598, %v2699
      %v2758 = vadd.f32 %v2599, %v2701
      %v2759 = vadd.f32 %v2600, %v2704
      %v2760 = vadd.f32 %v2601, %v2706
      %v2761 = vadd.f32 %v2602, %v2709
      %v2762 = vadd.f32 %v2603, %v2711
      %v2763 = vadd.f32 %v2604, %v2714
      %v2764 = vadd.f32 %v2605, %v2716
      %v2765 = vadd.f32 %v2606, %v2719
      %v2766 = vadd.f32 %v2607, %v2721
      %v2767 = vadd.f32 %v2608, %v2724
      %v2768 = vadd.f32 %v2609, %v2726
      %v2769 = vadd.f32 %v2610, %v2729
      %v2770 = vadd.f32 %v2611, %v2731
      %v2771 = vadd.f32 %v2612, %v2734
      %v2772 = vadd.f32 %v2613, %v2736
      %v2773 = vadd.f32 %v2614, %v2739
      %v2774 = vadd.f32 %v2615, %v2741
      %v2775 = vld [vmem:[%s2482 + $0x4] sm:$0x3]
      %v2777 = vrot.slane %v892, 5
      %v2778 = vrot.slane %v2777, 4
      %v2779 = vrot.slane %v893, 5
      %v2780 = vsel %vm1717, %v2778, %v2779
      %v2781 = vrot.slane %v2779, 4
      %v2782 = vrot.slane %v894, 5
      %v2783 = vsel %vm1717, %v2781, %v2782
      %v2784 = vunpack.c.l.b16 %v2780
      %v2785 = vunpack.c.l.b16 %v2783
      %v2786 = vpack.c.b16 %v2785, %v2784
      %v2788 = vsel %vm1336, %v2786, 0
      %v2791 = vsel %vm1385, %v2775, 0
      %2793 = vmatpush.bf16.msra.mxu0 0
      %2794 = vmatpush.bf16.msra.mxu0 0
      %2795 = vmatpush.bf16.msra.mxu0 0
      %2796 = vmatpush.bf16.msra.mxu0 0
      %2797 = vmatpush.bf16.msra.mxu0 0
      %2798 = vmatpush.bf16.msra.mxu0 0
      %2799 = vmatpush.bf16.msra.mxu0 0
      %2800 = vmatpush.bf16.msra.mxu0 %v2791
      %2801 = vmatmul.bf16.gmra.mxu0 %v1885
      %v2802 = vpop.f32.mrf.mxu0
      %v2803 = vadd.f32 0.0, %v2802
      %v2804 = vpop.f32.mrf.mxu0
      %v2805 = vadd.f32 0.0, %v2804
      %2806 = vmatmul.bf16.gmra.mxu0 %v1888
      %v2807 = vpop.f32.mrf.mxu0
      %v2808 = vadd.f32 0.0, %v2807
      %v2809 = vpop.f32.mrf.mxu0
      %v2810 = vadd.f32 0.0, %v2809
      %2811 = vmatmul.bf16.gmra.mxu0 %v1891
      %v2812 = vpop.f32.mrf.mxu0
      %v2813 = vadd.f32 0.0, %v2812
      %v2814 = vpop.f32.mrf.mxu0
      %v2815 = vadd.f32 0.0, %v2814
      %2816 = vmatmul.bf16.gmra.mxu0 %v1894
      %v2817 = vpop.f32.mrf.mxu0
      %v2818 = vadd.f32 0.0, %v2817
      %v2819 = vpop.f32.mrf.mxu0
      %v2820 = vadd.f32 0.0, %v2819
      %2821 = vmatmul.bf16.gmra.mxu0 %v1897
      %v2822 = vpop.f32.mrf.mxu0
      %v2823 = vadd.f32 0.0, %v2822
      %v2824 = vpop.f32.mrf.mxu0
      %v2825 = vadd.f32 0.0, %v2824
      %2826 = vmatmul.bf16.gmra.mxu0 %v1900
      %v2827 = vpop.f32.mrf.mxu0
      %v2828 = vadd.f32 0.0, %v2827
      %v2829 = vpop.f32.mrf.mxu0
      %v2830 = vadd.f32 0.0, %v2829
      %2831 = vmatmul.bf16.gmra.mxu0 %v1903
      %v2832 = vpop.f32.mrf.mxu0
      %v2833 = vadd.f32 0.0, %v2832
      %v2834 = vpop.f32.mrf.mxu0
      %v2835 = vadd.f32 0.0, %v2834
      %2836 = vmatmul.bf16.gmra.mxu0 %v1906
      %v2837 = vpop.f32.mrf.mxu0
      %v2838 = vadd.f32 0.0, %v2837
      %v2839 = vpop.f32.mrf.mxu0
      %v2840 = vadd.f32 0.0, %v2839
      %2841 = vmatmul.bf16.gmra.mxu0 %v1909
      %v2842 = vpop.f32.mrf.mxu0
      %v2843 = vadd.f32 0.0, %v2842
      %v2844 = vpop.f32.mrf.mxu0
      %v2845 = vadd.f32 0.0, %v2844
      %2846 = vmatmul.bf16.gmra.mxu0 %v1912
      %v2847 = vpop.f32.mrf.mxu0
      %v2848 = vadd.f32 0.0, %v2847
      %v2849 = vpop.f32.mrf.mxu0
      %v2850 = vadd.f32 0.0, %v2849
      %2851 = vmatmul.bf16.gmra.mxu0 %v1915
      %v2852 = vpop.f32.mrf.mxu0
      %v2853 = vadd.f32 0.0, %v2852
      %v2854 = vpop.f32.mrf.mxu0
      %v2855 = vadd.f32 0.0, %v2854
      %2856 = vmatmul.bf16.gmra.mxu0 %v1918
      %v2857 = vpop.f32.mrf.mxu0
      %v2858 = vadd.f32 0.0, %v2857
      %v2859 = vpop.f32.mrf.mxu0
      %v2860 = vadd.f32 0.0, %v2859
      %2861 = vmatmul.bf16.gmra.mxu0 %v1921
      %v2862 = vpop.f32.mrf.mxu0
      %v2863 = vadd.f32 0.0, %v2862
      %v2864 = vpop.f32.mrf.mxu0
      %v2865 = vadd.f32 0.0, %v2864
      %2866 = vmatmul.bf16.gmra.mxu0 %v1924
      %v2867 = vpop.f32.mrf.mxu0
      %v2868 = vadd.f32 0.0, %v2867
      %v2869 = vpop.f32.mrf.mxu0
      %v2870 = vadd.f32 0.0, %v2869
      %2871 = vmatmul.bf16.gmra.mxu0 %v2356
      %v2872 = vpop.f32.mrf.mxu0
      %v2873 = vadd.f32 0.0, %v2872
      %v2874 = vpop.f32.mrf.mxu0
      %v2875 = vadd.f32 0.0, %v2874
      %2876 = vmatmul.bf16.gmra.mxu0 %v2788
      %v2877 = vpop.f32.mrf.mxu0
      %v2878 = vadd.f32 0.0, %v2877
      %v2879 = vpop.f32.mrf.mxu0
      %v2880 = vadd.f32 0.0, %v2879
      %2881 = vdwg.mxu0
      %v2882 = vadd.f32 %v2743, %v2803
      %v2883 = vadd.f32 %v2744, %v2805
      %v2884 = vadd.f32 %v2745, %v2808
      %v2885 = vadd.f32 %v2746, %v2810
      %v2886 = vadd.f32 %v2747, %v2813
      %v2887 = vadd.f32 %v2748, %v2815
      %v2888 = vadd.f32 %v2749, %v2818
      %v2889 = vadd.f32 %v2750, %v2820
      %v2890 = vadd.f32 %v2751, %v2823
      %v2891 = vadd.f32 %v2752, %v2825
      %v2892 = vadd.f32 %v2753, %v2828
      %v2893 = vadd.f32 %v2754, %v2830
      %v2894 = vadd.f32 %v2755, %v2833
      %v2895 = vadd.f32 %v2756, %v2835
      %v2896 = vadd.f32 %v2757, %v2838
      %v2897 = vadd.f32 %v2758, %v2840
      %v2898 = vadd.f32 %v2759, %v2843
      %v2899 = vadd.f32 %v2760, %v2845
      %v2900 = vadd.f32 %v2761, %v2848
      %v2901 = vadd.f32 %v2762, %v2850
      %v2902 = vadd.f32 %v2763, %v2853
      %v2903 = vadd.f32 %v2764, %v2855
      %v2904 = vadd.f32 %v2765, %v2858
      %v2905 = vadd.f32 %v2766, %v2860
      %v2906 = vadd.f32 %v2767, %v2863
      %v2907 = vadd.f32 %v2768, %v2865
      %v2908 = vadd.f32 %v2769, %v2868
      %v2909 = vadd.f32 %v2770, %v2870
      %v2910 = vadd.f32 %v2771, %v2873
      %v2911 = vadd.f32 %v2772, %v2875
      %v2912 = vadd.f32 %v2773, %v2878
      %v2913 = vadd.f32 %v2774, %v2880
      %v2914 = vld [vmem:[%s2] sm:$0x1]
      %v2916 = vperm.slane %v2914, 0
      %v2918 = vadd.f32 %v2882, %v2916
      %v2919 = vadd.f32 %v2883, %v2916
      %v2920 = vadd.f32 %v2884, %v2916
      %v2921 = vadd.f32 %v2885, %v2916
      %v2922 = vadd.f32 %v2886, %v2916
      %v2923 = vadd.f32 %v2887, %v2916
      %v2924 = vadd.f32 %v2888, %v2916
      %v2925 = vadd.f32 %v2889, %v2916
      %v2926 = vadd.f32 %v2890, %v2916
      %v2927 = vadd.f32 %v2891, %v2916
      %v2928 = vadd.f32 %v2892, %v2916
      %v2929 = vadd.f32 %v2893, %v2916
      %v2930 = vadd.f32 %v2894, %v2916
      %v2931 = vadd.f32 %v2895, %v2916
      %v2932 = vadd.f32 %v2896, %v2916
      %v2933 = vadd.f32 %v2897, %v2916
      %v2934 = vadd.f32 %v2898, %v2916
      %v2935 = vadd.f32 %v2899, %v2916
      %v2936 = vadd.f32 %v2900, %v2916
      %v2937 = vadd.f32 %v2901, %v2916
      %v2938 = vadd.f32 %v2902, %v2916
      %v2939 = vadd.f32 %v2903, %v2916
      %v2940 = vadd.f32 %v2904, %v2916
      %v2941 = vadd.f32 %v2905, %v2916
      %v2942 = vadd.f32 %v2906, %v2916
      %v2943 = vadd.f32 %v2907, %v2916
      %v2944 = vadd.f32 %v2908, %v2916
      %v2945 = vadd.f32 %v2909, %v2916
      %v2946 = vadd.f32 %v2910, %v2916
      %v2947 = vadd.f32 %v2911, %v2916
      %v2948 = vadd.f32 %v2912, %v2916
      %v2949 = vadd.f32 %v2913, %v2916
      %v2950 = vmax.f32 %v2918, 0.0
      %v2951 = vmax.f32 %v2919, 0.0
      %v2952 = vmax.f32 %v2920, 0.0
      %v2953 = vmax.f32 %v2921, 0.0
      %v2954 = vmax.f32 %v2922, 0.0
      %v2955 = vmax.f32 %v2923, 0.0
      %v2956 = vmax.f32 %v2924, 0.0
      %v2957 = vmax.f32 %v2925, 0.0
      %v2958 = vmax.f32 %v2926, 0.0
      %v2959 = vmax.f32 %v2927, 0.0
      %v2960 = vmax.f32 %v2928, 0.0
      %v2961 = vmax.f32 %v2929, 0.0
      %v2962 = vmax.f32 %v2930, 0.0
      %v2963 = vmax.f32 %v2931, 0.0
      %v2964 = vmax.f32 %v2932, 0.0
      %v2965 = vmax.f32 %v2933, 0.0
      %v2966 = vmax.f32 %v2934, 0.0
      %v2967 = vmax.f32 %v2935, 0.0
      %v2968 = vmax.f32 %v2936, 0.0
      %v2969 = vmax.f32 %v2937, 0.0
      %v2970 = vmax.f32 %v2938, 0.0
      %v2971 = vmax.f32 %v2939, 0.0
      %v2972 = vmax.f32 %v2940, 0.0
      %v2973 = vmax.f32 %v2941, 0.0
      %v2974 = vmax.f32 %v2942, 0.0
      %v2975 = vmax.f32 %v2943, 0.0
      %v2976 = vmax.f32 %v2944, 0.0
      %v2977 = vmax.f32 %v2945, 0.0
      %v2978 = vmax.f32 %v2946, 0.0
      %v2979 = vmax.f32 %v2947, 0.0
      %v2980 = vmax.f32 %v2948, 0.0
      %v2981 = vmax.f32 %v2949, 0.0
      %v2982 = vpack.c.bf16 %v2950, %v2950
      %v2983 = vpack.c.bf16 %v2951, %v2951
      %v2984 = vpack.c.bf16 %v2952, %v2952
      %v2985 = vpack.c.bf16 %v2953, %v2953
      %v2986 = vpack.c.bf16 %v2954, %v2954
      %v2987 = vpack.c.bf16 %v2955, %v2955
      %v2988 = vpack.c.bf16 %v2956, %v2956
      %v2989 = vpack.c.bf16 %v2957, %v2957
      %v2990 = vpack.c.bf16 %v2958, %v2958
      %v2991 = vpack.c.bf16 %v2959, %v2959
      %v2992 = vpack.c.bf16 %v2960, %v2960
      %v2993 = vpack.c.bf16 %v2961, %v2961
      %v2994 = vpack.c.bf16 %v2962, %v2962
      %v2995 = vpack.c.bf16 %v2963, %v2963
      %v2996 = vpack.c.bf16 %v2964, %v2964
      %v2997 = vpack.c.bf16 %v2965, %v2965
      %v2998 = vpack.c.bf16 %v2966, %v2966
      %v2999 = vpack.c.bf16 %v2967, %v2967
      %v3000 = vpack.c.bf16 %v2968, %v2968
      %v3001 = vpack.c.bf16 %v2969, %v2969
      %v3002 = vpack.c.bf16 %v2970, %v2970
      %v3003 = vpack.c.bf16 %v2971, %v2971
      %v3004 = vpack.c.bf16 %v2972, %v2972
      %v3005 = vpack.c.bf16 %v2973, %v2973
      %v3006 = vpack.c.bf16 %v2974, %v2974
      %v3007 = vpack.c.bf16 %v2975, %v2975
      %v3008 = vpack.c.bf16 %v2976, %v2976
      %v3009 = vpack.c.bf16 %v2977, %v2977
      %v3010 = vpack.c.bf16 %v2978, %v2978
      %v3011 = vpack.c.bf16 %v2979, %v2979
      %v3012 = vpack.c.bf16 %v2980, %v2980
      %v3013 = vpack.c.bf16 %v2981, %v2981
      %v3015 = vshrl.u32 %v2982, 16
      %v3017 = vrot.slane %v3015, 7
      %v3018 = vshll.u32 %v2982, 16
      %v3020 = vor.u32 %v3017, %v3018
      %v3021 = vrot.slane %v3017, 4
      %v3023 = vshrl.u32 %v2983, 16
      %v3025 = vrot.slane %v3023, 7
      %v3026 = vshll.u32 %v2983, 16
      %v3028 = vor.u32 %v3025, %v3026
      %v3029 = vsel %vm402, %v3021, %v3028
      %v3030 = vrot.slane %v3025, 4
      %v3032 = vshrl.u32 %v2984, 16
      %v3034 = vrot.slane %v3032, 7
      %v3035 = vshll.u32 %v2984, 16
      %v3037 = vor.u32 %v3034, %v3035
      %v3038 = vrot.slane %v3034, 4
      %v3040 = vshrl.u32 %v2985, 16
      %v3042 = vrot.slane %v3040, 7
      %v3043 = vshll.u32 %v2985, 16
      %v3045 = vor.u32 %v3042, %v3043
      %v3046 = vsel %vm402, %v3038, %v3045
      %v3047 = vrot.slane %v3042, 4
      %v3049 = vshrl.u32 %v2986, 16
      %v3051 = vrot.slane %v3049, 7
      %v3052 = vshll.u32 %v2986, 16
      %v3054 = vor.u32 %v3051, %v3052
      %v3055 = vrot.slane %v3051, 4
      %v3057 = vshrl.u32 %v2987, 16
      %v3059 = vrot.slane %v3057, 7
      %v3060 = vshll.u32 %v2987, 16
      %v3062 = vor.u32 %v3059, %v3060
      %v3063 = vsel %vm402, %v3055, %v3062
      %v3064 = vrot.slane %v3059, 4
      %v3066 = vshrl.u32 %v2988, 16
      %v3068 = vrot.slane %v3066, 7
      %v3069 = vshll.u32 %v2988, 16
      %v3071 = vor.u32 %v3068, %v3069
      %v3072 = vrot.slane %v3068, 4
      %v3074 = vshrl.u32 %v2989, 16
      %v3076 = vrot.slane %v3074, 7
      %v3077 = vshll.u32 %v2989, 16
      %v3079 = vor.u32 %v3076, %v3077
      %v3080 = vsel %vm402, %v3072, %v3079
      %v3081 = vrot.slane %v3076, 4
      %v3083 = vshrl.u32 %v2990, 16
      %v3085 = vrot.slane %v3083, 7
      %v3086 = vshll.u32 %v2990, 16
      %v3088 = vor.u32 %v3085, %v3086
      %v3089 = vrot.slane %v3085, 4
      %v3091 = vshrl.u32 %v2991, 16
      %v3093 = vrot.slane %v3091, 7
      %v3094 = vshll.u32 %v2991, 16
      %v3096 = vor.u32 %v3093, %v3094
      %v3097 = vsel %vm402, %v3089, %v3096
      %v3098 = vrot.slane %v3093, 4
      %v3100 = vshrl.u32 %v2992, 16
      %v3102 = vrot.slane %v3100, 7
      %v3103 = vshll.u32 %v2992, 16
      %v3105 = vor.u32 %v3102, %v3103
      %v3106 = vrot.slane %v3102, 4
      %v3108 = vshrl.u32 %v2993, 16
      %v3110 = vrot.slane %v3108, 7
      %v3111 = vshll.u32 %v2993, 16
      %v3113 = vor.u32 %v3110, %v3111
      %v3114 = vsel %vm402, %v3106, %v3113
      %v3115 = vrot.slane %v3110, 4
      %v3117 = vshrl.u32 %v2994, 16
      %v3119 = vrot.slane %v3117, 7
      %v3120 = vshll.u32 %v2994, 16
      %v3122 = vor.u32 %v3119, %v3120
      %v3123 = vrot.slane %v3119, 4
      %v3125 = vshrl.u32 %v2995, 16
      %v3127 = vrot.slane %v3125, 7
      %v3128 = vshll.u32 %v2995, 16
      %v3130 = vor.u32 %v3127, %v3128
      %v3131 = vsel %vm402, %v3123, %v3130
      %v3132 = vrot.slane %v3127, 4
      %v3134 = vshrl.u32 %v2996, 16
      %v3136 = vrot.slane %v3134, 7
      %v3137 = vshll.u32 %v2996, 16
      %v3139 = vor.u32 %v3136, %v3137
      %v3140 = vrot.slane %v3136, 4
      %v3142 = vshrl.u32 %v2997, 16
      %v3144 = vrot.slane %v3142, 7
      %v3145 = vshll.u32 %v2997, 16
      %v3147 = vor.u32 %v3144, %v3145
      %v3148 = vsel %vm402, %v3140, %v3147
      %v3149 = vrot.slane %v3144, 4
      %v3151 = vshrl.u32 %v2998, 16
      %v3153 = vrot.slane %v3151, 7
      %v3154 = vshll.u32 %v2998, 16
      %v3156 = vor.u32 %v3153, %v3154
      %v3157 = vrot.slane %v3153, 4
      %v3159 = vshrl.u32 %v2999, 16
      %v3161 = vrot.slane %v3159, 7
      %v3162 = vshll.u32 %v2999, 16
      %v3164 = vor.u32 %v3161, %v3162
      %v3165 = vsel %vm402, %v3157, %v3164
      %v3166 = vrot.slane %v3161, 4
      %v3168 = vshrl.u32 %v3000, 16
      %v3170 = vrot.slane %v3168, 7
      %v3171 = vshll.u32 %v3000, 16
      %v3173 = vor.u32 %v3170, %v3171
      %v3174 = vrot.slane %v3170, 4
      %v3176 = vshrl.u32 %v3001, 16
      %v3178 = vrot.slane %v3176, 7
      %v3179 = vshll.u32 %v3001, 16
      %v3181 = vor.u32 %v3178, %v3179
      %v3182 = vsel %vm402, %v3174, %v3181
      %v3183 = vrot.slane %v3178, 4
      %v3185 = vshrl.u32 %v3002, 16
      %v3187 = vrot.slane %v3185, 7
      %v3188 = vshll.u32 %v3002, 16
      %v3190 = vor.u32 %v3187, %v3188
      %v3191 = vrot.slane %v3187, 4
      %v3193 = vshrl.u32 %v3003, 16
      %v3195 = vrot.slane %v3193, 7
      %v3196 = vshll.u32 %v3003, 16
      %v3198 = vor.u32 %v3195, %v3196
      %v3199 = vsel %vm402, %v3191, %v3198
      %v3200 = vrot.slane %v3195, 4
      %v3202 = vshrl.u32 %v3004, 16
      %v3204 = vrot.slane %v3202, 7
      %v3205 = vshll.u32 %v3004, 16
      %v3207 = vor.u32 %v3204, %v3205
      %v3208 = vrot.slane %v3204, 4
      %v3210 = vshrl.u32 %v3005, 16
      %v3212 = vrot.slane %v3210, 7
      %v3213 = vshll.u32 %v3005, 16
      %v3215 = vor.u32 %v3212, %v3213
      %v3216 = vsel %vm402, %v3208, %v3215
      %v3217 = vrot.slane %v3212, 4
      %v3219 = vshrl.u32 %v3006, 16
      %v3221 = vrot.slane %v3219, 7
      %v3222 = vshll.u32 %v3006, 16
      %v3224 = vor.u32 %v3221, %v3222
      %v3225 = vrot.slane %v3221, 4
      %v3227 = vshrl.u32 %v3007, 16
      %v3229 = vrot.slane %v3227, 7
      %v3230 = vshll.u32 %v3007, 16
      %v3232 = vor.u32 %v3229, %v3230
      %v3233 = vsel %vm402, %v3225, %v3232
      %v3234 = vrot.slane %v3229, 4
      %v3236 = vshrl.u32 %v3008, 16
      %v3238 = vrot.slane %v3236, 7
      %v3239 = vshll.u32 %v3008, 16
      %v3241 = vor.u32 %v3238, %v3239
      %v3242 = vrot.slane %v3238, 4
      %v3244 = vshrl.u32 %v3009, 16
      %v3246 = vrot.slane %v3244, 7
      %v3247 = vshll.u32 %v3009, 16
      %v3249 = vor.u32 %v3246, %v3247
      %v3250 = vsel %vm402, %v3242, %v3249
      %v3251 = vrot.slane %v3246, 4
      %v3253 = vshrl.u32 %v3010, 16
      %v3255 = vrot.slane %v3253, 7
      %v3256 = vshll.u32 %v3010, 16
      %v3258 = vor.u32 %v3255, %v3256
      %v3259 = vrot.slane %v3255, 4
      %v3261 = vshrl.u32 %v3011, 16
      %v3263 = vrot.slane %v3261, 7
      %v3264 = vshll.u32 %v3011, 16
      %v3266 = vor.u32 %v3263, %v3264
      %v3267 = vsel %vm402, %v3259, %v3266
      %v3268 = vrot.slane %v3263, 4
      %v3270 = vshrl.u32 %v3012, 16
      %v3272 = vrot.slane %v3270, 7
      %v3273 = vshll.u32 %v3012, 16
      %v3275 = vor.u32 %v3272, %v3273
      %v3276 = vrot.slane %v3272, 4
      %v3278 = vshrl.u32 %v3013, 16
      %v3280 = vrot.slane %v3278, 7
      %v3281 = vshll.u32 %v3013, 16
      %v3283 = vor.u32 %v3280, %v3281
      %v3284 = vsel %vm402, %v3276, %v3283
      %v3285 = vrot.slane %v3280, 4
      %s3334 = scalar_lea.vmem [#allocation3], 12
      %v3335 = vld [vmem:[%s3334] sm:$0xf]
      %v3336 = vsel %vm726, %v3020, %v3335
      %3337 = vst [vmem:[%s3334] sm:$0xf] %v3336
      %3338 = vst.msk [vmem:[%s3334 + $0x4] sm:$0xf] %vm226, %v3029
      %v3339 = vld [vmem:[%s3334 + $0x8] sm:$0x1]
      %v3340 = vsel %vm732, %v3030, %v3339
      %3341 = vst [vmem:[%s3334 + $0x8] sm:$0x1] %v3340
      %v3342 = vld [vmem:[%s3334 + $0xc] sm:$0xf]
      %v3343 = vsel %vm726, %v3037, %v3342
      %3344 = vst [vmem:[%s3334 + $0xc] sm:$0xf] %v3343
      %3345 = vst.msk [vmem:[%s3334 + $0x10] sm:$0xf] %vm226, %v3046
      %v3346 = vld [vmem:[%s3334 + $0x14] sm:$0x1]
      %v3347 = vsel %vm732, %v3047, %v3346
      %3348 = vst [vmem:[%s3334 + $0x14] sm:$0x1] %v3347
      %v3349 = vld [vmem:[%s3334 + $0x18] sm:$0xf]
      %v3350 = vsel %vm726, %v3054, %v3349
      %3351 = vst [vmem:[%s3334 + $0x18] sm:$0xf] %v3350
      %3352 = vst.msk [vmem:[%s3334 + $0x1c] sm:$0xf] %vm226, %v3063
      %v3353 = vld [vmem:[%s3334 + $0x20] sm:$0x1]
      %v3354 = vsel %vm732, %v3064, %v3353
      %3355 = vst [vmem:[%s3334 + $0x20] sm:$0x1] %v3354
      %v3356 = vld [vmem:[%s3334 + $0x24] sm:$0xf]
      %v3357 = vsel %vm726, %v3071, %v3356
      %3358 = vst [vmem:[%s3334 + $0x24] sm:$0xf] %v3357
      %3359 = vst.msk [vmem:[%s3334 + $0x28] sm:$0xf] %vm226, %v3080
      %v3360 = vld [vmem:[%s3334 + $0x2c] sm:$0x1]
      %v3361 = vsel %vm732, %v3081, %v3360
      %3362 = vst [vmem:[%s3334 + $0x2c] sm:$0x1] %v3361
      %v3363 = vld [vmem:[%s3334 + $0x30] sm:$0xf]
      %v3364 = vsel %vm726, %v3088, %v3363
      %3365 = vst [vmem:[%s3334 + $0x30] sm:$0xf] %v3364
      %3366 = vst.msk [vmem:[%s3334 + $0x34] sm:$0xf] %vm226, %v3097
      %v3367 = vld [vmem:[%s3334 + $0x38] sm:$0x1]
      %v3368 = vsel %vm732, %v3098, %v3367
      %3369 = vst [vmem:[%s3334 + $0x38] sm:$0x1] %v3368
      %v3370 = vld [vmem:[%s3334 + $0x3c] sm:$0xf]
      %v3371 = vsel %vm726, %v3105, %v3370
      %3372 = vst [vmem:[%s3334 + $0x3c] sm:$0xf] %v3371
      %3373 = vst.msk [vmem:[%s3334 + $0x40] sm:$0xf] %vm226, %v3114
      %v3374 = vld [vmem:[%s3334 + $0x44] sm:$0x1]
      %v3375 = vsel %vm732, %v3115, %v3374
      %3376 = vst [vmem:[%s3334 + $0x44] sm:$0x1] %v3375
      %v3377 = vld [vmem:[%s3334 + $0x48] sm:$0xf]
      %v3378 = vsel %vm726, %v3122, %v3377
      %3379 = vst [vmem:[%s3334 + $0x48] sm:$0xf] %v3378
      %3380 = vst.msk [vmem:[%s3334 + $0x4c] sm:$0xf] %vm226, %v3131
      %v3381 = vld [vmem:[%s3334 + $0x50] sm:$0x1]
      %v3382 = vsel %vm732, %v3132, %v3381
      %3383 = vst [vmem:[%s3334 + $0x50] sm:$0x1] %v3382
      %v3384 = vld [vmem:[%s3334 + $0x54] sm:$0xf]
      %v3385 = vsel %vm726, %v3139, %v3384
      %3386 = vst [vmem:[%s3334 + $0x54] sm:$0xf] %v3385
      %3387 = vst.msk [vmem:[%s3334 + $0x58] sm:$0xf] %vm226, %v3148
      %v3388 = vld [vmem:[%s3334 + $0x5c] sm:$0x1]
      %v3389 = vsel %vm732, %v3149, %v3388
      %3390 = vst [vmem:[%s3334 + $0x5c] sm:$0x1] %v3389
      %v3391 = vld [vmem:[%s3334 + $0x60] sm:$0xf]
      %v3392 = vsel %vm726, %v3156, %v3391
      %3393 = vst [vmem:[%s3334 + $0x60] sm:$0xf] %v3392
      %3394 = vst.msk [vmem:[%s3334 + $0x64] sm:$0xf] %vm226, %v3165
      %v3395 = vld [vmem:[%s3334 + $0x68] sm:$0x1]
      %v3396 = vsel %vm732, %v3166, %v3395
      %3397 = vst [vmem:[%s3334 + $0x68] sm:$0x1] %v3396
      %v3398 = vld [vmem:[%s3334 + $0x6c] sm:$0xf]
      %v3399 = vsel %vm726, %v3173, %v3398
      %3400 = vst [vmem:[%s3334 + $0x6c] sm:$0xf] %v3399
      %3401 = vst.msk [vmem:[%s3334 + $0x70] sm:$0xf] %vm226, %v3182
      %v3402 = vld [vmem:[%s3334 + $0x74] sm:$0x1]
      %v3403 = vsel %vm732, %v3183, %v3402
      %3404 = vst [vmem:[%s3334 + $0x74] sm:$0x1] %v3403
      %v3405 = vld [vmem:[%s3334 + $0x78] sm:$0xf]
      %v3406 = vsel %vm726, %v3190, %v3405
      %3407 = vst [vmem:[%s3334 + $0x78] sm:$0xf] %v3406
      %3408 = vst.msk [vmem:[%s3334 + $0x7c] sm:$0xf] %vm226, %v3199
      %v3409 = vld [vmem:[%s3334 + $0x80] sm:$0x1]
      %v3410 = vsel %vm732, %v3200, %v3409
      %3411 = vst [vmem:[%s3334 + $0x80] sm:$0x1] %v3410
      %v3412 = vld [vmem:[%s3334 + $0x84] sm:$0xf]
      %v3413 = vsel %vm726, %v3207, %v3412
      %3414 = vst [vmem:[%s3334 + $0x84] sm:$0xf] %v3413
      %3415 = vst.msk [vmem:[%s3334 + $0x88] sm:$0xf] %vm226, %v3216
      %v3416 = vld [vmem:[%s3334 + $0x8c] sm:$0x1]
      %v3417 = vsel %vm732, %v3217, %v3416
      %3418 = vst [vmem:[%s3334 + $0x8c] sm:$0x1] %v3417
      %v3419 = vld [vmem:[%s3334 + $0x90] sm:$0xf]
      %v3420 = vsel %vm726, %v3224, %v3419
      %3421 = vst [vmem:[%s3334 + $0x90] sm:$0xf] %v3420
      %3422 = vst.msk [vmem:[%s3334 + $0x94] sm:$0xf] %vm226, %v3233
      %v3423 = vld [vmem:[%s3334 + $0x98] sm:$0x1]
      %v3424 = vsel %vm732, %v3234, %v3423
      %3425 = vst [vmem:[%s3334 + $0x98] sm:$0x1] %v3424
      %v3426 = vld [vmem:[%s3334 + $0x9c] sm:$0xf]
      %v3427 = vsel %vm726, %v3241, %v3426
      %3428 = vst [vmem:[%s3334 + $0x9c] sm:$0xf] %v3427
      %3429 = vst.msk [vmem:[%s3334 + $0xa0] sm:$0xf] %vm226, %v3250
      %v3430 = vld [vmem:[%s3334 + $0xa4] sm:$0x1]
      %v3431 = vsel %vm732, %v3251, %v3430
      %3432 = vst [vmem:[%s3334 + $0xa4] sm:$0x1] %v3431
      %v3433 = vld [vmem:[%s3334 + $0xa8] sm:$0xf]
      %v3434 = vsel %vm726, %v3258, %v3433
      %3435 = vst [vmem:[%s3334 + $0xa8] sm:$0xf] %v3434
      %3436 = vst.msk [vmem:[%s3334 + $0xac] sm:$0xf] %vm226, %v3267
      %v3437 = vld [vmem:[%s3334 + $0xb0] sm:$0x1]
      %v3438 = vsel %vm732, %v3268, %v3437
      %3439 = vst [vmem:[%s3334 + $0xb0] sm:$0x1] %v3438
      %v3440 = vld [vmem:[%s3334 + $0xb4] sm:$0xf]
      %v3441 = vsel %vm726, %v3275, %v3440
      %3442 = vst [vmem:[%s3334 + $0xb4] sm:$0xf] %v3441
      %3443 = vst.msk [vmem:[%s3334 + $0xb8] sm:$0xf] %vm226, %v3284
      %v3444 = vld [vmem:[%s3334 + $0xbc] sm:$0x1]
      %v3445 = vsel %vm732, %v3285, %v3444
      %3446 = vst [vmem:[%s3334 + $0xbc] sm:$0x1] %v3445
      %v3447 = vld [vmem:[#allocation3] sm:$0xf]
      %v3448 = vld [vmem:[#allocation3 + $0x4] sm:$0xf]
      %v3449 = vld [vmem:[#allocation3 + $0x8] sm:$0x1]
      %v3450 = vld [vmem:[#allocation3 + $0xc] sm:$0xf]
      %v3451 = vld [vmem:[#allocation3 + $0x10] sm:$0xf]
      %v3452 = vld [vmem:[#allocation3 + $0x14] sm:$0x1]
      %v3453 = vld [vmem:[#allocation3 + $0x18] sm:$0xf]
      %v3454 = vld [vmem:[#allocation3 + $0x1c] sm:$0xf]
      %v3455 = vld [vmem:[#allocation3 + $0x20] sm:$0x1]
      %v3456 = vld [vmem:[#allocation3 + $0x24] sm:$0xf]
      %v3457 = vld [vmem:[#allocation3 + $0x28] sm:$0xf]
      %v3458 = vld [vmem:[#allocation3 + $0x2c] sm:$0x1]
      %v3459 = vld [vmem:[#allocation3 + $0x30] sm:$0xf]
      %v3460 = vld [vmem:[#allocation3 + $0x34] sm:$0xf]
      %v3461 = vld [vmem:[#allocation3 + $0x38] sm:$0x1]
      %v3462 = vld [vmem:[#allocation3 + $0x3c] sm:$0xf]
      %v3463 = vld [vmem:[#allocation3 + $0x40] sm:$0xf]
      %v3464 = vld [vmem:[#allocation3 + $0x44] sm:$0x1]
      %v3465 = vld [vmem:[#allocation3 + $0x48] sm:$0xf]
      %v3466 = vld [vmem:[#allocation3 + $0x4c] sm:$0xf]
      %v3467 = vld [vmem:[#allocation3 + $0x50] sm:$0x1]
      %v3468 = vld [vmem:[#allocation3 + $0x54] sm:$0xf]
      %v3469 = vld [vmem:[#allocation3 + $0x58] sm:$0xf]
      %v3470 = vld [vmem:[#allocation3 + $0x5c] sm:$0x1]
      %v3471 = vld [vmem:[#allocation3 + $0x60] sm:$0xf]
      %v3472 = vld [vmem:[#allocation3 + $0x64] sm:$0xf]
      %v3473 = vld [vmem:[#allocation3 + $0x68] sm:$0x1]
      %v3474 = vld [vmem:[#allocation3 + $0x6c] sm:$0xf]
      %v3475 = vld [vmem:[#allocation3 + $0x70] sm:$0xf]
      %v3476 = vld [vmem:[#allocation3 + $0x74] sm:$0x1]
      %v3477 = vld [vmem:[#allocation3 + $0x78] sm:$0xf]
      %v3478 = vld [vmem:[#allocation3 + $0x7c] sm:$0xf]
      %v3479 = vld [vmem:[#allocation3 + $0x80] sm:$0x1]
      %v3480 = vld [vmem:[#allocation3 + $0x84] sm:$0xf]
      %v3481 = vld [vmem:[#allocation3 + $0x88] sm:$0xf]
      %v3482 = vld [vmem:[#allocation3 + $0x8c] sm:$0x1]
      %v3483 = vld [vmem:[#allocation3 + $0x90] sm:$0xf]
      %v3484 = vld [vmem:[#allocation3 + $0x94] sm:$0xf]
      %v3485 = vld [vmem:[#allocation3 + $0x98] sm:$0x1]
      %v3486 = vld [vmem:[#allocation3 + $0x9c] sm:$0xf]
      %v3487 = vld [vmem:[#allocation3 + $0xa0] sm:$0xf]
      %v3488 = vld [vmem:[#allocation3 + $0xa4] sm:$0x1]
      %v3489 = vld [vmem:[#allocation3 + $0xa8] sm:$0xf]
      %v3490 = vld [vmem:[#allocation3 + $0xac] sm:$0xf]
      %v3491 = vld [vmem:[#allocation3 + $0xb0] sm:$0x1]
      %v3492 = vld [vmem:[#allocation3 + $0xb4] sm:$0xf]
      %v3493 = vld [vmem:[#allocation3 + $0xb8] sm:$0xf]
      %v3494 = vld [vmem:[#allocation3 + $0xbc] sm:$0x1]
      %v3495 = vld [vmem:[#allocation3 + $0xc0] sm:$0xf]
      %v3496 = vld [vmem:[#allocation3 + $0xc4] sm:$0xf]
      %v3497 = vld [vmem:[#allocation3 + $0xc8] sm:$0x1]
      %v3498 = vld [vmem:[#allocation3 + $0xcc] sm:$0xf]
      %v3499 = vld [vmem:[#allocation3 + $0xd0] sm:$0xf]
      %v3500 = vld [vmem:[#allocation3 + $0xd4] sm:$0x1]
      %v3501 = vld [vmem:[%s3] sm:$0x3]
      %v3502 = vld [vmem:[%s3] sm:$0xc]
      %v3504 = vshrl.u32 %v3447, 16
      %v3506 = vrot.slane %v3504, 4
      %v3507 = vshll.u32 %v3447, 16
      %v3509 = vrot.slane %v3507, 5
      %v3510 = vor.u32 %v3506, %v3509
      %v3511 = vrot.slane %v3510, 4
      %v3513 = vshll.u32 %v3448, 16
      %v3515 = vrot.slane %v3513, 5
      %v3516 = vsel %vm899, %v3511, %v3515
      %v3517 = vshrl.u32 %v3448, 16
      %v3519 = vrot.slane %v3517, 4
      %v3520 = vor.u32 %v3519, %v3515
      %v3521 = vrot.slane %v3520, 4
      %v3523 = vshll.u32 %v3449, 16
      %v3525 = vrot.slane %v3523, 5
      %v3526 = vsel %vm899, %v3521, %v3525
      %v3528 = vshrl.u32 %v3450, 16
      %v3530 = vrot.slane %v3528, 4
      %v3531 = vshll.u32 %v3450, 16
      %v3533 = vrot.slane %v3531, 5
      %v3534 = vor.u32 %v3530, %v3533
      %v3535 = vrot.slane %v3534, 4
      %v3537 = vshll.u32 %v3451, 16
      %v3539 = vrot.slane %v3537, 5
      %v3540 = vsel %vm899, %v3535, %v3539
      %v3541 = vshrl.u32 %v3451, 16
      %v3543 = vrot.slane %v3541, 4
      %v3544 = vor.u32 %v3543, %v3539
      %v3545 = vrot.slane %v3544, 4
      %v3547 = vshll.u32 %v3452, 16
      %v3549 = vrot.slane %v3547, 5
      %v3550 = vsel %vm899, %v3545, %v3549
      %v3552 = vshrl.u32 %v3453, 16
      %v3554 = vrot.slane %v3552, 4
      %v3555 = vshll.u32 %v3453, 16
      %v3557 = vrot.slane %v3555, 5
      %v3558 = vor.u32 %v3554, %v3557
      %v3559 = vrot.slane %v3558, 4
      %v3561 = vshll.u32 %v3454, 16
      %v3563 = vrot.slane %v3561, 5
      %v3564 = vsel %vm899, %v3559, %v3563
      %v3565 = vshrl.u32 %v3454, 16
      %v3567 = vrot.slane %v3565, 4
      %v3568 = vor.u32 %v3567, %v3563
      %v3569 = vrot.slane %v3568, 4
      %v3571 = vshll.u32 %v3455, 16
      %v3573 = vrot.slane %v3571, 5
      %v3574 = vsel %vm899, %v3569, %v3573
      %v3576 = vshrl.u32 %v3456, 16
      %v3578 = vrot.slane %v3576, 4
      %v3579 = vshll.u32 %v3456, 16
      %v3581 = vrot.slane %v3579, 5
      %v3582 = vor.u32 %v3578, %v3581
      %v3583 = vrot.slane %v3582, 4
      %v3585 = vshll.u32 %v3457, 16
      %v3587 = vrot.slane %v3585, 5
      %v3588 = vsel %vm899, %v3583, %v3587
      %v3589 = vshrl.u32 %v3457, 16
      %v3591 = vrot.slane %v3589, 4
      %v3592 = vor.u32 %v3591, %v3587
      %v3593 = vrot.slane %v3592, 4
      %v3595 = vshll.u32 %v3458, 16
      %v3597 = vrot.slane %v3595, 5
      %v3598 = vsel %vm899, %v3593, %v3597
      %v3600 = vshrl.u32 %v3459, 16
      %v3602 = vrot.slane %v3600, 4
      %v3603 = vshll.u32 %v3459, 16
      %v3605 = vrot.slane %v3603, 5
      %v3606 = vor.u32 %v3602, %v3605
      %v3607 = vrot.slane %v3606, 4
      %v3609 = vshll.u32 %v3460, 16
      %v3611 = vrot.slane %v3609, 5
      %v3612 = vsel %vm899, %v3607, %v3611
      %v3613 = vshrl.u32 %v3460, 16
      %v3615 = vrot.slane %v3613, 4
      %v3616 = vor.u32 %v3615, %v3611
      %v3617 = vrot.slane %v3616, 4
      %v3619 = vshll.u32 %v3461, 16
      %v3621 = vrot.slane %v3619, 5
      %v3622 = vsel %vm899, %v3617, %v3621
      %v3624 = vshrl.u32 %v3462, 16
      %v3626 = vrot.slane %v3624, 4
      %v3627 = vshll.u32 %v3462, 16
      %v3629 = vrot.slane %v3627, 5
      %v3630 = vor.u32 %v3626, %v3629
      %v3631 = vrot.slane %v3630, 4
      %v3633 = vshll.u32 %v3463, 16
      %v3635 = vrot.slane %v3633, 5
      %v3636 = vsel %vm899, %v3631, %v3635
      %v3637 = vshrl.u32 %v3463, 16
      %v3639 = vrot.slane %v3637, 4
      %v3640 = vor.u32 %v3639, %v3635
      %v3641 = vrot.slane %v3640, 4
      %v3643 = vshll.u32 %v3464, 16
      %v3645 = vrot.slane %v3643, 5
      %v3646 = vsel %vm899, %v3641, %v3645
      %v3648 = vshrl.u32 %v3465, 16
      %v3650 = vrot.slane %v3648, 4
      %v3651 = vshll.u32 %v3465, 16
      %v3653 = vrot.slane %v3651, 5
      %v3654 = vor.u32 %v3650, %v3653
      %v3655 = vrot.slane %v3654, 4
      %v3657 = vshll.u32 %v3466, 16
      %v3659 = vrot.slane %v3657, 5
      %v3660 = vsel %vm899, %v3655, %v3659
      %v3661 = vshrl.u32 %v3466, 16
      %v3663 = vrot.slane %v3661, 4
      %v3664 = vor.u32 %v3663, %v3659
      %v3665 = vrot.slane %v3664, 4
      %v3667 = vshll.u32 %v3467, 16
      %v3669 = vrot.slane %v3667, 5
      %v3670 = vsel %vm899, %v3665, %v3669
      %v3672 = vshrl.u32 %v3468, 16
      %v3674 = vrot.slane %v3672, 4
      %v3675 = vshll.u32 %v3468, 16
      %v3677 = vrot.slane %v3675, 5
      %v3678 = vor.u32 %v3674, %v3677
      %v3679 = vrot.slane %v3678, 4
      %v3681 = vshll.u32 %v3469, 16
      %v3683 = vrot.slane %v3681, 5
      %v3684 = vsel %vm899, %v3679, %v3683
      %v3685 = vshrl.u32 %v3469, 16
      %v3687 = vrot.slane %v3685, 4
      %v3688 = vor.u32 %v3687, %v3683
      %v3689 = vrot.slane %v3688, 4
      %v3691 = vshll.u32 %v3470, 16
      %v3693 = vrot.slane %v3691, 5
      %v3694 = vsel %vm899, %v3689, %v3693
      %v3696 = vshrl.u32 %v3471, 16
      %v3698 = vrot.slane %v3696, 4
      %v3699 = vshll.u32 %v3471, 16
      %v3701 = vrot.slane %v3699, 5
      %v3702 = vor.u32 %v3698, %v3701
      %v3703 = vrot.slane %v3702, 4
      %v3705 = vshll.u32 %v3472, 16
      %v3707 = vrot.slane %v3705, 5
      %v3708 = vsel %vm899, %v3703, %v3707
      %v3709 = vshrl.u32 %v3472, 16
      %v3711 = vrot.slane %v3709, 4
      %v3712 = vor.u32 %v3711, %v3707
      %v3713 = vrot.slane %v3712, 4
      %v3715 = vshll.u32 %v3473, 16
      %v3717 = vrot.slane %v3715, 5
      %v3718 = vsel %vm899, %v3713, %v3717
      %v3720 = vshrl.u32 %v3474, 16
      %v3722 = vrot.slane %v3720, 4
      %v3723 = vshll.u32 %v3474, 16
      %v3725 = vrot.slane %v3723, 5
      %v3726 = vor.u32 %v3722, %v3725
      %v3727 = vrot.slane %v3726, 4
      %v3729 = vshll.u32 %v3475, 16
      %v3731 = vrot.slane %v3729, 5
      %v3732 = vsel %vm899, %v3727, %v3731
      %v3733 = vshrl.u32 %v3475, 16
      %v3735 = vrot.slane %v3733, 4
      %v3736 = vor.u32 %v3735, %v3731
      %v3737 = vrot.slane %v3736, 4
      %v3739 = vshll.u32 %v3476, 16
      %v3741 = vrot.slane %v3739, 5
      %v3742 = vsel %vm899, %v3737, %v3741
      %v3744 = vshrl.u32 %v3477, 16
      %v3746 = vrot.slane %v3744, 4
      %v3747 = vshll.u32 %v3477, 16
      %v3749 = vrot.slane %v3747, 5
      %v3750 = vor.u32 %v3746, %v3749
      %v3751 = vrot.slane %v3750, 4
      %v3753 = vshll.u32 %v3478, 16
      %v3755 = vrot.slane %v3753, 5
      %v3756 = vsel %vm899, %v3751, %v3755
      %v3757 = vshrl.u32 %v3478, 16
      %v3759 = vrot.slane %v3757, 4
      %v3760 = vor.u32 %v3759, %v3755
      %v3761 = vrot.slane %v3760, 4
      %v3763 = vshll.u32 %v3479, 16
      %v3765 = vrot.slane %v3763, 5
      %v3766 = vsel %vm899, %v3761, %v3765
      %v3768 = vshrl.u32 %v3480, 16
      %v3770 = vrot.slane %v3768, 4
      %v3771 = vshll.u32 %v3480, 16
      %v3773 = vrot.slane %v3771, 5
      %v3774 = vor.u32 %v3770, %v3773
      %v3775 = vrot.slane %v3774, 4
      %v3777 = vshll.u32 %v3481, 16
      %v3779 = vrot.slane %v3777, 5
      %v3780 = vsel %vm899, %v3775, %v3779
      %v3781 = vshrl.u32 %v3481, 16
      %v3783 = vrot.slane %v3781, 4
      %v3784 = vor.u32 %v3783, %v3779
      %v3785 = vrot.slane %v3784, 4
      %v3787 = vshll.u32 %v3482, 16
      %v3789 = vrot.slane %v3787, 5
      %v3790 = vsel %vm899, %v3785, %v3789
      %v3792 = vshrl.u32 %v3483, 16
      %v3794 = vrot.slane %v3792, 4
      %v3795 = vshll.u32 %v3483, 16
      %v3797 = vrot.slane %v3795, 5
      %v3798 = vor.u32 %v3794, %v3797
      %v3799 = vrot.slane %v3798, 4
      %v3801 = vshll.u32 %v3484, 16
      %v3803 = vrot.slane %v3801, 5
      %v3804 = vsel %vm899, %v3799, %v3803
      %v3805 = vshrl.u32 %v3484, 16
      %v3807 = vrot.slane %v3805, 4
      %v3808 = vor.u32 %v3807, %v3803
      %v3809 = vrot.slane %v3808, 4
      %v3811 = vshll.u32 %v3485, 16
      %v3813 = vrot.slane %v3811, 5
      %v3814 = vsel %vm899, %v3809, %v3813
      %v3816 = vshrl.u32 %v3486, 16
      %v3818 = vrot.slane %v3816, 4
      %v3819 = vshll.u32 %v3486, 16
      %v3821 = vrot.slane %v3819, 5
      %v3822 = vor.u32 %v3818, %v3821
      %v3823 = vrot.slane %v3822, 4
      %v3825 = vshll.u32 %v3487, 16
      %v3827 = vrot.slane %v3825, 5
      %v3828 = vsel %vm899, %v3823, %v3827
      %v3829 = vshrl.u32 %v3487, 16
      %v3831 = vrot.slane %v3829, 4
      %v3832 = vor.u32 %v3831, %v3827
      %v3833 = vrot.slane %v3832, 4
      %v3835 = vshll.u32 %v3488, 16
      %v3837 = vrot.slane %v3835, 5
      %v3838 = vsel %vm899, %v3833, %v3837
      %v3840 = vshrl.u32 %v3489, 16
      %v3842 = vrot.slane %v3840, 4
      %v3843 = vshll.u32 %v3489, 16
      %v3845 = vrot.slane %v3843, 5
      %v3846 = vor.u32 %v3842, %v3845
      %v3847 = vrot.slane %v3846, 4
      %v3849 = vshll.u32 %v3490, 16
      %v3851 = vrot.slane %v3849, 5
      %v3852 = vsel %vm899, %v3847, %v3851
      %v3853 = vshrl.u32 %v3490, 16
      %v3855 = vrot.slane %v3853, 4
      %v3856 = vor.u32 %v3855, %v3851
      %v3857 = vrot.slane %v3856, 4
      %v3859 = vshll.u32 %v3491, 16
      %v3861 = vrot.slane %v3859, 5
      %v3862 = vsel %vm899, %v3857, %v3861
      %v3864 = vshrl.u32 %v3492, 16
      %v3866 = vrot.slane %v3864, 4
      %v3867 = vshll.u32 %v3492, 16
      %v3869 = vrot.slane %v3867, 5
      %v3870 = vor.u32 %v3866, %v3869
      %v3871 = vrot.slane %v3870, 4
      %v3873 = vshll.u32 %v3493, 16
      %v3875 = vrot.slane %v3873, 5
      %v3876 = vsel %vm899, %v3871, %v3875
      %v3877 = vshrl.u32 %v3493, 16
      %v3879 = vrot.slane %v3877, 4
      %v3880 = vor.u32 %v3879, %v3875
      %v3881 = vrot.slane %v3880, 4
      %v3883 = vshll.u32 %v3494, 16
      %v3885 = vrot.slane %v3883, 5
      %v3886 = vsel %vm899, %v3881, %v3885
      %v3887 = vunpack.c.l.b16 %v3516
      %v3888 = vunpack.c.l.b16 %v3526
      %v3889 = vunpack.c.l.b16 %v3540
      %v3890 = vunpack.c.l.b16 %v3550
      %v3891 = vunpack.c.l.b16 %v3564
      %v3892 = vunpack.c.l.b16 %v3574
      %v3893 = vunpack.c.l.b16 %v3588
      %v3894 = vunpack.c.l.b16 %v3598
      %v3895 = vunpack.c.l.b16 %v3612
      %v3896 = vunpack.c.l.b16 %v3622
      %v3897 = vunpack.c.l.b16 %v3636
      %v3898 = vunpack.c.l.b16 %v3646
      %v3899 = vunpack.c.l.b16 %v3660
      %v3900 = vunpack.c.l.b16 %v3670
      %v3901 = vunpack.c.l.b16 %v3684
      %v3902 = vunpack.c.l.b16 %v3694
      %v3903 = vunpack.c.l.b16 %v3708
      %v3904 = vunpack.c.l.b16 %v3718
      %v3905 = vunpack.c.l.b16 %v3732
      %v3906 = vunpack.c.l.b16 %v3742
      %v3907 = vunpack.c.l.b16 %v3756
      %v3908 = vunpack.c.l.b16 %v3766
      %v3909 = vunpack.c.l.b16 %v3780
      %v3910 = vunpack.c.l.b16 %v3790
      %v3911 = vunpack.c.l.b16 %v3804
      %v3912 = vunpack.c.l.b16 %v3814
      %v3913 = vunpack.c.l.b16 %v3828
      %v3914 = vunpack.c.l.b16 %v3838
      %v3915 = vunpack.c.l.b16 %v3852
      %v3916 = vunpack.c.l.b16 %v3862
      %v3917 = vunpack.c.l.b16 %v3876
      %v3918 = vunpack.c.l.b16 %v3886
      %v3919 = vpack.c.b16 %v3888, %v3887
      %v3920 = vpack.c.b16 %v3890, %v3889
      %v3921 = vpack.c.b16 %v3892, %v3891
      %v3922 = vpack.c.b16 %v3894, %v3893
      %v3923 = vpack.c.b16 %v3896, %v3895
      %v3924 = vpack.c.b16 %v3898, %v3897
      %v3925 = vpack.c.b16 %v3900, %v3899
      %v3926 = vpack.c.b16 %v3902, %v3901
      %v3927 = vpack.c.b16 %v3904, %v3903
      %v3928 = vpack.c.b16 %v3906, %v3905
      %v3929 = vpack.c.b16 %v3908, %v3907
      %v3930 = vpack.c.b16 %v3910, %v3909
      %v3931 = vpack.c.b16 %v3912, %v3911
      %v3932 = vpack.c.b16 %v3914, %v3913
      %v3933 = vpack.c.b16 %v3916, %v3915
      %v3934 = vpack.c.b16 %v3918, %v3917
      %v3936 = vunpack.c.l.b16 %v3502
      %v3937 = vpack.c.b16 %v3936, %v3936
      %v3938 = vrot.slane %v3937, 2
      %v3940 = vsel %vm1336, %v3919, 0
      %v3943 = vsel %vm1336, %v3920, 0
      %v3946 = vsel %vm1336, %v3921, 0
      %v3949 = vsel %vm1336, %v3922, 0
      %v3952 = vsel %vm1336, %v3923, 0
      %v3955 = vsel %vm1336, %v3924, 0
      %v3958 = vsel %vm1336, %v3925, 0
      %v3961 = vsel %vm1336, %v3926, 0
      %v3964 = vsel %vm1336, %v3927, 0
      %v3967 = vsel %vm1336, %v3928, 0
      %v3970 = vsel %vm1336, %v3929, 0
      %v3973 = vsel %vm1336, %v3930, 0
      %v3976 = vsel %vm1336, %v3931, 0
      %v3979 = vsel %vm1336, %v3932, 0
      %v3982 = vsel %vm1336, %v3933, 0
      %v3985 = vsel %vm1336, %v3934, 0
      %v3988 = vsel %vm1385, %v3938, 0
      %3990 = vmatpush.bf16.msra.mxu0 0
      %3991 = vmatpush.bf16.msra.mxu0 0
      %3992 = vmatpush.bf16.msra.mxu0 0
      %3993 = vmatpush.bf16.msra.mxu0 0
      %3994 = vmatpush.bf16.msra.mxu0 0
      %3995 = vmatpush.bf16.msra.mxu0 0
      %3996 = vmatpush.bf16.msra.mxu0 0
      %3997 = vmatpush.bf16.msra.mxu0 %v3988
      %3998 = vmatmul.bf16.gmra.mxu0 %v3940
      %v3999 = vpop.f32.mrf.mxu0
      %v4000 = vadd.f32 0.0, %v3999
      %v4001 = vpop.f32.mrf.mxu0
      %v4002 = vadd.f32 0.0, %v4001
      %4003 = vmatmul.bf16.gmra.mxu0 %v3943
      %v4004 = vpop.f32.mrf.mxu0
      %v4005 = vadd.f32 0.0, %v4004
      %v4006 = vpop.f32.mrf.mxu0
      %v4007 = vadd.f32 0.0, %v4006
      %4008 = vmatmul.bf16.gmra.mxu0 %v3946
      %v4009 = vpop.f32.mrf.mxu0
      %v4010 = vadd.f32 0.0, %v4009
      %v4011 = vpop.f32.mrf.mxu0
      %v4012 = vadd.f32 0.0, %v4011
      %4013 = vmatmul.bf16.gmra.mxu0 %v3949
      %v4014 = vpop.f32.mrf.mxu0
      %v4015 = vadd.f32 0.0, %v4014
      %v4016 = vpop.f32.mrf.mxu0
      %v4017 = vadd.f32 0.0, %v4016
      %4018 = vmatmul.bf16.gmra.mxu0 %v3952
      %v4019 = vpop.f32.mrf.mxu0
      %v4020 = vadd.f32 0.0, %v4019
      %v4021 = vpop.f32.mrf.mxu0
      %v4022 = vadd.f32 0.0, %v4021
      %4023 = vmatmul.bf16.gmra.mxu0 %v3955
      %v4024 = vpop.f32.mrf.mxu0
      %v4025 = vadd.f32 0.0, %v4024
      %v4026 = vpop.f32.mrf.mxu0
      %v4027 = vadd.f32 0.0, %v4026
      %4028 = vmatmul.bf16.gmra.mxu0 %v3958
      %v4029 = vpop.f32.mrf.mxu0
      %v4030 = vadd.f32 0.0, %v4029
      %v4031 = vpop.f32.mrf.mxu0
      %v4032 = vadd.f32 0.0, %v4031
      %4033 = vmatmul.bf16.gmra.mxu0 %v3961
      %v4034 = vpop.f32.mrf.mxu0
      %v4035 = vadd.f32 0.0, %v4034
      %v4036 = vpop.f32.mrf.mxu0
      %v4037 = vadd.f32 0.0, %v4036
      %4038 = vmatmul.bf16.gmra.mxu0 %v3964
      %v4039 = vpop.f32.mrf.mxu0
      %v4040 = vadd.f32 0.0, %v4039
      %v4041 = vpop.f32.mrf.mxu0
      %v4042 = vadd.f32 0.0, %v4041
      %4043 = vmatmul.bf16.gmra.mxu0 %v3967
      %v4044 = vpop.f32.mrf.mxu0
      %v4045 = vadd.f32 0.0, %v4044
      %v4046 = vpop.f32.mrf.mxu0
      %v4047 = vadd.f32 0.0, %v4046
      %4048 = vmatmul.bf16.gmra.mxu0 %v3970
      %v4049 = vpop.f32.mrf.mxu0
      %v4050 = vadd.f32 0.0, %v4049
      %v4051 = vpop.f32.mrf.mxu0
      %v4052 = vadd.f32 0.0, %v4051
      %4053 = vmatmul.bf16.gmra.mxu0 %v3973
      %v4054 = vpop.f32.mrf.mxu0
      %v4055 = vadd.f32 0.0, %v4054
      %v4056 = vpop.f32.mrf.mxu0
      %v4057 = vadd.f32 0.0, %v4056
      %4058 = vmatmul.bf16.gmra.mxu0 %v3976
      %v4059 = vpop.f32.mrf.mxu0
      %v4060 = vadd.f32 0.0, %v4059
      %v4061 = vpop.f32.mrf.mxu0
      %v4062 = vadd.f32 0.0, %v4061
      %4063 = vmatmul.bf16.gmra.mxu0 %v3979
      %v4064 = vpop.f32.mrf.mxu0
      %v4065 = vadd.f32 0.0, %v4064
      %v4066 = vpop.f32.mrf.mxu0
      %v4067 = vadd.f32 0.0, %v4066
      %4068 = vmatmul.bf16.gmra.mxu0 %v3982
      %v4069 = vpop.f32.mrf.mxu0
      %v4070 = vadd.f32 0.0, %v4069
      %v4071 = vpop.f32.mrf.mxu0
      %v4072 = vadd.f32 0.0, %v4071
      %4073 = vmatmul.bf16.gmra.mxu0 %v3985
      %v4074 = vpop.f32.mrf.mxu0
      %v4075 = vadd.f32 0.0, %v4074
      %v4076 = vpop.f32.mrf.mxu0
      %v4077 = vadd.f32 0.0, %v4076
      %4078 = vdwg.mxu0
      %v4111 = vunpack.c.l.b16 %v3447
      %v4112 = vunpack.c.l.b16 %v3448
      %v4113 = vunpack.c.l.b16 %v3450
      %v4114 = vunpack.c.l.b16 %v3451
      %v4115 = vunpack.c.l.b16 %v3453
      %v4116 = vunpack.c.l.b16 %v3454
      %v4117 = vunpack.c.l.b16 %v3456
      %v4118 = vunpack.c.l.b16 %v3457
      %v4119 = vunpack.c.l.b16 %v3459
      %v4120 = vunpack.c.l.b16 %v3460
      %v4121 = vunpack.c.l.b16 %v3462
      %v4122 = vunpack.c.l.b16 %v3463
      %v4123 = vunpack.c.l.b16 %v3465
      %v4124 = vunpack.c.l.b16 %v3466
      %v4125 = vunpack.c.l.b16 %v3468
      %v4126 = vunpack.c.l.b16 %v3469
      %v4127 = vunpack.c.l.b16 %v3471
      %v4128 = vunpack.c.l.b16 %v3472
      %v4129 = vunpack.c.l.b16 %v3474
      %v4130 = vunpack.c.l.b16 %v3475
      %v4131 = vunpack.c.l.b16 %v3477
      %v4132 = vunpack.c.l.b16 %v3478
      %v4133 = vunpack.c.l.b16 %v3480
      %v4134 = vunpack.c.l.b16 %v3481
      %v4135 = vunpack.c.l.b16 %v3483
      %v4136 = vunpack.c.l.b16 %v3484
      %v4137 = vunpack.c.l.b16 %v3486
      %v4138 = vunpack.c.l.b16 %v3487
      %v4139 = vunpack.c.l.b16 %v3489
      %v4140 = vunpack.c.l.b16 %v3490
      %v4141 = vunpack.c.l.b16 %v3492
      %v4142 = vunpack.c.l.b16 %v3493
      %v4143 = vpack.c.b16 %v4112, %v4111
      %v4144 = vpack.c.b16 %v4114, %v4113
      %v4145 = vpack.c.b16 %v4116, %v4115
      %v4146 = vpack.c.b16 %v4118, %v4117
      %v4147 = vpack.c.b16 %v4120, %v4119
      %v4148 = vpack.c.b16 %v4122, %v4121
      %v4149 = vpack.c.b16 %v4124, %v4123
      %v4150 = vpack.c.b16 %v4126, %v4125
      %v4151 = vpack.c.b16 %v4128, %v4127
      %v4152 = vpack.c.b16 %v4130, %v4129
      %v4153 = vpack.c.b16 %v4132, %v4131
      %v4154 = vpack.c.b16 %v4134, %v4133
      %v4155 = vpack.c.b16 %v4136, %v4135
      %v4156 = vpack.c.b16 %v4138, %v4137
      %v4157 = vpack.c.b16 %v4140, %v4139
      %v4158 = vpack.c.b16 %v4142, %v4141
      %v4160 = vsel %vm1336, %v4143, 0
      %v4163 = vsel %vm1336, %v4144, 0
      %v4166 = vsel %vm1336, %v4145, 0
      %v4169 = vsel %vm1336, %v4146, 0
      %v4172 = vsel %vm1336, %v4147, 0
      %v4175 = vsel %vm1336, %v4148, 0
      %v4178 = vsel %vm1336, %v4149, 0
      %v4181 = vsel %vm1336, %v4150, 0
      %v4184 = vsel %vm1336, %v4151, 0
      %v4187 = vsel %vm1336, %v4152, 0
      %v4190 = vsel %vm1336, %v4153, 0
      %v4193 = vsel %vm1336, %v4154, 0
      %v4196 = vsel %vm1336, %v4155, 0
      %v4199 = vsel %vm1336, %v4156, 0
      %v4202 = vsel %vm1336, %v4157, 0
      %v4205 = vsel %vm1336, %v4158, 0
      %v4208 = vsel %vm1385, %v3501, 0
      %4210 = vmatpush.bf16.msra.mxu0 0
      %4211 = vmatpush.bf16.msra.mxu0 0
      %4212 = vmatpush.bf16.msra.mxu0 0
      %4213 = vmatpush.bf16.msra.mxu0 0
      %4214 = vmatpush.bf16.msra.mxu0 0
      %4215 = vmatpush.bf16.msra.mxu0 0
      %4216 = vmatpush.bf16.msra.mxu0 0
      %4217 = vmatpush.bf16.msra.mxu0 %v4208
      %4218 = vmatmul.bf16.gmra.mxu0 %v4160
      %v4219 = vpop.f32.mrf.mxu0
      %v4220 = vadd.f32 %v4000, %v4219
      %v4221 = vpop.f32.mrf.mxu0
      %v4222 = vadd.f32 %v4002, %v4221
      %4223 = vmatmul.bf16.gmra.mxu0 %v4163
      %v4224 = vpop.f32.mrf.mxu0
      %v4225 = vadd.f32 %v4005, %v4224
      %v4226 = vpop.f32.mrf.mxu0
      %v4227 = vadd.f32 %v4007, %v4226
      %4228 = vmatmul.bf16.gmra.mxu0 %v4166
      %v4229 = vpop.f32.mrf.mxu0
      %v4230 = vadd.f32 %v4010, %v4229
      %v4231 = vpop.f32.mrf.mxu0
      %v4232 = vadd.f32 %v4012, %v4231
      %4233 = vmatmul.bf16.gmra.mxu0 %v4169
      %v4234 = vpop.f32.mrf.mxu0
      %v4235 = vadd.f32 %v4015, %v4234
      %v4236 = vpop.f32.mrf.mxu0
      %v4237 = vadd.f32 %v4017, %v4236
      %4238 = vmatmul.bf16.gmra.mxu0 %v4172
      %v4239 = vpop.f32.mrf.mxu0
      %v4240 = vadd.f32 %v4020, %v4239
      %v4241 = vpop.f32.mrf.mxu0
      %v4242 = vadd.f32 %v4022, %v4241
      %4243 = vmatmul.bf16.gmra.mxu0 %v4175
      %v4244 = vpop.f32.mrf.mxu0
      %v4245 = vadd.f32 %v4025, %v4244
      %v4246 = vpop.f32.mrf.mxu0
      %v4247 = vadd.f32 %v4027, %v4246
      %4248 = vmatmul.bf16.gmra.mxu0 %v4178
      %v4249 = vpop.f32.mrf.mxu0
      %v4250 = vadd.f32 %v4030, %v4249
      %v4251 = vpop.f32.mrf.mxu0
      %v4252 = vadd.f32 %v4032, %v4251
      %4253 = vmatmul.bf16.gmra.mxu0 %v4181
      %v4254 = vpop.f32.mrf.mxu0
      %v4255 = vadd.f32 %v4035, %v4254
      %v4256 = vpop.f32.mrf.mxu0
      %v4257 = vadd.f32 %v4037, %v4256
      %4258 = vmatmul.bf16.gmra.mxu0 %v4184
      %v4259 = vpop.f32.mrf.mxu0
      %v4260 = vadd.f32 %v4040, %v4259
      %v4261 = vpop.f32.mrf.mxu0
      %v4262 = vadd.f32 %v4042, %v4261
      %4263 = vmatmul.bf16.gmra.mxu0 %v4187
      %v4264 = vpop.f32.mrf.mxu0
      %v4265 = vadd.f32 %v4045, %v4264
      %v4266 = vpop.f32.mrf.mxu0
      %v4267 = vadd.f32 %v4047, %v4266
      %4268 = vmatmul.bf16.gmra.mxu0 %v4190
      %v4269 = vpop.f32.mrf.mxu0
      %v4270 = vadd.f32 %v4050, %v4269
      %v4271 = vpop.f32.mrf.mxu0
      %v4272 = vadd.f32 %v4052, %v4271
      %4273 = vmatmul.bf16.gmra.mxu0 %v4193
      %v4274 = vpop.f32.mrf.mxu0
      %v4275 = vadd.f32 %v4055, %v4274
      %v4276 = vpop.f32.mrf.mxu0
      %v4277 = vadd.f32 %v4057, %v4276
      %4278 = vmatmul.bf16.gmra.mxu0 %v4196
      %v4279 = vpop.f32.mrf.mxu0
      %v4280 = vadd.f32 %v4060, %v4279
      %v4281 = vpop.f32.mrf.mxu0
      %v4282 = vadd.f32 %v4062, %v4281
      %4283 = vmatmul.bf16.gmra.mxu0 %v4199
      %v4284 = vpop.f32.mrf.mxu0
      %v4285 = vadd.f32 %v4065, %v4284
      %v4286 = vpop.f32.mrf.mxu0
      %v4287 = vadd.f32 %v4067, %v4286
      %4288 = vmatmul.bf16.gmra.mxu0 %v4202
      %v4289 = vpop.f32.mrf.mxu0
      %v4290 = vadd.f32 %v4070, %v4289
      %v4291 = vpop.f32.mrf.mxu0
      %v4292 = vadd.f32 %v4072, %v4291
      %4293 = vmatmul.bf16.gmra.mxu0 %v4205
      %v4294 = vpop.f32.mrf.mxu0
      %v4295 = vadd.f32 %v4075, %v4294
      %v4296 = vpop.f32.mrf.mxu0
      %v4297 = vadd.f32 %v4077, %v4296
      %4298 = vdwg.mxu0
      %v4299 = vld [vmem:[%s3 + $0x4] sm:$0x3]
      %v4316 = vrot.slane %v3447, 5
      %v4317 = vrot.slane %v4316, 4
      %v4318 = vrot.slane %v3448, 5
      %v4319 = vsel %vm1717, %v4317, %v4318
      %v4320 = vrot.slane %v4318, 4
      %v4321 = vrot.slane %v3449, 5
      %v4322 = vsel %vm1717, %v4320, %v4321
      %v4323 = vrot.slane %v3450, 5
      %v4324 = vrot.slane %v4323, 4
      %v4325 = vrot.slane %v3451, 5
      %v4326 = vsel %vm1717, %v4324, %v4325
      %v4327 = vrot.slane %v4325, 4
      %v4328 = vrot.slane %v3452, 5
      %v4329 = vsel %vm1717, %v4327, %v4328
      %v4330 = vrot.slane %v3453, 5
      %v4331 = vrot.slane %v4330, 4
      %v4332 = vrot.slane %v3454, 5
      %v4333 = vsel %vm1717, %v4331, %v4332
      %v4334 = vrot.slane %v4332, 4
      %v4335 = vrot.slane %v3455, 5
      %v4336 = vsel %vm1717, %v4334, %v4335
      %v4337 = vrot.slane %v3456, 5
      %v4338 = vrot.slane %v4337, 4
      %v4339 = vrot.slane %v3457, 5
      %v4340 = vsel %vm1717, %v4338, %v4339
      %v4341 = vrot.slane %v4339, 4
      %v4342 = vrot.slane %v3458, 5
      %v4343 = vsel %vm1717, %v4341, %v4342
      %v4344 = vrot.slane %v3459, 5
      %v4345 = vrot.slane %v4344, 4
      %v4346 = vrot.slane %v3460, 5
      %v4347 = vsel %vm1717, %v4345, %v4346
      %v4348 = vrot.slane %v4346, 4
      %v4349 = vrot.slane %v3461, 5
      %v4350 = vsel %vm1717, %v4348, %v4349
      %v4351 = vrot.slane %v3462, 5
      %v4352 = vrot.slane %v4351, 4
      %v4353 = vrot.slane %v3463, 5
      %v4354 = vsel %vm1717, %v4352, %v4353
      %v4355 = vrot.slane %v4353, 4
      %v4356 = vrot.slane %v3464, 5
      %v4357 = vsel %vm1717, %v4355, %v4356
      %v4358 = vrot.slane %v3465, 5
      %v4359 = vrot.slane %v4358, 4
      %v4360 = vrot.slane %v3466, 5
      %v4361 = vsel %vm1717, %v4359, %v4360
      %v4362 = vrot.slane %v4360, 4
      %v4363 = vrot.slane %v3467, 5
      %v4364 = vsel %vm1717, %v4362, %v4363
      %v4365 = vrot.slane %v3468, 5
      %v4366 = vrot.slane %v4365, 4
      %v4367 = vrot.slane %v3469, 5
      %v4368 = vsel %vm1717, %v4366, %v4367
      %v4369 = vrot.slane %v4367, 4
      %v4370 = vrot.slane %v3470, 5
      %v4371 = vsel %vm1717, %v4369, %v4370
      %v4372 = vrot.slane %v3471, 5
      %v4373 = vrot.slane %v4372, 4
      %v4374 = vrot.slane %v3472, 5
      %v4375 = vsel %vm1717, %v4373, %v4374
      %v4376 = vrot.slane %v4374, 4
      %v4377 = vrot.slane %v3473, 5
      %v4378 = vsel %vm1717, %v4376, %v4377
      %v4379 = vrot.slane %v3474, 5
      %v4380 = vrot.slane %v4379, 4
      %v4381 = vrot.slane %v3475, 5
      %v4382 = vsel %vm1717, %v4380, %v4381
      %v4383 = vrot.slane %v4381, 4
      %v4384 = vrot.slane %v3476, 5
      %v4385 = vsel %vm1717, %v4383, %v4384
      %v4386 = vrot.slane %v3477, 5
      %v4387 = vrot.slane %v4386, 4
      %v4388 = vrot.slane %v3478, 5
      %v4389 = vsel %vm1717, %v4387, %v4388
      %v4390 = vrot.slane %v4388, 4
      %v4391 = vrot.slane %v3479, 5
      %v4392 = vsel %vm1717, %v4390, %v4391
      %v4393 = vrot.slane %v3480, 5
      %v4394 = vrot.slane %v4393, 4
      %v4395 = vrot.slane %v3481, 5
      %v4396 = vsel %vm1717, %v4394, %v4395
      %v4397 = vrot.slane %v4395, 4
      %v4398 = vrot.slane %v3482, 5
      %v4399 = vsel %vm1717, %v4397, %v4398
      %v4400 = vrot.slane %v3483, 5
      %v4401 = vrot.slane %v4400, 4
      %v4402 = vrot.slane %v3484, 5
      %v4403 = vsel %vm1717, %v4401, %v4402
      %v4404 = vrot.slane %v4402, 4
      %v4405 = vrot.slane %v3485, 5
      %v4406 = vsel %vm1717, %v4404, %v4405
      %v4407 = vrot.slane %v3486, 5
      %v4408 = vrot.slane %v4407, 4
      %v4409 = vrot.slane %v3487, 5
      %v4410 = vsel %vm1717, %v4408, %v4409
      %v4411 = vrot.slane %v4409, 4
      %v4412 = vrot.slane %v3488, 5
      %v4413 = vsel %vm1717, %v4411, %v4412
      %v4414 = vrot.slane %v3489, 5
      %v4415 = vrot.slane %v4414, 4
      %v4416 = vrot.slane %v3490, 5
      %v4417 = vsel %vm1717, %v4415, %v4416
      %v4418 = vrot.slane %v4416, 4
      %v4419 = vrot.slane %v3491, 5
      %v4420 = vsel %vm1717, %v4418, %v4419
      %v4421 = vrot.slane %v3492, 5
      %v4422 = vrot.slane %v4421, 4
      %v4423 = vrot.slane %v3493, 5
      %v4424 = vsel %vm1717, %v4422, %v4423
      %v4425 = vrot.slane %v4423, 4
      %v4426 = vrot.slane %v3494, 5
      %v4427 = vsel %vm1717, %v4425, %v4426
      %v4428 = vunpack.c.l.b16 %v4319
      %v4429 = vunpack.c.l.b16 %v4322
      %v4430 = vunpack.c.l.b16 %v4326
      %v4431 = vunpack.c.l.b16 %v4329
      %v4432 = vunpack.c.l.b16 %v4333
      %v4433 = vunpack.c.l.b16 %v4336
      %v4434 = vunpack.c.l.b16 %v4340
      %v4435 = vunpack.c.l.b16 %v4343
      %v4436 = vunpack.c.l.b16 %v4347
      %v4437 = vunpack.c.l.b16 %v4350
      %v4438 = vunpack.c.l.b16 %v4354
      %v4439 = vunpack.c.l.b16 %v4357
      %v4440 = vunpack.c.l.b16 %v4361
      %v4441 = vunpack.c.l.b16 %v4364
      %v4442 = vunpack.c.l.b16 %v4368
      %v4443 = vunpack.c.l.b16 %v4371
      %v4444 = vunpack.c.l.b16 %v4375
      %v4445 = vunpack.c.l.b16 %v4378
      %v4446 = vunpack.c.l.b16 %v4382
      %v4447 = vunpack.c.l.b16 %v4385
      %v4448 = vunpack.c.l.b16 %v4389
      %v4449 = vunpack.c.l.b16 %v4392
      %v4450 = vunpack.c.l.b16 %v4396
      %v4451 = vunpack.c.l.b16 %v4399
      %v4452 = vunpack.c.l.b16 %v4403
      %v4453 = vunpack.c.l.b16 %v4406
      %v4454 = vunpack.c.l.b16 %v4410
      %v4455 = vunpack.c.l.b16 %v4413
      %v4456 = vunpack.c.l.b16 %v4417
      %v4457 = vunpack.c.l.b16 %v4420
      %v4458 = vunpack.c.l.b16 %v4424
      %v4459 = vunpack.c.l.b16 %v4427
      %v4460 = vpack.c.b16 %v4429, %v4428
      %v4461 = vpack.c.b16 %v4431, %v4430
      %v4462 = vpack.c.b16 %v4433, %v4432
      %v4463 = vpack.c.b16 %v4435, %v4434
      %v4464 = vpack.c.b16 %v4437, %v4436
      %v4465 = vpack.c.b16 %v4439, %v4438
      %v4466 = vpack.c.b16 %v4441, %v4440
      %v4467 = vpack.c.b16 %v4443, %v4442
      %v4468 = vpack.c.b16 %v4445, %v4444
      %v4469 = vpack.c.b16 %v4447, %v4446
      %v4470 = vpack.c.b16 %v4449, %v4448
      %v4471 = vpack.c.b16 %v4451, %v4450
      %v4472 = vpack.c.b16 %v4453, %v4452
      %v4473 = vpack.c.b16 %v4455, %v4454
      %v4474 = vpack.c.b16 %v4457, %v4456
      %v4475 = vpack.c.b16 %v4459, %v4458
      %v4477 = vsel %vm1336, %v4460, 0
      %v4480 = vsel %vm1336, %v4461, 0
      %v4483 = vsel %vm1336, %v4462, 0
      %v4486 = vsel %vm1336, %v4463, 0
      %v4489 = vsel %vm1336, %v4464, 0
      %v4492 = vsel %vm1336, %v4465, 0
      %v4495 = vsel %vm1336, %v4466, 0
      %v4498 = vsel %vm1336, %v4467, 0
      %v4501 = vsel %vm1336, %v4468, 0
      %v4504 = vsel %vm1336, %v4469, 0
      %v4507 = vsel %vm1336, %v4470, 0
      %v4510 = vsel %vm1336, %v4471, 0
      %v4513 = vsel %vm1336, %v4472, 0
      %v4516 = vsel %vm1336, %v4473, 0
      %v4519 = vsel %vm1336, %v4474, 0
      %v4522 = vsel %vm1336, %v4475, 0
      %v4525 = vsel %vm1385, %v4299, 0
      %4527 = vmatpush.bf16.msra.mxu0 0
      %4528 = vmatpush.bf16.msra.mxu0 0
      %4529 = vmatpush.bf16.msra.mxu0 0
      %4530 = vmatpush.bf16.msra.mxu0 0
      %4531 = vmatpush.bf16.msra.mxu0 0
      %4532 = vmatpush.bf16.msra.mxu0 0
      %4533 = vmatpush.bf16.msra.mxu0 0
      %4534 = vmatpush.bf16.msra.mxu0 %v4525
      %4535 = vmatmul.bf16.gmra.mxu0 %v4477
      %v4536 = vpop.f32.mrf.mxu0
      %v4537 = vadd.f32 0.0, %v4536
      %v4538 = vpop.f32.mrf.mxu0
      %v4539 = vadd.f32 0.0, %v4538
      %4540 = vmatmul.bf16.gmra.mxu0 %v4480
      %v4541 = vpop.f32.mrf.mxu0
      %v4542 = vadd.f32 0.0, %v4541
      %v4543 = vpop.f32.mrf.mxu0
      %v4544 = vadd.f32 0.0, %v4543
      %4545 = vmatmul.bf16.gmra.mxu0 %v4483
      %v4546 = vpop.f32.mrf.mxu0
      %v4547 = vadd.f32 0.0, %v4546
      %v4548 = vpop.f32.mrf.mxu0
      %v4549 = vadd.f32 0.0, %v4548
      %4550 = vmatmul.bf16.gmra.mxu0 %v4486
      %v4551 = vpop.f32.mrf.mxu0
      %v4552 = vadd.f32 0.0, %v4551
      %v4553 = vpop.f32.mrf.mxu0
      %v4554 = vadd.f32 0.0, %v4553
      %4555 = vmatmul.bf16.gmra.mxu0 %v4489
      %v4556 = vpop.f32.mrf.mxu0
      %v4557 = vadd.f32 0.0, %v4556
      %v4558 = vpop.f32.mrf.mxu0
      %v4559 = vadd.f32 0.0, %v4558
      %4560 = vmatmul.bf16.gmra.mxu0 %v4492
      %v4561 = vpop.f32.mrf.mxu0
      %v4562 = vadd.f32 0.0, %v4561
      %v4563 = vpop.f32.mrf.mxu0
      %v4564 = vadd.f32 0.0, %v4563
      %4565 = vmatmul.bf16.gmra.mxu0 %v4495
      %v4566 = vpop.f32.mrf.mxu0
      %v4567 = vadd.f32 0.0, %v4566
      %v4568 = vpop.f32.mrf.mxu0
      %v4569 = vadd.f32 0.0, %v4568
      %4570 = vmatmul.bf16.gmra.mxu0 %v4498
      %v4571 = vpop.f32.mrf.mxu0
      %v4572 = vadd.f32 0.0, %v4571
      %v4573 = vpop.f32.mrf.mxu0
      %v4574 = vadd.f32 0.0, %v4573
      %4575 = vmatmul.bf16.gmra.mxu0 %v4501
      %v4576 = vpop.f32.mrf.mxu0
      %v4577 = vadd.f32 0.0, %v4576
      %v4578 = vpop.f32.mrf.mxu0
      %v4579 = vadd.f32 0.0, %v4578
      %4580 = vmatmul.bf16.gmra.mxu0 %v4504
      %v4581 = vpop.f32.mrf.mxu0
      %v4582 = vadd.f32 0.0, %v4581
      %v4583 = vpop.f32.mrf.mxu0
      %v4584 = vadd.f32 0.0, %v4583
      %4585 = vmatmul.bf16.gmra.mxu0 %v4507
      %v4586 = vpop.f32.mrf.mxu0
      %v4587 = vadd.f32 0.0, %v4586
      %v4588 = vpop.f32.mrf.mxu0
      %v4589 = vadd.f32 0.0, %v4588
      %4590 = vmatmul.bf16.gmra.mxu0 %v4510
      %v4591 = vpop.f32.mrf.mxu0
      %v4592 = vadd.f32 0.0, %v4591
      %v4593 = vpop.f32.mrf.mxu0
      %v4594 = vadd.f32 0.0, %v4593
      %4595 = vmatmul.bf16.gmra.mxu0 %v4513
      %v4596 = vpop.f32.mrf.mxu0
      %v4597 = vadd.f32 0.0, %v4596
      %v4598 = vpop.f32.mrf.mxu0
      %v4599 = vadd.f32 0.0, %v4598
      %4600 = vmatmul.bf16.gmra.mxu0 %v4516
      %v4601 = vpop.f32.mrf.mxu0
      %v4602 = vadd.f32 0.0, %v4601
      %v4603 = vpop.f32.mrf.mxu0
      %v4604 = vadd.f32 0.0, %v4603
      %4605 = vmatmul.bf16.gmra.mxu0 %v4519
      %v4606 = vpop.f32.mrf.mxu0
      %v4607 = vadd.f32 0.0, %v4606
      %v4608 = vpop.f32.mrf.mxu0
      %v4609 = vadd.f32 0.0, %v4608
      %4610 = vmatmul.bf16.gmra.mxu0 %v4522
      %v4611 = vpop.f32.mrf.mxu0
      %v4612 = vadd.f32 0.0, %v4611
      %v4613 = vpop.f32.mrf.mxu0
      %v4614 = vadd.f32 0.0, %v4613
      %4615 = vdwg.mxu0
      %v4616 = vadd.f32 %v4220, %v4537
      %v4617 = vadd.f32 %v4222, %v4539
      %v4618 = vadd.f32 %v4225, %v4542
      %v4619 = vadd.f32 %v4227, %v4544
      %v4620 = vadd.f32 %v4230, %v4547
      %v4621 = vadd.f32 %v4232, %v4549
      %v4622 = vadd.f32 %v4235, %v4552
      %v4623 = vadd.f32 %v4237, %v4554
      %v4624 = vadd.f32 %v4240, %v4557
      %v4625 = vadd.f32 %v4242, %v4559
      %v4626 = vadd.f32 %v4245, %v4562
      %v4627 = vadd.f32 %v4247, %v4564
      %v4628 = vadd.f32 %v4250, %v4567
      %v4629 = vadd.f32 %v4252, %v4569
      %v4630 = vadd.f32 %v4255, %v4572
      %v4631 = vadd.f32 %v4257, %v4574
      %v4632 = vadd.f32 %v4260, %v4577
      %v4633 = vadd.f32 %v4262, %v4579
      %v4634 = vadd.f32 %v4265, %v4582
      %v4635 = vadd.f32 %v4267, %v4584
      %v4636 = vadd.f32 %v4270, %v4587
      %v4637 = vadd.f32 %v4272, %v4589
      %v4638 = vadd.f32 %v4275, %v4592
      %v4639 = vadd.f32 %v4277, %v4594
      %v4640 = vadd.f32 %v4280, %v4597
      %v4641 = vadd.f32 %v4282, %v4599
      %v4642 = vadd.f32 %v4285, %v4602
      %v4643 = vadd.f32 %v4287, %v4604
      %v4644 = vadd.f32 %v4290, %v4607
      %v4645 = vadd.f32 %v4292, %v4609
      %v4646 = vadd.f32 %v4295, %v4612
      %v4647 = vadd.f32 %v4297, %v4614
      %s4648 = scalar_lea.vmem %s3, 8
      %v4649 = vld [vmem:[%s4648] sm:$0x3]
      %v4652 = vunpack.c.l.b16 %v3495
      %v4653 = vunpack.c.l.b16 %v3496
      %v4654 = vpack.c.b16 %v4653, %v4652
      %v4656 = vsel %vm1336, %v4654, 0
      %v4659 = vsel %vm1385, %v4649, 0
      %4661 = vmatpush.bf16.msra.mxu0 0
      %4662 = vmatpush.bf16.msra.mxu0 0
      %4663 = vmatpush.bf16.msra.mxu0 0
      %4664 = vmatpush.bf16.msra.mxu0 0
      %4665 = vmatpush.bf16.msra.mxu0 0
      %4666 = vmatpush.bf16.msra.mxu0 0
      %4667 = vmatpush.bf16.msra.mxu0 0
      %4668 = vmatpush.bf16.msra.mxu0 %v4659
      %4669 = vmatmul.bf16.gmra.mxu0 %v4163
      %v4670 = vpop.f32.mrf.mxu0
      %v4671 = vadd.f32 0.0, %v4670
      %v4672 = vpop.f32.mrf.mxu0
      %v4673 = vadd.f32 0.0, %v4672
      %4674 = vmatmul.bf16.gmra.mxu0 %v4166
      %v4675 = vpop.f32.mrf.mxu0
      %v4676 = vadd.f32 0.0, %v4675
      %v4677 = vpop.f32.mrf.mxu0
      %v4678 = vadd.f32 0.0, %v4677
      %4679 = vmatmul.bf16.gmra.mxu0 %v4169
      %v4680 = vpop.f32.mrf.mxu0
      %v4681 = vadd.f32 0.0, %v4680
      %v4682 = vpop.f32.mrf.mxu0
      %v4683 = vadd.f32 0.0, %v4682
      %4684 = vmatmul.bf16.gmra.mxu0 %v4172
      %v4685 = vpop.f32.mrf.mxu0
      %v4686 = vadd.f32 0.0, %v4685
      %v4687 = vpop.f32.mrf.mxu0
      %v4688 = vadd.f32 0.0, %v4687
      %4689 = vmatmul.bf16.gmra.mxu0 %v4175
      %v4690 = vpop.f32.mrf.mxu0
      %v4691 = vadd.f32 0.0, %v4690
      %v4692 = vpop.f32.mrf.mxu0
      %v4693 = vadd.f32 0.0, %v4692
      %4694 = vmatmul.bf16.gmra.mxu0 %v4178
      %v4695 = vpop.f32.mrf.mxu0
      %v4696 = vadd.f32 0.0, %v4695
      %v4697 = vpop.f32.mrf.mxu0
      %v4698 = vadd.f32 0.0, %v4697
      %4699 = vmatmul.bf16.gmra.mxu0 %v4181
      %v4700 = vpop.f32.mrf.mxu0
      %v4701 = vadd.f32 0.0, %v4700
      %v4702 = vpop.f32.mrf.mxu0
      %v4703 = vadd.f32 0.0, %v4702
      %4704 = vmatmul.bf16.gmra.mxu0 %v4184
      %v4705 = vpop.f32.mrf.mxu0
      %v4706 = vadd.f32 0.0, %v4705
      %v4707 = vpop.f32.mrf.mxu0
      %v4708 = vadd.f32 0.0, %v4707
      %4709 = vmatmul.bf16.gmra.mxu0 %v4187
      %v4710 = vpop.f32.mrf.mxu0
      %v4711 = vadd.f32 0.0, %v4710
      %v4712 = vpop.f32.mrf.mxu0
      %v4713 = vadd.f32 0.0, %v4712
      %4714 = vmatmul.bf16.gmra.mxu0 %v4190
      %v4715 = vpop.f32.mrf.mxu0
      %v4716 = vadd.f32 0.0, %v4715
      %v4717 = vpop.f32.mrf.mxu0
      %v4718 = vadd.f32 0.0, %v4717
      %4719 = vmatmul.bf16.gmra.mxu0 %v4193
      %v4720 = vpop.f32.mrf.mxu0
      %v4721 = vadd.f32 0.0, %v4720
      %v4722 = vpop.f32.mrf.mxu0
      %v4723 = vadd.f32 0.0, %v4722
      %4724 = vmatmul.bf16.gmra.mxu0 %v4196
      %v4725 = vpop.f32.mrf.mxu0
      %v4726 = vadd.f32 0.0, %v4725
      %v4727 = vpop.f32.mrf.mxu0
      %v4728 = vadd.f32 0.0, %v4727
      %4729 = vmatmul.bf16.gmra.mxu0 %v4199
      %v4730 = vpop.f32.mrf.mxu0
      %v4731 = vadd.f32 0.0, %v4730
      %v4732 = vpop.f32.mrf.mxu0
      %v4733 = vadd.f32 0.0, %v4732
      %4734 = vmatmul.bf16.gmra.mxu0 %v4202
      %v4735 = vpop.f32.mrf.mxu0
      %v4736 = vadd.f32 0.0, %v4735
      %v4737 = vpop.f32.mrf.mxu0
      %v4738 = vadd.f32 0.0, %v4737
      %4739 = vmatmul.bf16.gmra.mxu0 %v4205
      %v4740 = vpop.f32.mrf.mxu0
      %v4741 = vadd.f32 0.0, %v4740
      %v4742 = vpop.f32.mrf.mxu0
      %v4743 = vadd.f32 0.0, %v4742
      %4744 = vmatmul.bf16.gmra.mxu0 %v4656
      %v4745 = vpop.f32.mrf.mxu0
      %v4746 = vadd.f32 0.0, %v4745
      %v4747 = vpop.f32.mrf.mxu0
      %v4748 = vadd.f32 0.0, %v4747
      %4749 = vdwg.mxu0
      %v4750 = vadd.f32 %v4616, %v4671
      %v4751 = vadd.f32 %v4617, %v4673
      %v4752 = vadd.f32 %v4618, %v4676
      %v4753 = vadd.f32 %v4619, %v4678
      %v4754 = vadd.f32 %v4620, %v4681
      %v4755 = vadd.f32 %v4621, %v4683
      %v4756 = vadd.f32 %v4622, %v4686
      %v4757 = vadd.f32 %v4623, %v4688
      %v4758 = vadd.f32 %v4624, %v4691
      %v4759 = vadd.f32 %v4625, %v4693
      %v4760 = vadd.f32 %v4626, %v4696
      %v4761 = vadd.f32 %v4627, %v4698
      %v4762 = vadd.f32 %v4628, %v4701
      %v4763 = vadd.f32 %v4629, %v4703
      %v4764 = vadd.f32 %v4630, %v4706
      %v4765 = vadd.f32 %v4631, %v4708
      %v4766 = vadd.f32 %v4632, %v4711
      %v4767 = vadd.f32 %v4633, %v4713
      %v4768 = vadd.f32 %v4634, %v4716
      %v4769 = vadd.f32 %v4635, %v4718
      %v4770 = vadd.f32 %v4636, %v4721
      %v4771 = vadd.f32 %v4637, %v4723
      %v4772 = vadd.f32 %v4638, %v4726
      %v4773 = vadd.f32 %v4639, %v4728
      %v4774 = vadd.f32 %v4640, %v4731
      %v4775 = vadd.f32 %v4641, %v4733
      %v4776 = vadd.f32 %v4642, %v4736
      %v4777 = vadd.f32 %v4643, %v4738
      %v4778 = vadd.f32 %v4644, %v4741
      %v4779 = vadd.f32 %v4645, %v4743
      %v4780 = vadd.f32 %v4646, %v4746
      %v4781 = vadd.f32 %v4647, %v4748
      %v4782 = vld [vmem:[%s4648] sm:$0xc]
      %v4784 = vshrl.u32 %v3495, 16
      %v4786 = vrot.slane %v4784, 4
      %v4787 = vshll.u32 %v3495, 16
      %v4789 = vrot.slane %v4787, 5
      %v4790 = vor.u32 %v4786, %v4789
      %v4791 = vrot.slane %v4790, 4
      %v4793 = vshll.u32 %v3496, 16
      %v4795 = vrot.slane %v4793, 5
      %v4796 = vsel %vm899, %v4791, %v4795
      %v4797 = vshrl.u32 %v3496, 16
      %v4799 = vrot.slane %v4797, 4
      %v4800 = vor.u32 %v4799, %v4795
      %v4801 = vrot.slane %v4800, 4
      %v4803 = vshll.u32 %v3497, 16
      %v4805 = vrot.slane %v4803, 5
      %v4806 = vsel %vm899, %v4801, %v4805
      %v4807 = vunpack.c.l.b16 %v4796
      %v4808 = vunpack.c.l.b16 %v4806
      %v4809 = vpack.c.b16 %v4808, %v4807
      %v4811 = vunpack.c.l.b16 %v4782
      %v4812 = vpack.c.b16 %v4811, %v4811
      %v4813 = vrot.slane %v4812, 2
      %v4815 = vsel %vm1336, %v4809, 0
      %v4818 = vsel %vm1385, %v4813, 0
      %4820 = vmatpush.bf16.msra.mxu0 0
      %4821 = vmatpush.bf16.msra.mxu0 0
      %4822 = vmatpush.bf16.msra.mxu0 0
      %4823 = vmatpush.bf16.msra.mxu0 0
      %4824 = vmatpush.bf16.msra.mxu0 0
      %4825 = vmatpush.bf16.msra.mxu0 0
      %4826 = vmatpush.bf16.msra.mxu0 0
      %4827 = vmatpush.bf16.msra.mxu0 %v4818
      %4828 = vmatmul.bf16.gmra.mxu0 %v3943
      %v4829 = vpop.f32.mrf.mxu0
      %v4830 = vadd.f32 0.0, %v4829
      %v4831 = vpop.f32.mrf.mxu0
      %v4832 = vadd.f32 0.0, %v4831
      %4833 = vmatmul.bf16.gmra.mxu0 %v3946
      %v4834 = vpop.f32.mrf.mxu0
      %v4835 = vadd.f32 0.0, %v4834
      %v4836 = vpop.f32.mrf.mxu0
      %v4837 = vadd.f32 0.0, %v4836
      %4838 = vmatmul.bf16.gmra.mxu0 %v3949
      %v4839 = vpop.f32.mrf.mxu0
      %v4840 = vadd.f32 0.0, %v4839
      %v4841 = vpop.f32.mrf.mxu0
      %v4842 = vadd.f32 0.0, %v4841
      %4843 = vmatmul.bf16.gmra.mxu0 %v3952
      %v4844 = vpop.f32.mrf.mxu0
      %v4845 = vadd.f32 0.0, %v4844
      %v4846 = vpop.f32.mrf.mxu0
      %v4847 = vadd.f32 0.0, %v4846
      %4848 = vmatmul.bf16.gmra.mxu0 %v3955
      %v4849 = vpop.f32.mrf.mxu0
      %v4850 = vadd.f32 0.0, %v4849
      %v4851 = vpop.f32.mrf.mxu0
      %v4852 = vadd.f32 0.0, %v4851
      %4853 = vmatmul.bf16.gmra.mxu0 %v3958
      %v4854 = vpop.f32.mrf.mxu0
      %v4855 = vadd.f32 0.0, %v4854
      %v4856 = vpop.f32.mrf.mxu0
      %v4857 = vadd.f32 0.0, %v4856
      %4858 = vmatmul.bf16.gmra.mxu0 %v3961
      %v4859 = vpop.f32.mrf.mxu0
      %v4860 = vadd.f32 0.0, %v4859
      %v4861 = vpop.f32.mrf.mxu0
      %v4862 = vadd.f32 0.0, %v4861
      %4863 = vmatmul.bf16.gmra.mxu0 %v3964
      %v4864 = vpop.f32.mrf.mxu0
      %v4865 = vadd.f32 0.0, %v4864
      %v4866 = vpop.f32.mrf.mxu0
      %v4867 = vadd.f32 0.0, %v4866
      %4868 = vmatmul.bf16.gmra.mxu0 %v3967
      %v4869 = vpop.f32.mrf.mxu0
      %v4870 = vadd.f32 0.0, %v4869
      %v4871 = vpop.f32.mrf.mxu0
      %v4872 = vadd.f32 0.0, %v4871
      %4873 = vmatmul.bf16.gmra.mxu0 %v3970
      %v4874 = vpop.f32.mrf.mxu0
      %v4875 = vadd.f32 0.0, %v4874
      %v4876 = vpop.f32.mrf.mxu0
      %v4877 = vadd.f32 0.0, %v4876
      %4878 = vmatmul.bf16.gmra.mxu0 %v3973
      %v4879 = vpop.f32.mrf.mxu0
      %v4880 = vadd.f32 0.0, %v4879
      %v4881 = vpop.f32.mrf.mxu0
      %v4882 = vadd.f32 0.0, %v4881
      %4883 = vmatmul.bf16.gmra.mxu0 %v3976
      %v4884 = vpop.f32.mrf.mxu0
      %v4885 = vadd.f32 0.0, %v4884
      %v4886 = vpop.f32.mrf.mxu0
      %v4887 = vadd.f32 0.0, %v4886
      %4888 = vmatmul.bf16.gmra.mxu0 %v3979
      %v4889 = vpop.f32.mrf.mxu0
      %v4890 = vadd.f32 0.0, %v4889
      %v4891 = vpop.f32.mrf.mxu0
      %v4892 = vadd.f32 0.0, %v4891
      %4893 = vmatmul.bf16.gmra.mxu0 %v3982
      %v4894 = vpop.f32.mrf.mxu0
      %v4895 = vadd.f32 0.0, %v4894
      %v4896 = vpop.f32.mrf.mxu0
      %v4897 = vadd.f32 0.0, %v4896
      %4898 = vmatmul.bf16.gmra.mxu0 %v3985
      %v4899 = vpop.f32.mrf.mxu0
      %v4900 = vadd.f32 0.0, %v4899
      %v4901 = vpop.f32.mrf.mxu0
      %v4902 = vadd.f32 0.0, %v4901
      %4903 = vmatmul.bf16.gmra.mxu0 %v4815
      %v4904 = vpop.f32.mrf.mxu0
      %v4905 = vadd.f32 0.0, %v4904
      %v4906 = vpop.f32.mrf.mxu0
      %v4907 = vadd.f32 0.0, %v4906
      %4908 = vdwg.mxu0
      %v4909 = vadd.f32 %v4750, %v4830
      %v4910 = vadd.f32 %v4751, %v4832
      %v4911 = vadd.f32 %v4752, %v4835
      %v4912 = vadd.f32 %v4753, %v4837
      %v4913 = vadd.f32 %v4754, %v4840
      %v4914 = vadd.f32 %v4755, %v4842
      %v4915 = vadd.f32 %v4756, %v4845
      %v4916 = vadd.f32 %v4757, %v4847
      %v4917 = vadd.f32 %v4758, %v4850
      %v4918 = vadd.f32 %v4759, %v4852
      %v4919 = vadd.f32 %v4760, %v4855
      %v4920 = vadd.f32 %v4761, %v4857
      %v4921 = vadd.f32 %v4762, %v4860
      %v4922 = vadd.f32 %v4763, %v4862
      %v4923 = vadd.f32 %v4764, %v4865
      %v4924 = vadd.f32 %v4765, %v4867
      %v4925 = vadd.f32 %v4766, %v4870
      %v4926 = vadd.f32 %v4767, %v4872
      %v4927 = vadd.f32 %v4768, %v4875
      %v4928 = vadd.f32 %v4769, %v4877
      %v4929 = vadd.f32 %v4770, %v4880
      %v4930 = vadd.f32 %v4771, %v4882
      %v4931 = vadd.f32 %v4772, %v4885
      %v4932 = vadd.f32 %v4773, %v4887
      %v4933 = vadd.f32 %v4774, %v4890
      %v4934 = vadd.f32 %v4775, %v4892
      %v4935 = vadd.f32 %v4776, %v4895
      %v4936 = vadd.f32 %v4777, %v4897
      %v4937 = vadd.f32 %v4778, %v4900
      %v4938 = vadd.f32 %v4779, %v4902
      %v4939 = vadd.f32 %v4780, %v4905
      %v4940 = vadd.f32 %v4781, %v4907
      %v4941 = vld [vmem:[%s4648 + $0x4] sm:$0x3]
      %v4943 = vrot.slane %v3495, 5
      %v4944 = vrot.slane %v4943, 4
      %v4945 = vrot.slane %v3496, 5
      %v4946 = vsel %vm1717, %v4944, %v4945
      %v4947 = vrot.slane %v4945, 4
      %v4948 = vrot.slane %v3497, 5
      %v4949 = vsel %vm1717, %v4947, %v4948
      %v4950 = vunpack.c.l.b16 %v4946
      %v4951 = vunpack.c.l.b16 %v4949
      %v4952 = vpack.c.b16 %v4951, %v4950
      %v4954 = vsel %vm1336, %v4952, 0
      %v4957 = vsel %vm1385, %v4941, 0
      %4959 = vmatpush.bf16.msra.mxu0 0
      %4960 = vmatpush.bf16.msra.mxu0 0
      %4961 = vmatpush.bf16.msra.mxu0 0
      %4962 = vmatpush.bf16.msra.mxu0 0
      %4963 = vmatpush.bf16.msra.mxu0 0
      %4964 = vmatpush.bf16.msra.mxu0 0
      %4965 = vmatpush.bf16.msra.mxu0 0
      %4966 = vmatpush.bf16.msra.mxu0 %v4957
      %4967 = vmatmul.bf16.gmra.mxu0 %v4480
      %v4968 = vpop.f32.mrf.mxu0
      %v4969 = vadd.f32 0.0, %v4968
      %v4970 = vpop.f32.mrf.mxu0
      %v4971 = vadd.f32 0.0, %v4970
      %4972 = vmatmul.bf16.gmra.mxu0 %v4483
      %v4973 = vpop.f32.mrf.mxu0
      %v4974 = vadd.f32 0.0, %v4973
      %v4975 = vpop.f32.mrf.mxu0
      %v4976 = vadd.f32 0.0, %v4975
      %4977 = vmatmul.bf16.gmra.mxu0 %v4486
      %v4978 = vpop.f32.mrf.mxu0
      %v4979 = vadd.f32 0.0, %v4978
      %v4980 = vpop.f32.mrf.mxu0
      %v4981 = vadd.f32 0.0, %v4980
      %4982 = vmatmul.bf16.gmra.mxu0 %v4489
      %v4983 = vpop.f32.mrf.mxu0
      %v4984 = vadd.f32 0.0, %v4983
      %v4985 = vpop.f32.mrf.mxu0
      %v4986 = vadd.f32 0.0, %v4985
      %4987 = vmatmul.bf16.gmra.mxu0 %v4492
      %v4988 = vpop.f32.mrf.mxu0
      %v4989 = vadd.f32 0.0, %v4988
      %v4990 = vpop.f32.mrf.mxu0
      %v4991 = vadd.f32 0.0, %v4990
      %4992 = vmatmul.bf16.gmra.mxu0 %v4495
      %v4993 = vpop.f32.mrf.mxu0
      %v4994 = vadd.f32 0.0, %v4993
      %v4995 = vpop.f32.mrf.mxu0
      %v4996 = vadd.f32 0.0, %v4995
      %4997 = vmatmul.bf16.gmra.mxu0 %v4498
      %v4998 = vpop.f32.mrf.mxu0
      %v4999 = vadd.f32 0.0, %v4998
      %v5000 = vpop.f32.mrf.mxu0
      %v5001 = vadd.f32 0.0, %v5000
      %5002 = vmatmul.bf16.gmra.mxu0 %v4501
      %v5003 = vpop.f32.mrf.mxu0
      %v5004 = vadd.f32 0.0, %v5003
      %v5005 = vpop.f32.mrf.mxu0
      %v5006 = vadd.f32 0.0, %v5005
      %5007 = vmatmul.bf16.gmra.mxu0 %v4504
      %v5008 = vpop.f32.mrf.mxu0
      %v5009 = vadd.f32 0.0, %v5008
      %v5010 = vpop.f32.mrf.mxu0
      %v5011 = vadd.f32 0.0, %v5010
      %5012 = vmatmul.bf16.gmra.mxu0 %v4507
      %v5013 = vpop.f32.mrf.mxu0
      %v5014 = vadd.f32 0.0, %v5013
      %v5015 = vpop.f32.mrf.mxu0
      %v5016 = vadd.f32 0.0, %v5015
      %5017 = vmatmul.bf16.gmra.mxu0 %v4510
      %v5018 = vpop.f32.mrf.mxu0
      %v5019 = vadd.f32 0.0, %v5018
      %v5020 = vpop.f32.mrf.mxu0
      %v5021 = vadd.f32 0.0, %v5020
      %5022 = vmatmul.bf16.gmra.mxu0 %v4513
      %v5023 = vpop.f32.mrf.mxu0
      %v5024 = vadd.f32 0.0, %v5023
      %v5025 = vpop.f32.mrf.mxu0
      %v5026 = vadd.f32 0.0, %v5025
      %5027 = vmatmul.bf16.gmra.mxu0 %v4516
      %v5028 = vpop.f32.mrf.mxu0
      %v5029 = vadd.f32 0.0, %v5028
      %v5030 = vpop.f32.mrf.mxu0
      %v5031 = vadd.f32 0.0, %v5030
      %5032 = vmatmul.bf16.gmra.mxu0 %v4519
      %v5033 = vpop.f32.mrf.mxu0
      %v5034 = vadd.f32 0.0, %v5033
      %v5035 = vpop.f32.mrf.mxu0
      %v5036 = vadd.f32 0.0, %v5035
      %5037 = vmatmul.bf16.gmra.mxu0 %v4522
      %v5038 = vpop.f32.mrf.mxu0
      %v5039 = vadd.f32 0.0, %v5038
      %v5040 = vpop.f32.mrf.mxu0
      %v5041 = vadd.f32 0.0, %v5040
      %5042 = vmatmul.bf16.gmra.mxu0 %v4954
      %v5043 = vpop.f32.mrf.mxu0
      %v5044 = vadd.f32 0.0, %v5043
      %v5045 = vpop.f32.mrf.mxu0
      %v5046 = vadd.f32 0.0, %v5045
      %5047 = vdwg.mxu0
      %v5048 = vadd.f32 %v4909, %v4969
      %v5049 = vadd.f32 %v4910, %v4971
      %v5050 = vadd.f32 %v4911, %v4974
      %v5051 = vadd.f32 %v4912, %v4976
      %v5052 = vadd.f32 %v4913, %v4979
      %v5053 = vadd.f32 %v4914, %v4981
      %v5054 = vadd.f32 %v4915, %v4984
      %v5055 = vadd.f32 %v4916, %v4986
      %v5056 = vadd.f32 %v4917, %v4989
      %v5057 = vadd.f32 %v4918, %v4991
      %v5058 = vadd.f32 %v4919, %v4994
      %v5059 = vadd.f32 %v4920, %v4996
      %v5060 = vadd.f32 %v4921, %v4999
      %v5061 = vadd.f32 %v4922, %v5001
      %v5062 = vadd.f32 %v4923, %v5004
      %v5063 = vadd.f32 %v4924, %v5006
      %v5064 = vadd.f32 %v4925, %v5009
      %v5065 = vadd.f32 %v4926, %v5011
      %v5066 = vadd.f32 %v4927, %v5014
      %v5067 = vadd.f32 %v4928, %v5016
      %v5068 = vadd.f32 %v4929, %v5019
      %v5069 = vadd.f32 %v4930, %v5021
      %v5070 = vadd.f32 %v4931, %v5024
      %v5071 = vadd.f32 %v4932, %v5026
      %v5072 = vadd.f32 %v4933, %v5029
      %v5073 = vadd.f32 %v4934, %v5031
      %v5074 = vadd.f32 %v4935, %v5034
      %v5075 = vadd.f32 %v4936, %v5036
      %v5076 = vadd.f32 %v4937, %v5039
      %v5077 = vadd.f32 %v4938, %v5041
      %v5078 = vadd.f32 %v4939, %v5044
      %v5079 = vadd.f32 %v4940, %v5046
      %s5080 = scalar_lea.vmem %s3, 16
      %v5081 = vld [vmem:[%s5080] sm:$0x3]
      %v5084 = vunpack.c.l.b16 %v3498
      %v5085 = vunpack.c.l.b16 %v3499
      %v5086 = vpack.c.b16 %v5085, %v5084
      %v5088 = vsel %vm1336, %v5086, 0
      %v5091 = vsel %vm1385, %v5081, 0
      %5093 = vmatpush.bf16.msra.mxu0 0
      %5094 = vmatpush.bf16.msra.mxu0 0
      %5095 = vmatpush.bf16.msra.mxu0 0
      %5096 = vmatpush.bf16.msra.mxu0 0
      %5097 = vmatpush.bf16.msra.mxu0 0
      %5098 = vmatpush.bf16.msra.mxu0 0
      %5099 = vmatpush.bf16.msra.mxu0 0
      %5100 = vmatpush.bf16.msra.mxu0 %v5091
      %5101 = vmatmul.bf16.gmra.mxu0 %v4166
      %v5102 = vpop.f32.mrf.mxu0
      %v5103 = vadd.f32 0.0, %v5102
      %v5104 = vpop.f32.mrf.mxu0
      %v5105 = vadd.f32 0.0, %v5104
      %5106 = vmatmul.bf16.gmra.mxu0 %v4169
      %v5107 = vpop.f32.mrf.mxu0
      %v5108 = vadd.f32 0.0, %v5107
      %v5109 = vpop.f32.mrf.mxu0
      %v5110 = vadd.f32 0.0, %v5109
      %5111 = vmatmul.bf16.gmra.mxu0 %v4172
      %v5112 = vpop.f32.mrf.mxu0
      %v5113 = vadd.f32 0.0, %v5112
      %v5114 = vpop.f32.mrf.mxu0
      %v5115 = vadd.f32 0.0, %v5114
      %5116 = vmatmul.bf16.gmra.mxu0 %v4175
      %v5117 = vpop.f32.mrf.mxu0
      %v5118 = vadd.f32 0.0, %v5117
      %v5119 = vpop.f32.mrf.mxu0
      %v5120 = vadd.f32 0.0, %v5119
      %5121 = vmatmul.bf16.gmra.mxu0 %v4178
      %v5122 = vpop.f32.mrf.mxu0
      %v5123 = vadd.f32 0.0, %v5122
      %v5124 = vpop.f32.mrf.mxu0
      %v5125 = vadd.f32 0.0, %v5124
      %5126 = vmatmul.bf16.gmra.mxu0 %v4181
      %v5127 = vpop.f32.mrf.mxu0
      %v5128 = vadd.f32 0.0, %v5127
      %v5129 = vpop.f32.mrf.mxu0
      %v5130 = vadd.f32 0.0, %v5129
      %5131 = vmatmul.bf16.gmra.mxu0 %v4184
      %v5132 = vpop.f32.mrf.mxu0
      %v5133 = vadd.f32 0.0, %v5132
      %v5134 = vpop.f32.mrf.mxu0
      %v5135 = vadd.f32 0.0, %v5134
      %5136 = vmatmul.bf16.gmra.mxu0 %v4187
      %v5137 = vpop.f32.mrf.mxu0
      %v5138 = vadd.f32 0.0, %v5137
      %v5139 = vpop.f32.mrf.mxu0
      %v5140 = vadd.f32 0.0, %v5139
      %5141 = vmatmul.bf16.gmra.mxu0 %v4190
      %v5142 = vpop.f32.mrf.mxu0
      %v5143 = vadd.f32 0.0, %v5142
      %v5144 = vpop.f32.mrf.mxu0
      %v5145 = vadd.f32 0.0, %v5144
      %5146 = vmatmul.bf16.gmra.mxu0 %v4193
      %v5147 = vpop.f32.mrf.mxu0
      %v5148 = vadd.f32 0.0, %v5147
      %v5149 = vpop.f32.mrf.mxu0
      %v5150 = vadd.f32 0.0, %v5149
      %5151 = vmatmul.bf16.gmra.mxu0 %v4196
      %v5152 = vpop.f32.mrf.mxu0
      %v5153 = vadd.f32 0.0, %v5152
      %v5154 = vpop.f32.mrf.mxu0
      %v5155 = vadd.f32 0.0, %v5154
      %5156 = vmatmul.bf16.gmra.mxu0 %v4199
      %v5157 = vpop.f32.mrf.mxu0
      %v5158 = vadd.f32 0.0, %v5157
      %v5159 = vpop.f32.mrf.mxu0
      %v5160 = vadd.f32 0.0, %v5159
      %5161 = vmatmul.bf16.gmra.mxu0 %v4202
      %v5162 = vpop.f32.mrf.mxu0
      %v5163 = vadd.f32 0.0, %v5162
      %v5164 = vpop.f32.mrf.mxu0
      %v5165 = vadd.f32 0.0, %v5164
      %5166 = vmatmul.bf16.gmra.mxu0 %v4205
      %v5167 = vpop.f32.mrf.mxu0
      %v5168 = vadd.f32 0.0, %v5167
      %v5169 = vpop.f32.mrf.mxu0
      %v5170 = vadd.f32 0.0, %v5169
      %5171 = vmatmul.bf16.gmra.mxu0 %v4656
      %v5172 = vpop.f32.mrf.mxu0
      %v5173 = vadd.f32 0.0, %v5172
      %v5174 = vpop.f32.mrf.mxu0
      %v5175 = vadd.f32 0.0, %v5174
      %5176 = vmatmul.bf16.gmra.mxu0 %v5088
      %v5177 = vpop.f32.mrf.mxu0
      %v5178 = vadd.f32 0.0, %v5177
      %v5179 = vpop.f32.mrf.mxu0
      %v5180 = vadd.f32 0.0, %v5179
      %5181 = vdwg.mxu0
      %v5182 = vadd.f32 %v5048, %v5103
      %v5183 = vadd.f32 %v5049, %v5105
      %v5184 = vadd.f32 %v5050, %v5108
      %v5185 = vadd.f32 %v5051, %v5110
      %v5186 = vadd.f32 %v5052, %v5113
      %v5187 = vadd.f32 %v5053, %v5115
      %v5188 = vadd.f32 %v5054, %v5118
      %v5189 = vadd.f32 %v5055, %v5120
      %v5190 = vadd.f32 %v5056, %v5123
      %v5191 = vadd.f32 %v5057, %v5125
      %v5192 = vadd.f32 %v5058, %v5128
      %v5193 = vadd.f32 %v5059, %v5130
      %v5194 = vadd.f32 %v5060, %v5133
      %v5195 = vadd.f32 %v5061, %v5135
      %v5196 = vadd.f32 %v5062, %v5138
      %v5197 = vadd.f32 %v5063, %v5140
      %v5198 = vadd.f32 %v5064, %v5143
      %v5199 = vadd.f32 %v5065, %v5145
      %v5200 = vadd.f32 %v5066, %v5148
      %v5201 = vadd.f32 %v5067, %v5150
      %v5202 = vadd.f32 %v5068, %v5153
      %v5203 = vadd.f32 %v5069, %v5155
      %v5204 = vadd.f32 %v5070, %v5158
      %v5205 = vadd.f32 %v5071, %v5160
      %v5206 = vadd.f32 %v5072, %v5163
      %v5207 = vadd.f32 %v5073, %v5165
      %v5208 = vadd.f32 %v5074, %v5168
      %v5209 = vadd.f32 %v5075, %v5170
      %v5210 = vadd.f32 %v5076, %v5173
      %v5211 = vadd.f32 %v5077, %v5175
      %v5212 = vadd.f32 %v5078, %v5178
      %v5213 = vadd.f32 %v5079, %v5180
      %v5214 = vld [vmem:[%s5080] sm:$0xc]
      %v5216 = vshrl.u32 %v3498, 16
      %v5218 = vrot.slane %v5216, 4
      %v5219 = vshll.u32 %v3498, 16
      %v5221 = vrot.slane %v5219, 5
      %v5222 = vor.u32 %v5218, %v5221
      %v5223 = vrot.slane %v5222, 4
      %v5225 = vshll.u32 %v3499, 16
      %v5227 = vrot.slane %v5225, 5
      %v5228 = vsel %vm899, %v5223, %v5227
      %v5229 = vshrl.u32 %v3499, 16
      %v5231 = vrot.slane %v5229, 4
      %v5232 = vor.u32 %v5231, %v5227
      %v5233 = vrot.slane %v5232, 4
      %v5235 = vshll.u32 %v3500, 16
      %v5237 = vrot.slane %v5235, 5
      %v5238 = vsel %vm899, %v5233, %v5237
      %v5239 = vunpack.c.l.b16 %v5228
      %v5240 = vunpack.c.l.b16 %v5238
      %v5241 = vpack.c.b16 %v5240, %v5239
      %v5243 = vunpack.c.l.b16 %v5214
      %v5244 = vpack.c.b16 %v5243, %v5243
      %v5245 = vrot.slane %v5244, 2
      %v5247 = vsel %vm1336, %v5241, 0
      %v5250 = vsel %vm1385, %v5245, 0
      %5252 = vmatpush.bf16.msra.mxu0 0
      %5253 = vmatpush.bf16.msra.mxu0 0
      %5254 = vmatpush.bf16.msra.mxu0 0
      %5255 = vmatpush.bf16.msra.mxu0 0
      %5256 = vmatpush.bf16.msra.mxu0 0
      %5257 = vmatpush.bf16.msra.mxu0 0
      %5258 = vmatpush.bf16.msra.mxu0 0
      %5259 = vmatpush.bf16.msra.mxu0 %v5250
      %5260 = vmatmul.bf16.gmra.mxu0 %v3946
      %v5261 = vpop.f32.mrf.mxu0
      %v5262 = vadd.f32 0.0, %v5261
      %v5263 = vpop.f32.mrf.mxu0
      %v5264 = vadd.f32 0.0, %v5263
      %5265 = vmatmul.bf16.gmra.mxu0 %v3949
      %v5266 = vpop.f32.mrf.mxu0
      %v5267 = vadd.f32 0.0, %v5266
      %v5268 = vpop.f32.mrf.mxu0
      %v5269 = vadd.f32 0.0, %v5268
      %5270 = vmatmul.bf16.gmra.mxu0 %v3952
      %v5271 = vpop.f32.mrf.mxu0
      %v5272 = vadd.f32 0.0, %v5271
      %v5273 = vpop.f32.mrf.mxu0
      %v5274 = vadd.f32 0.0, %v5273
      %5275 = vmatmul.bf16.gmra.mxu0 %v3955
      %v5276 = vpop.f32.mrf.mxu0
      %v5277 = vadd.f32 0.0, %v5276
      %v5278 = vpop.f32.mrf.mxu0
      %v5279 = vadd.f32 0.0, %v5278
      %5280 = vmatmul.bf16.gmra.mxu0 %v3958
      %v5281 = vpop.f32.mrf.mxu0
      %v5282 = vadd.f32 0.0, %v5281
      %v5283 = vpop.f32.mrf.mxu0
      %v5284 = vadd.f32 0.0, %v5283
      %5285 = vmatmul.bf16.gmra.mxu0 %v3961
      %v5286 = vpop.f32.mrf.mxu0
      %v5287 = vadd.f32 0.0, %v5286
      %v5288 = vpop.f32.mrf.mxu0
      %v5289 = vadd.f32 0.0, %v5288
      %5290 = vmatmul.bf16.gmra.mxu0 %v3964
      %v5291 = vpop.f32.mrf.mxu0
      %v5292 = vadd.f32 0.0, %v5291
      %v5293 = vpop.f32.mrf.mxu0
      %v5294 = vadd.f32 0.0, %v5293
      %5295 = vmatmul.bf16.gmra.mxu0 %v3967
      %v5296 = vpop.f32.mrf.mxu0
      %v5297 = vadd.f32 0.0, %v5296
      %v5298 = vpop.f32.mrf.mxu0
      %v5299 = vadd.f32 0.0, %v5298
      %5300 = vmatmul.bf16.gmra.mxu0 %v3970
      %v5301 = vpop.f32.mrf.mxu0
      %v5302 = vadd.f32 0.0, %v5301
      %v5303 = vpop.f32.mrf.mxu0
      %v5304 = vadd.f32 0.0, %v5303
      %5305 = vmatmul.bf16.gmra.mxu0 %v3973
      %v5306 = vpop.f32.mrf.mxu0
      %v5307 = vadd.f32 0.0, %v5306
      %v5308 = vpop.f32.mrf.mxu0
      %v5309 = vadd.f32 0.0, %v5308
      %5310 = vmatmul.bf16.gmra.mxu0 %v3976
      %v5311 = vpop.f32.mrf.mxu0
      %v5312 = vadd.f32 0.0, %v5311
      %v5313 = vpop.f32.mrf.mxu0
      %v5314 = vadd.f32 0.0, %v5313
      %5315 = vmatmul.bf16.gmra.mxu0 %v3979
      %v5316 = vpop.f32.mrf.mxu0
      %v5317 = vadd.f32 0.0, %v5316
      %v5318 = vpop.f32.mrf.mxu0
      %v5319 = vadd.f32 0.0, %v5318
      %5320 = vmatmul.bf16.gmra.mxu0 %v3982
      %v5321 = vpop.f32.mrf.mxu0
      %v5322 = vadd.f32 0.0, %v5321
      %v5323 = vpop.f32.mrf.mxu0
      %v5324 = vadd.f32 0.0, %v5323
      %5325 = vmatmul.bf16.gmra.mxu0 %v3985
      %v5326 = vpop.f32.mrf.mxu0
      %v5327 = vadd.f32 0.0, %v5326
      %v5328 = vpop.f32.mrf.mxu0
      %v5329 = vadd.f32 0.0, %v5328
      %5330 = vmatmul.bf16.gmra.mxu0 %v4815
      %v5331 = vpop.f32.mrf.mxu0
      %v5332 = vadd.f32 0.0, %v5331
      %v5333 = vpop.f32.mrf.mxu0
      %v5334 = vadd.f32 0.0, %v5333
      %5335 = vmatmul.bf16.gmra.mxu0 %v5247
      %v5336 = vpop.f32.mrf.mxu0
      %v5337 = vadd.f32 0.0, %v5336
      %v5338 = vpop.f32.mrf.mxu0
      %v5339 = vadd.f32 0.0, %v5338
      %5340 = vdwg.mxu0
      %v5341 = vadd.f32 %v5182, %v5262
      %v5342 = vadd.f32 %v5183, %v5264
      %v5343 = vadd.f32 %v5184, %v5267
      %v5344 = vadd.f32 %v5185, %v5269
      %v5345 = vadd.f32 %v5186, %v5272
      %v5346 = vadd.f32 %v5187, %v5274
      %v5347 = vadd.f32 %v5188, %v5277
      %v5348 = vadd.f32 %v5189, %v5279
      %v5349 = vadd.f32 %v5190, %v5282
      %v5350 = vadd.f32 %v5191, %v5284
      %v5351 = vadd.f32 %v5192, %v5287
      %v5352 = vadd.f32 %v5193, %v5289
      %v5353 = vadd.f32 %v5194, %v5292
      %v5354 = vadd.f32 %v5195, %v5294
      %v5355 = vadd.f32 %v5196, %v5297
      %v5356 = vadd.f32 %v5197, %v5299
      %v5357 = vadd.f32 %v5198, %v5302
      %v5358 = vadd.f32 %v5199, %v5304
      %v5359 = vadd.f32 %v5200, %v5307
      %v5360 = vadd.f32 %v5201, %v5309
      %v5361 = vadd.f32 %v5202, %v5312
      %v5362 = vadd.f32 %v5203, %v5314
      %v5363 = vadd.f32 %v5204, %v5317
      %v5364 = vadd.f32 %v5205, %v5319
      %v5365 = vadd.f32 %v5206, %v5322
      %v5366 = vadd.f32 %v5207, %v5324
      %v5367 = vadd.f32 %v5208, %v5327
      %v5368 = vadd.f32 %v5209, %v5329
      %v5369 = vadd.f32 %v5210, %v5332
      %v5370 = vadd.f32 %v5211, %v5334
      %v5371 = vadd.f32 %v5212, %v5337
      %v5372 = vadd.f32 %v5213, %v5339
      %v5373 = vld [vmem:[%s5080 + $0x4] sm:$0x3]
      %v5375 = vrot.slane %v3498, 5
      %v5376 = vrot.slane %v5375, 4
      %v5377 = vrot.slane %v3499, 5
      %v5378 = vsel %vm1717, %v5376, %v5377
      %v5379 = vrot.slane %v5377, 4
      %v5380 = vrot.slane %v3500, 5
      %v5381 = vsel %vm1717, %v5379, %v5380
      %v5382 = vunpack.c.l.b16 %v5378
      %v5383 = vunpack.c.l.b16 %v5381
      %v5384 = vpack.c.b16 %v5383, %v5382
      %v5386 = vsel %vm1336, %v5384, 0
      %v5389 = vsel %vm1385, %v5373, 0
      %5391 = vmatpush.bf16.msra.mxu0 0
      %5392 = vmatpush.bf16.msra.mxu0 0
      %5393 = vmatpush.bf16.msra.mxu0 0
      %5394 = vmatpush.bf16.msra.mxu0 0
      %5395 = vmatpush.bf16.msra.mxu0 0
      %5396 = vmatpush.bf16.msra.mxu0 0
      %5397 = vmatpush.bf16.msra.mxu0 0
      %5398 = vmatpush.bf16.msra.mxu0 %v5389
      %5399 = vmatmul.bf16.gmra.mxu0 %v4483
      %v5400 = vpop.f32.mrf.mxu0
      %v5401 = vadd.f32 0.0, %v5400
      %v5402 = vpop.f32.mrf.mxu0
      %v5403 = vadd.f32 0.0, %v5402
      %5404 = vmatmul.bf16.gmra.mxu0 %v4486
      %v5405 = vpop.f32.mrf.mxu0
      %v5406 = vadd.f32 0.0, %v5405
      %v5407 = vpop.f32.mrf.mxu0
      %v5408 = vadd.f32 0.0, %v5407
      %5409 = vmatmul.bf16.gmra.mxu0 %v4489
      %v5410 = vpop.f32.mrf.mxu0
      %v5411 = vadd.f32 0.0, %v5410
      %v5412 = vpop.f32.mrf.mxu0
      %v5413 = vadd.f32 0.0, %v5412
      %5414 = vmatmul.bf16.gmra.mxu0 %v4492
      %v5415 = vpop.f32.mrf.mxu0
      %v5416 = vadd.f32 0.0, %v5415
      %v5417 = vpop.f32.mrf.mxu0
      %v5418 = vadd.f32 0.0, %v5417
      %5419 = vmatmul.bf16.gmra.mxu0 %v4495
      %v5420 = vpop.f32.mrf.mxu0
      %v5421 = vadd.f32 0.0, %v5420
      %v5422 = vpop.f32.mrf.mxu0
      %v5423 = vadd.f32 0.0, %v5422
      %5424 = vmatmul.bf16.gmra.mxu0 %v4498
      %v5425 = vpop.f32.mrf.mxu0
      %v5426 = vadd.f32 0.0, %v5425
      %v5427 = vpop.f32.mrf.mxu0
      %v5428 = vadd.f32 0.0, %v5427
      %5429 = vmatmul.bf16.gmra.mxu0 %v4501
      %v5430 = vpop.f32.mrf.mxu0
      %v5431 = vadd.f32 0.0, %v5430
      %v5432 = vpop.f32.mrf.mxu0
      %v5433 = vadd.f32 0.0, %v5432
      %5434 = vmatmul.bf16.gmra.mxu0 %v4504
      %v5435 = vpop.f32.mrf.mxu0
      %v5436 = vadd.f32 0.0, %v5435
      %v5437 = vpop.f32.mrf.mxu0
      %v5438 = vadd.f32 0.0, %v5437
      %5439 = vmatmul.bf16.gmra.mxu0 %v4507
      %v5440 = vpop.f32.mrf.mxu0
      %v5441 = vadd.f32 0.0, %v5440
      %v5442 = vpop.f32.mrf.mxu0
      %v5443 = vadd.f32 0.0, %v5442
      %5444 = vmatmul.bf16.gmra.mxu0 %v4510
      %v5445 = vpop.f32.mrf.mxu0
      %v5446 = vadd.f32 0.0, %v5445
      %v5447 = vpop.f32.mrf.mxu0
      %v5448 = vadd.f32 0.0, %v5447
      %5449 = vmatmul.bf16.gmra.mxu0 %v4513
      %v5450 = vpop.f32.mrf.mxu0
      %v5451 = vadd.f32 0.0, %v5450
      %v5452 = vpop.f32.mrf.mxu0
      %v5453 = vadd.f32 0.0, %v5452
      %5454 = vmatmul.bf16.gmra.mxu0 %v4516
      %v5455 = vpop.f32.mrf.mxu0
      %v5456 = vadd.f32 0.0, %v5455
      %v5457 = vpop.f32.mrf.mxu0
      %v5458 = vadd.f32 0.0, %v5457
      %5459 = vmatmul.bf16.gmra.mxu0 %v4519
      %v5460 = vpop.f32.mrf.mxu0
      %v5461 = vadd.f32 0.0, %v5460
      %v5462 = vpop.f32.mrf.mxu0
      %v5463 = vadd.f32 0.0, %v5462
      %5464 = vmatmul.bf16.gmra.mxu0 %v4522
      %v5465 = vpop.f32.mrf.mxu0
      %v5466 = vadd.f32 0.0, %v5465
      %v5467 = vpop.f32.mrf.mxu0
      %v5468 = vadd.f32 0.0, %v5467
      %5469 = vmatmul.bf16.gmra.mxu0 %v4954
      %v5470 = vpop.f32.mrf.mxu0
      %v5471 = vadd.f32 0.0, %v5470
      %v5472 = vpop.f32.mrf.mxu0
      %v5473 = vadd.f32 0.0, %v5472
      %5474 = vmatmul.bf16.gmra.mxu0 %v5386
      %v5475 = vpop.f32.mrf.mxu0
      %v5476 = vadd.f32 0.0, %v5475
      %v5477 = vpop.f32.mrf.mxu0
      %v5478 = vadd.f32 0.0, %v5477
      %5479 = vdwg.mxu0
      %v5480 = vadd.f32 %v5341, %v5401
      %v5481 = vadd.f32 %v5342, %v5403
      %v5482 = vadd.f32 %v5343, %v5406
      %v5483 = vadd.f32 %v5344, %v5408
      %v5484 = vadd.f32 %v5345, %v5411
      %v5485 = vadd.f32 %v5346, %v5413
      %v5486 = vadd.f32 %v5347, %v5416
      %v5487 = vadd.f32 %v5348, %v5418
      %v5488 = vadd.f32 %v5349, %v5421
      %v5489 = vadd.f32 %v5350, %v5423
      %v5490 = vadd.f32 %v5351, %v5426
      %v5491 = vadd.f32 %v5352, %v5428
      %v5492 = vadd.f32 %v5353, %v5431
      %v5493 = vadd.f32 %v5354, %v5433
      %v5494 = vadd.f32 %v5355, %v5436
      %v5495 = vadd.f32 %v5356, %v5438
      %v5496 = vadd.f32 %v5357, %v5441
      %v5497 = vadd.f32 %v5358, %v5443
      %v5498 = vadd.f32 %v5359, %v5446
      %v5499 = vadd.f32 %v5360, %v5448
      %v5500 = vadd.f32 %v5361, %v5451
      %v5501 = vadd.f32 %v5362, %v5453
      %v5502 = vadd.f32 %v5363, %v5456
      %v5503 = vadd.f32 %v5364, %v5458
      %v5504 = vadd.f32 %v5365, %v5461
      %v5505 = vadd.f32 %v5366, %v5463
      %v5506 = vadd.f32 %v5367, %v5466
      %v5507 = vadd.f32 %v5368, %v5468
      %v5508 = vadd.f32 %v5369, %v5471
      %v5509 = vadd.f32 %v5370, %v5473
      %v5510 = vadd.f32 %v5371, %v5476
      %v5511 = vadd.f32 %v5372, %v5478
      %v5512 = vld [vmem:[%s4] sm:$0x1]
      %v5514 = vperm.slane %v5512, 0
      %v5516 = vadd.f32 %v5480, %v5514
      %v5517 = vadd.f32 %v5481, %v5514
      %v5518 = vadd.f32 %v5482, %v5514
      %v5519 = vadd.f32 %v5483, %v5514
      %v5520 = vadd.f32 %v5484, %v5514
      %v5521 = vadd.f32 %v5485, %v5514
      %v5522 = vadd.f32 %v5486, %v5514
      %v5523 = vadd.f32 %v5487, %v5514
      %v5524 = vadd.f32 %v5488, %v5514
      %v5525 = vadd.f32 %v5489, %v5514
      %v5526 = vadd.f32 %v5490, %v5514
      %v5527 = vadd.f32 %v5491, %v5514
      %v5528 = vadd.f32 %v5492, %v5514
      %v5529 = vadd.f32 %v5493, %v5514
      %v5530 = vadd.f32 %v5494, %v5514
      %v5531 = vadd.f32 %v5495, %v5514
      %v5532 = vadd.f32 %v5496, %v5514
      %v5533 = vadd.f32 %v5497, %v5514
      %v5534 = vadd.f32 %v5498, %v5514
      %v5535 = vadd.f32 %v5499, %v5514
      %v5536 = vadd.f32 %v5500, %v5514
      %v5537 = vadd.f32 %v5501, %v5514
      %v5538 = vadd.f32 %v5502, %v5514
      %v5539 = vadd.f32 %v5503, %v5514
      %v5540 = vadd.f32 %v5504, %v5514
      %v5541 = vadd.f32 %v5505, %v5514
      %v5542 = vadd.f32 %v5506, %v5514
      %v5543 = vadd.f32 %v5507, %v5514
      %v5544 = vadd.f32 %v5508, %v5514
      %v5545 = vadd.f32 %v5509, %v5514
      %v5546 = vadd.f32 %v5510, %v5514
      %v5547 = vadd.f32 %v5511, %v5514
      %v5548 = vadd.f32 %v5516, %v336
      %v5549 = vadd.f32 %v5517, %v337
      %v5550 = vadd.f32 %v5518, %v338
      %v5551 = vadd.f32 %v5519, %v339
      %v5552 = vadd.f32 %v5520, %v340
      %v5553 = vadd.f32 %v5521, %v341
      %v5554 = vadd.f32 %v5522, %v342
      %v5555 = vadd.f32 %v5523, %v343
      %v5556 = vadd.f32 %v5524, %v344
      %v5557 = vadd.f32 %v5525, %v345
      %v5558 = vadd.f32 %v5526, %v346
      %v5559 = vadd.f32 %v5527, %v347
      %v5560 = vadd.f32 %v5528, %v348
      %v5561 = vadd.f32 %v5529, %v349
      %v5562 = vadd.f32 %v5530, %v350
      %v5563 = vadd.f32 %v5531, %v351
      %v5564 = vadd.f32 %v5532, %v352
      %v5565 = vadd.f32 %v5533, %v353
      %v5566 = vadd.f32 %v5534, %v354
      %v5567 = vadd.f32 %v5535, %v355
      %v5568 = vadd.f32 %v5536, %v356
      %v5569 = vadd.f32 %v5537, %v357
      %v5570 = vadd.f32 %v5538, %v358
      %v5571 = vadd.f32 %v5539, %v359
      %v5572 = vadd.f32 %v5540, %v360
      %v5573 = vadd.f32 %v5541, %v361
      %v5574 = vadd.f32 %v5542, %v362
      %v5575 = vadd.f32 %v5543, %v363
      %v5576 = vadd.f32 %v5544, %v364
      %v5577 = vadd.f32 %v5545, %v365
      %v5578 = vadd.f32 %v5546, %v366
      %v5579 = vadd.f32 %v5547, %v367
      %v5580 = vmax.f32 %v5548, 0.0
      %v5581 = vmax.f32 %v5549, 0.0
      %v5582 = vmax.f32 %v5550, 0.0
      %v5583 = vmax.f32 %v5551, 0.0
      %v5584 = vmax.f32 %v5552, 0.0
      %v5585 = vmax.f32 %v5553, 0.0
      %v5586 = vmax.f32 %v5554, 0.0
      %v5587 = vmax.f32 %v5555, 0.0
      %v5588 = vmax.f32 %v5556, 0.0
      %v5589 = vmax.f32 %v5557, 0.0
      %v5590 = vmax.f32 %v5558, 0.0
      %v5591 = vmax.f32 %v5559, 0.0
      %v5592 = vmax.f32 %v5560, 0.0
      %v5593 = vmax.f32 %v5561, 0.0
      %v5594 = vmax.f32 %v5562, 0.0
      %v5595 = vmax.f32 %v5563, 0.0
      %v5596 = vmax.f32 %v5564, 0.0
      %v5597 = vmax.f32 %v5565, 0.0
      %v5598 = vmax.f32 %v5566, 0.0
      %v5599 = vmax.f32 %v5567, 0.0
      %v5600 = vmax.f32 %v5568, 0.0
      %v5601 = vmax.f32 %v5569, 0.0
      %v5602 = vmax.f32 %v5570, 0.0
      %v5603 = vmax.f32 %v5571, 0.0
      %v5604 = vmax.f32 %v5572, 0.0
      %v5605 = vmax.f32 %v5573, 0.0
      %v5606 = vmax.f32 %v5574, 0.0
      %v5607 = vmax.f32 %v5575, 0.0
      %v5608 = vmax.f32 %v5576, 0.0
      %v5609 = vmax.f32 %v5577, 0.0
      %v5610 = vmax.f32 %v5578, 0.0
      %v5611 = vmax.f32 %v5579, 0.0
      %5612 = vst.msk [vmem:[%s224] sm:$0xff] %vm1336, %v5580
      %5613 = vst.msk [vmem:[%s224 + $0x8] sm:$0xff] %vm1336, %v5581
      %5614 = vst.msk [vmem:[%s224 + $0x10] sm:$0xff] %vm1336, %v5582
      %5615 = vst.msk [vmem:[%s224 + $0x18] sm:$0xff] %vm1336, %v5583
      %5616 = vst.msk [vmem:[%s224 + $0x20] sm:$0xff] %vm1336, %v5584
      %5617 = vst.msk [vmem:[%s224 + $0x28] sm:$0xff] %vm1336, %v5585
      %5618 = vst.msk [vmem:[%s224 + $0x30] sm:$0xff] %vm1336, %v5586
      %5619 = vst.msk [vmem:[%s224 + $0x38] sm:$0xff] %vm1336, %v5587
      %5620 = vst.msk [vmem:[%s224 + $0x40] sm:$0xff] %vm1336, %v5588
      %5621 = vst.msk [vmem:[%s224 + $0x48] sm:$0xff] %vm1336, %v5589
      %5622 = vst.msk [vmem:[%s224 + $0x50] sm:$0xff] %vm1336, %v5590
      %5623 = vst.msk [vmem:[%s224 + $0x58] sm:$0xff] %vm1336, %v5591
      %5624 = vst.msk [vmem:[%s224 + $0x60] sm:$0xff] %vm1336, %v5592
      %5625 = vst.msk [vmem:[%s224 + $0x68] sm:$0xff] %vm1336, %v5593
      %5626 = vst.msk [vmem:[%s224 + $0x70] sm:$0xff] %vm1336, %v5594
      %5627 = vst.msk [vmem:[%s224 + $0x78] sm:$0xff] %vm1336, %v5595
      %5628 = vst.msk [vmem:[%s224 + $0x80] sm:$0xff] %vm1336, %v5596
      %5629 = vst.msk [vmem:[%s224 + $0x88] sm:$0xff] %vm1336, %v5597
      %5630 = vst.msk [vmem:[%s224 + $0x90] sm:$0xff] %vm1336, %v5598
      %5631 = vst.msk [vmem:[%s224 + $0x98] sm:$0xff] %vm1336, %v5599
      %5632 = vst.msk [vmem:[%s224 + $0xa0] sm:$0xff] %vm1336, %v5600
      %5633 = vst.msk [vmem:[%s224 + $0xa8] sm:$0xff] %vm1336, %v5601
      %5634 = vst.msk [vmem:[%s224 + $0xb0] sm:$0xff] %vm1336, %v5602
      %5635 = vst.msk [vmem:[%s224 + $0xb8] sm:$0xff] %vm1336, %v5603
      %5636 = vst.msk [vmem:[%s224 + $0xc0] sm:$0xff] %vm1336, %v5604
      %5637 = vst.msk [vmem:[%s224 + $0xc8] sm:$0xff] %vm1336, %v5605
      %5638 = vst.msk [vmem:[%s224 + $0xd0] sm:$0xff] %vm1336, %v5606
      %5639 = vst.msk [vmem:[%s224 + $0xd8] sm:$0xff] %vm1336, %v5607
      %5640 = vst.msk [vmem:[%s224 + $0xe0] sm:$0xff] %vm1336, %v5608
      %5641 = vst.msk [vmem:[%s224 + $0xe8] sm:$0xff] %vm1336, %v5609
      %5642 = vst.msk [vmem:[%s224 + $0xf0] sm:$0xff] %vm1336, %v5610
      %5643 = vst.msk [vmem:[%s224 + $0xf8] sm:$0xff] %vm1336, %v5611
      %p5644 = scmp.lt.s32.totalorder %s16, 1
      %s5645 = scalar_select %p5644, %s16, 1
      %s5646 = smul.addr %s5645, 32
      %s5647 = smul.addr %s5646, 8
      %s5648 = scalar_lea.vmem %s5, %s5647
      // Predicated region
      $region41: #{tpu_custom_call.1} parent=39 // pred_check
        %p5649 = pneg %p144
      $region42: #{tpu_custom_call.1} parent=39 // pred_check_branch
        %5651 = sbr.rel (%p5649) target = $region44
      $region43: #{tpu_custom_call.1} parent=39 // pred_region
        _
      $region44: #{tpu_custom_call.1} parent=39 // pred_fallthru
        _
    $region40: #{tpu_custom_call.1} parent=5 // pred_fallthru
      _
    %p5652 = scmp.le.s32.totalorder 2, %s11
    // Predicated region
    $region45: #{tpu_custom_call.1} parent=5 // pred_check
      %p5653 = pneg %p5652
    $region46: #{tpu_custom_call.1} parent=5 // pred_check_branch
      %5655 = sbr.rel (%p5653) target = $region48
    $region47: #{tpu_custom_call.1} parent=5 // pred_region
      %s5656 = ssub.s32 %s11, 2
      // Predicated region
      $region49: #{tpu_custom_call.1} parent=47 // pred_check
        %p5657 = pneg %p150
      $region50: #{tpu_custom_call.1} parent=47 // pred_check_branch
        %5659 = sbr.rel (%p5657) target = $region52
      $region51: #{tpu_custom_call.1} parent=47 // pred_region
        %p5660 = scmp.lt.s32.totalorder %s17, 1
        %s5661 = scalar_select %p5660, %s17, 1
        %s5662 = smul.addr %s5661, 32
        %s5663 = smul.addr %s5662, 8
        %s5664 = scalar_lea.vmem %s5, %s5663
      $region52: #{tpu_custom_call.1} parent=47 // pred_fallthru
        _
    $region48: #{tpu_custom_call.1} parent=5 // pred_fallthru
      _
  $region6: #{tpu_custom_call.1} parent=0 // loop_footer
    %s15 = sadd.s32 1, %s11
  $region7: #{tpu_custom_call.1} parent=0 // loop_footer_branch
    %10 = sbr.rel target = $region3
  $region8: #{tpu_custom_call.1} parent=0 // loop_exit
    _

</llo_original>
